<compile_context>
chip_gen: v6e
topology: v6e:2x2x1
jax: 0.10.0
libtpu: 0.0.40
codegen_flags: <defaults>
</compile_context>

<pallas_src>
import functools

import jax
import jax.numpy as jnp
from jax.experimental import pallas as pl
from jax.experimental.pallas import tpu as pltpu


# Small per-channel vectors packed into one VMEM slab (row per vector, lane-padded).
VEC_NAMES = (
    "ln1_g", "ln1_b", "ff1_b1", "ff1_b2",
    "aln_g", "aln_b", "bo",
    "cln_g", "cln_b", "pw1_b", "dw_b", "chg", "pw2_b",
    "ln2_g", "ln2_b", "ff2_b1", "ff2_b2",
    "pn_g", "pn_b",
)


def rotary_freqs(seq_len: int, dim_head: int, theta: float = 10000.0) -> jnp.ndarray:
    """RotaryEmbedding frequency table computed at trace time (fused into the consumer)."""
    inv_freq = 1.0 / (theta ** (jnp.arange(0, dim_head, 2, dtype=jnp.float32) / dim_head))
    t = jnp.arange(seq_len, dtype=jnp.float32)
    freqs = t[:, None] * inv_freq[None, :]
    return jnp.concatenate([freqs, freqs], axis=-1)  # (seq_len, dim_head)


def _choose_batch_tile(B: int, N: int, target_rows: int = 256) -> int:
    """Pick batch elements per grid step: fill ~target_rows MXU rows, keep >=2 grid steps."""
    bt = max(1, min(B, max(1, target_rows // max(N, 1))))
    while bt > 1 and -(-B // bt) < min(2, B):   # keep >= 2 parallel steps (2 TCs on v7x)
        bt -= 1
    while bt > 1 and B % bt != 0:               # keep blocks rectangular / un-padded
        bt -= 1
    return bt


def _conformer_block_kernel(
    x_ref, cos_ref, sin_ref,
    ff1_w1_ref, ff1_w2_ref, wproj_ref, wo_ref, pw1_w_ref, dw_w_ref, pw2_w_ref,
    ff2_w1_ref, ff2_w2_ref, vecs_ref,
    o_ref,
    attn_sc,
    *, batch_tile, seq_len, heads, dim_head, kernel_size, pad_l, pad_r,
    vec_layout, compute_dtype, approx_softmax,
):
    f32 = jnp.float32
    cd = compute_dtype
    rows = batch_tile * seq_len
    inner = heads * dim_head

    x = x_ref[...].astype(f32)                       # (rows, D) — batch_tile sequences

    def vec(name):                                   # (1, width) f32 slice of the bias slab
        r, w = vec_layout[name]
        return vecs_ref[r:r + 1, :w]

    def mm(a, w_ref):                                # MXU matmul, cd inputs, f32 accumulation
        return jnp.dot(a.astype(cd), w_ref[...], preferred_element_type=f32)

    def layer_norm(t, g, b, eps=1e-5):               # nn.LayerNorm (biased var, eps in sqrt)
        mu = jnp.mean(t, axis=-1, keepdims=True)
        var = jnp.mean(jnp.square(t - mu), axis=-1, keepdims=True)
        return (t - mu) * jax.lax.rsqrt(var + eps) * g + b

    def swish(t):
        return t * jax.nn.sigmoid(t)

    def feed_forward(t, g, b, w1_ref, b1, w2_ref, b2):   # PreNorm(FeedForward)
        h = layer_norm(t, g, b)
        h = swish(mm(h, w1_ref) + b1)
        return mm(h, w2_ref) + b2

    # ------------- ff1: Scale(0.5, PreNorm(FeedForward)) + residual -------------
    x = x + 0.5 * feed_forward(x, vec("ln1_g"), vec("ln1_b"),
                               ff1_w1_ref, vec("ff1_b1"), ff1_w2_ref, vec("ff1_b2"))

    # ------------- attention: PreNorm(Attention(rotary)) + residual -------------
    xa = layer_norm(x, vec("aln_g"), vec("aln_b"))
    # wproj = [wq | wq_rot | wk | wk_rot | wv]: rotate_half folded into weight columns
    qkv = mm(xa, wproj_ref)                          # (rows, 5*inner), f32
    cos = cos_ref[...]                               # (N, dim_head) f32
    sin = sin_ref[...]
    scale = dim_head ** -0.5

    for b_i in range(batch_tile):                    # static unroll; per batch element
        r0 = b_i * seq_len
        rsl = slice(r0, r0 + seq_len)
        for h_i in range(heads):                     # static unroll; per head
            c0 = h_i * dim_head
            csl = slice(c0, c0 + dim_head)

            def qs(block, _c0=c0, _rsl=rsl):
                lo = block * inner + _c0
                return qkv[_rsl, lo:lo + dim_head]

            qh = qs(0) * cos + qs(1) * sin           # RoPE, no in-kernel rotate_half
            kh = qs(2) * cos + qs(3) * sin
            vh = qs(4)

            logits = jax.lax.dot_general(
                qh.astype(cd), kh.astype(cd), (((1,), (1,)), ((), ())),
                preferred_element_type=f32) * scale
            logits = logits - jnp.max(logits, axis=-1, keepdims=True)
            p = jnp.exp(logits)
            denom = jnp.sum(p, axis=-1, keepdims=True)
            if approx_softmax:
                p = p * pl.reciprocal(denom, approx=True)
            else:
                p = p / denom
            attn_sc[rsl, csl] = jnp.dot(p.astype(cd), vh.astype(cd),
                                        preferred_element_type=f32)

    x = x + mm(attn_sc[...], wo_ref) + vec("bo")     # to_out (with bias)

    # ------------- Conformer conv module + residual -------------
    xc = layer_norm(x, vec("cln_g"), vec("cln_b"))
    hpre = mm(xc, pw1_w_ref) + vec("pw1_b")          # 1x1 conv -> (rows, 2*ci)
    ci = hpre.shape[-1] // 2
    hglu = hpre[:, :ci] * jax.nn.sigmoid(hpre[:, ci:])   # GLU over channels

    # Depthwise conv along the sequence; "same" zero padding, masked per batch element so
    # positions never leak across batch boundaries inside the flattened (rows, ci) slab.
    hp = jnp.concatenate(
        [jnp.zeros((pad_l, ci), f32), hglu, jnp.zeros((pad_r, ci), f32)], axis=0)
    dw = dw_w_ref[...]                               # (kernel_size, ci) f32
    local = jax.lax.broadcasted_iota(jnp.int32, (rows, 1), 0) % seq_len
    acc = jnp.zeros((rows, ci), f32)
    for t in range(kernel_size):                     # shifted multiply-accumulates
        off = t - pad_l
        src = hp[t:t + rows, :]
        valid = jnp.logical_and(local + off >= 0, local + off < seq_len)
        acc = acc + jnp.where(valid, src, 0.0) * dw[t][None, :]
    y = swish(acc + vec("dw_b"))
    # ChanLayerNorm: normalize over channels, gamma only, clamped eps (1e-6 for f32).
    mu = jnp.mean(y, axis=-1, keepdims=True)
    var = jnp.mean(jnp.square(y - mu), axis=-1, keepdims=True)
    y = (y - mu) * jax.lax.rsqrt(jnp.maximum(var, 1e-6)) * vec("chg")
    x = x + mm(y, pw2_w_ref) + vec("pw2_b")          # 1x1 conv back to dim

    # ------------- ff2: Scale(0.5, PreNorm(FeedForward)) + residual -------------
    x = x + 0.5 * feed_forward(x, vec("ln2_g"), vec("ln2_b"),
                               ff2_w1_ref, vec("ff2_b1"), ff2_w2_ref, vec("ff2_b2"))

    # ------------- post norm -------------
    x = layer_norm(x, vec("pn_g"), vec("pn_b"))
    o_ref[...] = x.astype(o_ref.dtype)


def conformer_block(x, params, *, heads, dim_head, kernel_size=5, rotary_emb=None,
                    compute_dtype=jnp.bfloat16, batch_tile=None):
    """Fused ConformerBlock.forward. x: (B, N, D) f32. rotary_emb: (N, dim_head) freqs or None."""
    B, N, D = x.shape
    inner = heads * dim_head
    half = dim_head // 2
    pad_l = kernel_size // 2
    pad_r = pad_l - (kernel_size + 1) % 2

    if rotary_emb is None:
        cos = jnp.ones((N, dim_head), jnp.float32)
        sin = jnp.zeros((N, dim_head), jnp.float32)
    else:
        cos = jnp.cos(rotary_emb).astype(jnp.float32)
        sin = jnp.sin(rotary_emb).astype(jnp.float32)

    if batch_tile is None:
        batch_tile = _choose_batch_tile(B, N)
    assert B % batch_tile == 0, "batch_tile must divide the batch size"
    rows = batch_tile * N

    # ---- trace-time weight fusion / casting (no in-kernel cost) ----
    cd = compute_dtype
    wq, wkv = params["wq"], params["wkv"]
    wk, wv = wkv[:, :inner], wkv[:, inner:]

    def rot_cols(w):     # rotate_half folded into weight columns (per head: [-x2 | x1])
        w3 = w.reshape(D, heads, dim_head)
        return jnp.concatenate([-w3[..., half:], w3[..., :half]], axis=-1).reshape(D, inner)

    wproj = jnp.concatenate([wq, rot_cols(wq), wk, rot_cols(wk), wv], axis=-1)  # (D, 5*inner)

    mats = {
        "ff1_w1": params["ff1_w1"], "ff1_w2": params["ff1_w2"],
        "wproj": wproj, "wo": params["wo"],
        "pw1_w": params["pw1_w"], "pw2_w": params["pw2_w"],
        "ff2_w1": params["ff2_w1"], "ff2_w2": params["ff2_w2"],
    }
    mats = {k: v.astype(cd) for k, v in mats.items()}
    dw_w = params["dw_w"].astype(jnp.float32)        # depthwise taps stay f32 (VPU math)

    # ---- pack bias/gamma vectors into one lane-padded VMEM slab ----
    widths = [int(params[n].shape[-1]) for n in VEC_NAMES]
    maxw = ((max(widths) + 127) // 128) * 128
    slab = jnp.zeros((len(VEC_NAMES), maxw), jnp.float32)
    vec_layout = {}
    for i, n in enumerate(VEC_NAMES):
        v = params[n].reshape(-1).astype(jnp.float32)
        slab = slab.at[i, :v.shape[0]].set(v)
        vec_layout[n] = (i, int(v.shape[0]))

    x2 = x.reshape(B * N, D).astype(jnp.float32)     # flatten batch*seq rows (free in XLA)

    operands = [x2, cos, sin,
                mats["ff1_w1"], mats["ff1_w2"], mats["wproj"], mats["wo"],
                mats["pw1_w"], dw_w, mats["pw2_w"],
                mats["ff2_w1"], mats["ff2_w2"], slab]

    # x/out: batch_tile sequences per grid step. Weights/cos/sin/slab: full blocks with
    # constant index maps — VMEM-resident across the (parallel) batch grid.
    in_specs = [pl.BlockSpec((rows, D), lambda g: (g, 0))]
    for a in operands[1:]:
        in_specs.append(pl.BlockSpec(a.shape, lambda g, _nd=a.ndim: (0,) * _nd))

    kernel = functools.partial(
        _conformer_block_kernel,
        batch_tile=batch_tile, seq_len=N, heads=heads, dim_head=dim_head,
        kernel_size=kernel_size, pad_l=pad_l, pad_r=pad_r,
        vec_layout=vec_layout, compute_dtype=cd,
        approx_softmax=(cd != jnp.float32),
    )

    out = pl.pallas_call(
        kernel,
        out_shape=jax.ShapeDtypeStruct((B * N, D), jnp.float32),
        grid=(B // batch_tile,),
        in_specs=in_specs,
        out_specs=pl.BlockSpec((rows, D), lambda g: (g, 0)),
        scratch_shapes=[pltpu.VMEM((rows, inner), jnp.float32)],   # per-head attn outputs
        compiler_params=pltpu.CompilerParams(
            dimension_semantics=("parallel",),
            vmem_limit_bytes=64 * 1024 * 1024),
    )(*operands)
    return out.reshape(B, N, D)


def init_params(key, *, dim, heads, dim_head, ff_mult, conv_expansion, kernel_size):
    inner = heads * dim_head
    ffi = dim * ff_mult
    ci = dim * conv_expansion
    keys = iter(jax.random.split(key, 40))

    def rnd(shape, scale=1.0):
        return jax.random.normal(next(keys), shape, jnp.float32) * scale

    return {
        "ln1_g": 1.0 + 0.1 * rnd((1, dim)), "ln1_b": 0.1 * rnd((1, dim)),
        "ff1_w1": rnd((dim, ffi), dim ** -0.5), "ff1_b1": 0.1 * rnd((1, ffi)),
        "ff1_w2": rnd((ffi, dim), ffi ** -0.5), "ff1_b2": 0.1 * rnd((1, dim)),
        "aln_g": 1.0 + 0.1 * rnd((1, dim)), "aln_b": 0.1 * rnd((1, dim)),
        "wq": rnd((dim, inner), dim ** -0.5),
        "wkv": rnd((dim, 2 * inner), dim ** -0.5),
        "wo": rnd((inner, dim), inner ** -0.5), "bo": 0.1 * rnd((1, dim)),
        "cln_g": 1.0 + 0.1 * rnd((1, dim)), "cln_b": 0.1 * rnd((1, dim)),
        "pw1_w": rnd((dim, 2 * ci), dim ** -0.5), "pw1_b": 0.1 * rnd((1, 2 * ci)),
        "dw_w": rnd((kernel_size, ci), 0.3), "dw_b": 0.1 * rnd((1, ci)),
        "chg": 1.0 + 0.1 * rnd((1, ci)),
        "pw2_w": rnd((ci, dim), ci ** -0.5), "pw2_b": 0.1 * rnd((1, dim)),
        "ln2_g": 1.0 + 0.1 * rnd((1, dim)), "ln2_b": 0.1 * rnd((1, dim)),
        "ff2_w1": rnd((dim, ffi), dim ** -0.5), "ff2_b1": 0.1 * rnd((1, ffi)),
        "ff2_w2": rnd((ffi, dim), ffi ** -0.5), "ff2_b2": 0.1 * rnd((1, dim)),
        "pn_g": 1.0 + 0.1 * rnd((1, dim)), "pn_b": 0.1 * rnd((1, dim)),
    }


def _reference_block(x, p, *, heads, dim_head, kernel_size, rotary_emb=None,
                     matmul_dtype=jnp.float32):
    """Pure-jnp reference matching the PyTorch ConformerBlock math (dropout=0, mask=None).
    matmul_dtype mirrors the kernel's matmul-operand cast points (f32 accumulation)."""
    cd = matmul_dtype
    f32 = jnp.float32
    prec = jax.lax.Precision.HIGHEST if cd == jnp.float32 else None

    def dot(a, w):
        return jnp.dot(a.astype(cd), w.astype(cd), preferred_element_type=f32, precision=prec)

    def ln(t, g, b, eps=1e-5):
        mu = t.mean(-1, keepdims=True)
        var = ((t - mu) ** 2).mean(-1, keepdims=True)
        return (t - mu) / jnp.sqrt(var + eps) * g + b

    def swish(t):
        return t * jax.nn.sigmoid(t)

    def ff(t, g, b, w1, b1, w2, b2):
        h = ln(t, g, b)
        h = swish(dot(h, w1) + b1)
        return dot(h, w2) + b2

    B, N, D = x.shape
    inner = heads * dim_head
    if rotary_emb is None:
        cos = jnp.ones((N, dim_head), f32)
        sin = jnp.zeros((N, dim_head), f32)
    else:
        cos, sin = jnp.cos(rotary_emb), jnp.sin(rotary_emb)

    x = x + 0.5 * ff(x, p["ln1_g"], p["ln1_b"], p["ff1_w1"], p["ff1_b1"], p["ff1_w2"], p["ff1_b2"])

    xa = ln(x, p["aln_g"], p["aln_b"])
    q = dot(xa, p["wq"])
    kv = dot(xa, p["wkv"])
    k, v = kv[..., :inner], kv[..., inner:]

    def heads_split(t):
        return t.reshape(B, N, heads, dim_head).transpose(0, 2, 1, 3)

    q, k, v = map(heads_split, (q, k, v))

    def rot_half(t):
        h = t.shape[-1] // 2
        return jnp.concatenate([-t[..., h:], t[..., :h]], axis=-1)

    q = q * cos + rot_half(q) * sin
    k = k * cos + rot_half(k) * sin
    s = jnp.einsum("bhnd,bhmd->bhnm", q.astype(cd), k.astype(cd),
                   preferred_element_type=f32, precision=prec) * dim_head ** -0.5
    a = jax.nn.softmax(s, axis=-1)
    o = jnp.einsum("bhnm,bhmd->bhnd", a.astype(cd), v.astype(cd),
                   preferred_element_type=f32, precision=prec)
    o = o.transpose(0, 2, 1, 3).reshape(B, N, inner)
    x = x + dot(o, p["wo"]) + p["bo"]

    xc = ln(x, p["cln_g"], p["cln_b"])
    h = dot(xc, p["pw1_w"]) + p["pw1_b"]
    ci = h.shape[-1] // 2
    h = h[..., :ci] * jax.nn.sigmoid(h[..., ci:])
    pad_l = kernel_size // 2
    pad_r = pad_l - (kernel_size + 1) % 2
    hp = jnp.pad(h, ((0, 0), (pad_l, pad_r), (0, 0)))
    y = sum(hp[:, t:t + N, :] * p["dw_w"][t][None, None, :] for t in range(kernel_size))
    y = swish(y + p["dw_b"])
    mu = y.mean(-1, keepdims=True)
    var = ((y - mu) ** 2).mean(-1, keepdims=True)
    y = (y - mu) * jax.lax.rsqrt(jnp.maximum(var, 1e-6)) * p["chg"]
    x = x + dot(y, p["pw2_w"]) + p["pw2_b"]

    x = x + 0.5 * ff(x, p["ln2_g"], p["ln2_b"], p["ff2_w1"], p["ff2_b1"], p["ff2_w2"], p["ff2_b2"])
    return ln(x, p["pn_g"], p["pn_b"])


if __name__ == "__main__":
    # Small shapes consistent with the module's forward: batch=4, seq=16, dim=32,
    # heads=4, dim_head=16, ff_mult=4, conv_expansion_factor=2, conv_kernel_size=5.
    B, N, D = 4, 16, 32
    heads, dim_head = 4, 16
    ff_mult, conv_exp, ksz = 4, 2, 5

    key = jax.random.PRNGKey(0)
    kx, kp = jax.random.split(key)
    x = jax.random.normal(kx, (B, N, D), jnp.float32)
    params = init_params(kp, dim=D, heads=heads, dim_head=dim_head,
                         ff_mult=ff_mult, conv_expansion=conv_exp, kernel_size=ksz)

    # Rotary freq table generated at trace time and fused into the kernel.
    rot = rotary_freqs(N, dim_head)

    # --- fast path: bf16 matmul operands (f32 accumulation), checked vs bf16-mirrored ref ---
    out_bf16 = jax.block_until_ready(conformer_block(
        x, params, heads=heads, dim_head=dim_head, kernel_size=ksz,
        rotary_emb=rot, compute_dtype=jnp.bfloat16))
    ref_bf16 = jax.block_until_ready(_reference_block(
        x, params, heads=heads, dim_head=dim_head, kernel_size=ksz,
        rotary_emb=rot, matmul_dtype=jnp.bfloat16))
    assert out_bf16.shape == (B, N, D) and out_bf16.dtype == jnp.float32
    err_bf16 = float(jnp.max(jnp.abs(out_bf16 - ref_bf16)))
    assert jnp.allclose(out_bf16, ref_bf16, atol=5e-2, rtol=5e-2), f"bf16 max abs err {err_bf16}"

    # --- f32 path: tight numerical check of the fused math vs HIGHEST-precision reference ---
    out_f32 = jax.block_until_ready(conformer_block(
        x, params, heads=heads, dim_head=dim_head, kernel_size=ksz,
        rotary_emb=rot, compute_dtype=jnp.float32))
    ref_f32 = jax.block_until_ready(_reference_block(
        x, params, heads=heads, dim_head=dim_head, kernel_size=ksz,
        rotary_emb=rot, matmul_dtype=jnp.float32))
    err_f32 = float(jnp.max(jnp.abs(out_f32 - ref_f32)))
    assert jnp.allclose(out_f32, ref_f32, atol=2e-3, rtol=2e-3), f"f32 max abs err {err_f32}"

    print("KERNEL_OK")
</pallas_src>

<mosaic_0001>
module attributes {stable_mosaic.version = 11 : i64} {
  func.func @_conformer_block_kernel(%arg0: i32, %arg1: memref<32x32xf32, #tpu.memory_space<vmem>>, %arg2: memref<16x16xf32, #tpu.memory_space<vmem>>, %arg3: memref<16x16xf32, #tpu.memory_space<vmem>>, %arg4: memref<32x128xbf16, #tpu.memory_space<vmem>>, %arg5: memref<128x32xbf16, #tpu.memory_space<vmem>>, %arg6: memref<32x320xbf16, #tpu.memory_space<vmem>>, %arg7: memref<64x32xbf16, #tpu.memory_space<vmem>>, %arg8: memref<32x128xbf16, #tpu.memory_space<vmem>>, %arg9: memref<5x64xf32, #tpu.memory_space<vmem>>, %arg10: memref<64x32xbf16, #tpu.memory_space<vmem>>, %arg11: memref<32x128xbf16, #tpu.memory_space<vmem>>, %arg12: memref<128x32xbf16, #tpu.memory_space<vmem>>, %arg13: memref<19x128xf32, #tpu.memory_space<vmem>>, %arg14: memref<32x32xf32, #tpu.memory_space<vmem>>, %arg15: memref<32x64xf32, #tpu.memory_space<vmem>>) attributes {dimension_semantics = [#tpu.dimension_semantics<parallel>], iteration_bounds = array<i64: 2>, scalar_prefetch = 0 : i64, scratch_operands = 1 : i64, tpu.core_type = #tpu.core_type<tc>, window_params = [{transform_indices = @transform_0, window_bounds = array<i64: 32, 32>}, {pipeline_mode = #tpu.pipeline_mode<synchronous>, transform_indices = @transform_1, window_bounds = array<i64: 16, 16>}, {pipeline_mode = #tpu.pipeline_mode<synchronous>, transform_indices = @transform_2, window_bounds = array<i64: 16, 16>}, {pipeline_mode = #tpu.pipeline_mode<synchronous>, transform_indices = @transform_3, window_bounds = array<i64: 32, 128>}, {pipeline_mode = #tpu.pipeline_mode<synchronous>, transform_indices = @transform_4, window_bounds = array<i64: 128, 32>}, {pipeline_mode = #tpu.pipeline_mode<synchronous>, transform_indices = @transform_5, window_bounds = array<i64: 32, 320>}, {pipeline_mode = #tpu.pipeline_mode<synchronous>, transform_indices = @transform_6, window_bounds = array<i64: 64, 32>}, {pipeline_mode = #tpu.pipeline_mode<synchronous>, transform_indices = @transform_7, window_bounds = array<i64: 32, 128>}, {pipeline_mode = #tpu.pipeline_mode<synchronous>, transform_indices = @transform_8, window_bounds = array<i64: 5, 64>}, {pipeline_mode = #tpu.pipeline_mode<synchronous>, transform_indices = @transform_9, window_bounds = array<i64: 64, 32>}, {pipeline_mode = #tpu.pipeline_mode<synchronous>, transform_indices = @transform_10, window_bounds = array<i64: 32, 128>}, {pipeline_mode = #tpu.pipeline_mode<synchronous>, transform_indices = @transform_11, window_bounds = array<i64: 128, 32>}, {pipeline_mode = #tpu.pipeline_mode<synchronous>, transform_indices = @transform_12, window_bounds = array<i64: 19, 128>}, {transform_indices = @transform_13, window_bounds = array<i64: 32, 32>}]} {
    %c0 = arith.constant 0 : index
    %c0_0 = arith.constant 0 : index
    %0 = vector.load %arg1[%c0, %c0_0] : memref<32x32xf32, #tpu.memory_space<vmem>>, vector<32x32xf32>
    %c0_1 = arith.constant 0 : index
    %c0_2 = arith.constant 0 : index
    %1 = vector.load %arg13[%c0_1, %c0_2] : memref<19x128xf32, #tpu.memory_space<vmem>>, vector<1x32xf32>
    %c1 = arith.constant 1 : index
    %c0_3 = arith.constant 0 : index
    %2 = vector.load %arg13[%c1, %c0_3] : memref<19x128xf32, #tpu.memory_space<vmem>>, vector<1x32xf32>
    %c2 = arith.constant 2 : index
    %c0_4 = arith.constant 0 : index
    %3 = vector.load %arg13[%c2, %c0_4] : memref<19x128xf32, #tpu.memory_space<vmem>>, vector<1x128xf32>
    %c3 = arith.constant 3 : index
    %c0_5 = arith.constant 0 : index
    %4 = vector.load %arg13[%c3, %c0_5] : memref<19x128xf32, #tpu.memory_space<vmem>>, vector<1x32xf32>
    %cst = arith.constant dense<0.000000e+00> : vector<32xf32>
    %5 = vector.multi_reduction <add>, %0, %cst [1] : vector<32x32xf32> to vector<32xf32>
    %6 = vector.shape_cast %5 : vector<32xf32> to vector<32x1xf32>
    %cst_6 = arith.constant 3.200000e+01 : f32
    %7 = vector.broadcast %cst_6 : f32 to vector<32x1xf32>
    %8 = arith.divf %6, %7 : vector<32x1xf32>
    %9 = vector.broadcast %8 : vector<32x1xf32> to vector<32x32xf32>
    %10 = arith.subf %0, %9 : vector<32x32xf32>
    %11 = arith.mulf %10, %10 : vector<32x32xf32>
    %cst_7 = arith.constant dense<0.000000e+00> : vector<32xf32>
    %12 = vector.multi_reduction <add>, %11, %cst_7 [1] : vector<32x32xf32> to vector<32xf32>
    %13 = vector.shape_cast %12 : vector<32xf32> to vector<32x1xf32>
    %cst_8 = arith.constant 3.200000e+01 : f32
    %14 = vector.broadcast %cst_8 : f32 to vector<32x1xf32>
    %15 = arith.divf %13, %14 : vector<32x1xf32>
    %16 = vector.broadcast %8 : vector<32x1xf32> to vector<32x32xf32>
    %17 = arith.subf %0, %16 : vector<32x32xf32>
    %cst_9 = arith.constant 9.99999974E-6 : f32
    %18 = vector.broadcast %cst_9 : f32 to vector<32x1xf32>
    %19 = arith.addf %15, %18 : vector<32x1xf32>
    %20 = math.rsqrt %19 : vector<32x1xf32>
    %21 = vector.broadcast %20 : vector<32x1xf32> to vector<32x32xf32>
    %22 = arith.mulf %17, %21 : vector<32x32xf32>
    %23 = vector.broadcast %1 : vector<1x32xf32> to vector<32x32xf32>
    %24 = arith.mulf %22, %23 : vector<32x32xf32>
    %25 = vector.broadcast %2 : vector<1x32xf32> to vector<32x32xf32>
    %26 = arith.addf %24, %25 : vector<32x32xf32>
    %27 = arith.truncf %26 : vector<32x32xf32> to vector<32x32xbf16>
    %c0_10 = arith.constant 0 : index
    %c0_11 = arith.constant 0 : index
    %28 = vector.load %arg4[%c0_10, %c0_11] : memref<32x128xbf16, #tpu.memory_space<vmem>>, vector<32x128xbf16>
    %cst_12 = arith.constant dense<0.000000e+00> : vector<32x128xf32>
    %29 = tpu.matmul %27, %28, %cst_12 {dimension_numbers = #tpu.dot_dimension_numbers<[1], [0], [0], [1], [0, 0, 1, 1], [], []>} : vector<32x32xbf16>, vector<32x128xbf16>, vector<32x128xf32> -> vector<32x128xf32>
    %30 = vector.broadcast %3 : vector<1x128xf32> to vector<32x128xf32>
    %31 = arith.addf %29, %30 : vector<32x128xf32>
    %32 = arith.negf %31 : vector<32x128xf32>
    %33 = math.exp %32 : vector<32x128xf32>
    %cst_13 = arith.constant 1.000000e+00 : f32
    %34 = vector.broadcast %cst_13 : f32 to vector<32x128xf32>
    %35 = arith.addf %34, %33 : vector<32x128xf32>
    %36 = arith.divf %34, %35 : vector<32x128xf32>
    %37 = arith.mulf %31, %36 : vector<32x128xf32>
    %38 = arith.truncf %37 : vector<32x128xf32> to vector<32x128xbf16>
    %c0_14 = arith.constant 0 : index
    %c0_15 = arith.constant 0 : index
    %39 = vector.load %arg5[%c0_14, %c0_15] : memref<128x32xbf16, #tpu.memory_space<vmem>>, vector<128x32xbf16>
    %cst_16 = arith.constant dense<0.000000e+00> : vector<32x32xf32>
    %40 = tpu.matmul %38, %39, %cst_16 {dimension_numbers = #tpu.dot_dimension_numbers<[1], [0], [0], [1], [0, 0, 1, 1], [], []>} : vector<32x128xbf16>, vector<128x32xbf16>, vector<32x32xf32> -> vector<32x32xf32>
    %41 = vector.broadcast %4 : vector<1x32xf32> to vector<32x32xf32>
    %42 = arith.addf %40, %41 : vector<32x32xf32>
    %cst_17 = arith.constant 5.000000e-01 : f32
    %43 = vector.broadcast %cst_17 : f32 to vector<32x32xf32>
    %44 = arith.mulf %43, %42 : vector<32x32xf32>
    %45 = arith.addf %0, %44 : vector<32x32xf32>
    %c4 = arith.constant 4 : index
    %c0_18 = arith.constant 0 : index
    %46 = vector.load %arg13[%c4, %c0_18] : memref<19x128xf32, #tpu.memory_space<vmem>>, vector<1x32xf32>
    %c5 = arith.constant 5 : index
    %c0_19 = arith.constant 0 : index
    %47 = vector.load %arg13[%c5, %c0_19] : memref<19x128xf32, #tpu.memory_space<vmem>>, vector<1x32xf32>
    %cst_20 = arith.constant dense<0.000000e+00> : vector<32xf32>
    %48 = vector.multi_reduction <add>, %45, %cst_20 [1] : vector<32x32xf32> to vector<32xf32>
    %49 = vector.shape_cast %48 : vector<32xf32> to vector<32x1xf32>
    %cst_21 = arith.constant 3.200000e+01 : f32
    %50 = vector.broadcast %cst_21 : f32 to vector<32x1xf32>
    %51 = arith.divf %49, %50 : vector<32x1xf32>
    %52 = vector.broadcast %51 : vector<32x1xf32> to vector<32x32xf32>
    %53 = arith.subf %45, %52 : vector<32x32xf32>
    %54 = arith.mulf %53, %53 : vector<32x32xf32>
    %cst_22 = arith.constant dense<0.000000e+00> : vector<32xf32>
    %55 = vector.multi_reduction <add>, %54, %cst_22 [1] : vector<32x32xf32> to vector<32xf32>
    %56 = vector.shape_cast %55 : vector<32xf32> to vector<32x1xf32>
    %cst_23 = arith.constant 3.200000e+01 : f32
    %57 = vector.broadcast %cst_23 : f32 to vector<32x1xf32>
    %58 = arith.divf %56, %57 : vector<32x1xf32>
    %59 = vector.broadcast %51 : vector<32x1xf32> to vector<32x32xf32>
    %60 = arith.subf %45, %59 : vector<32x32xf32>
    %cst_24 = arith.constant 9.99999974E-6 : f32
    %61 = vector.broadcast %cst_24 : f32 to vector<32x1xf32>
    %62 = arith.addf %58, %61 : vector<32x1xf32>
    %63 = math.rsqrt %62 : vector<32x1xf32>
    %64 = vector.broadcast %63 : vector<32x1xf32> to vector<32x32xf32>
    %65 = arith.mulf %60, %64 : vector<32x32xf32>
    %66 = vector.broadcast %46 : vector<1x32xf32> to vector<32x32xf32>
    %67 = arith.mulf %65, %66 : vector<32x32xf32>
    %68 = vector.broadcast %47 : vector<1x32xf32> to vector<32x32xf32>
    %69 = arith.addf %67, %68 : vector<32x32xf32>
    %70 = arith.truncf %69 : vector<32x32xf32> to vector<32x32xbf16>
    %c0_25 = arith.constant 0 : index
    %c0_26 = arith.constant 0 : index
    %71 = vector.load %arg6[%c0_25, %c0_26] : memref<32x320xbf16, #tpu.memory_space<vmem>>, vector<32x320xbf16>
    %cst_27 = arith.constant dense<0.000000e+00> : vector<32x320xf32>
    %72 = tpu.matmul %70, %71, %cst_27 {dimension_numbers = #tpu.dot_dimension_numbers<[1], [0], [0], [1], [0, 0, 1, 1], [], []>} : vector<32x32xbf16>, vector<32x320xbf16>, vector<32x320xf32> -> vector<32x320xf32>
    %c0_28 = arith.constant 0 : index
    %c0_29 = arith.constant 0 : index
    %73 = vector.load %arg2[%c0_28, %c0_29] : memref<16x16xf32, #tpu.memory_space<vmem>>, vector<16x16xf32>
    %c0_30 = arith.constant 0 : index
    %c0_31 = arith.constant 0 : index
    %74 = vector.load %arg3[%c0_30, %c0_31] : memref<16x16xf32, #tpu.memory_space<vmem>>, vector<16x16xf32>
    %75 = vector.extract_strided_slice %72 {offsets = [0, 0], sizes = [16, 16], strides = [1, 1]} : vector<32x320xf32> to vector<16x16xf32>
    %76 = arith.mulf %75, %73 : vector<16x16xf32>
    %77 = vector.extract_strided_slice %72 {offsets = [0, 64], sizes = [16, 16], strides = [1, 1]} : vector<32x320xf32> to vector<16x16xf32>
    %78 = arith.mulf %77, %74 : vector<16x16xf32>
    %79 = arith.addf %76, %78 : vector<16x16xf32>
    %80 = vector.extract_strided_slice %72 {offsets = [0, 128], sizes = [16, 16], strides = [1, 1]} : vector<32x320xf32> to vector<16x16xf32>
    %81 = arith.mulf %80, %73 : vector<16x16xf32>
    %82 = vector.extract_strided_slice %72 {offsets = [0, 192], sizes = [16, 16], strides = [1, 1]} : vector<32x320xf32> to vector<16x16xf32>
    %83 = arith.mulf %82, %74 : vector<16x16xf32>
    %84 = arith.addf %81, %83 : vector<16x16xf32>
    %85 = vector.extract_strided_slice %72 {offsets = [0, 256], sizes = [16, 16], strides = [1, 1]} : vector<32x320xf32> to vector<16x16xf32>
    %86 = arith.truncf %79 : vector<16x16xf32> to vector<16x16xbf16>
    %87 = arith.truncf %84 : vector<16x16xf32> to vector<16x16xbf16>
    %cst_32 = arith.constant dense<0.000000e+00> : vector<16x16xf32>
    %88 = tpu.matmul %86, %87, %cst_32 {dimension_numbers = #tpu.dot_dimension_numbers<[1], [1], [0], [0], [0, 0, 1, 0], [], []>} : vector<16x16xbf16>, vector<16x16xbf16>, vector<16x16xf32> -> vector<16x16xf32>
    %cst_33 = arith.constant 2.500000e-01 : f32
    %89 = vector.broadcast %cst_33 : f32 to vector<16x16xf32>
    %90 = arith.mulf %88, %89 : vector<16x16xf32>
    %cst_34 = arith.constant dense<0xFF800000> : vector<16xf32>
    %91 = vector.multi_reduction <maximumf>, %90, %cst_34 [1] : vector<16x16xf32> to vector<16xf32>
    %92 = vector.shape_cast %91 : vector<16xf32> to vector<16x1xf32>
    %93 = vector.broadcast %92 : vector<16x1xf32> to vector<16x16xf32>
    %94 = arith.subf %90, %93 : vector<16x16xf32>
    %95 = math.exp %94 : vector<16x16xf32>
    %cst_35 = arith.constant dense<0.000000e+00> : vector<16xf32>
    %96 = vector.multi_reduction <add>, %95, %cst_35 [1] : vector<16x16xf32> to vector<16xf32>
    %97 = vector.shape_cast %96 : vector<16xf32> to vector<16x1xf32>
    %98 = tpu.reciprocal %97 {approx = true} : vector<16x1xf32> -> vector<16x1xf32>
    %99 = vector.broadcast %98 : vector<16x1xf32> to vector<16x16xf32>
    %100 = arith.mulf %95, %99 : vector<16x16xf32>
    %101 = arith.truncf %100 : vector<16x16xf32> to vector<16x16xbf16>
    %102 = arith.truncf %85 : vector<16x16xf32> to vector<16x16xbf16>
    %cst_36 = arith.constant dense<0.000000e+00> : vector<16x16xf32>
    %103 = tpu.matmul %101, %102, %cst_36 {dimension_numbers = #tpu.dot_dimension_numbers<[1], [0], [0], [1], [0, 0, 1, 1], [], []>} : vector<16x16xbf16>, vector<16x16xbf16>, vector<16x16xf32> -> vector<16x16xf32>
    %c0_37 = arith.constant 0 : index
    %c0_38 = arith.constant 0 : index
    %104 = vector.load %arg15[%c0_37, %c0_38] : memref<32x64xf32, #tpu.memory_space<vmem>>, vector<16x16xf32>
    tpu.vector_store %arg15[%c0_37, %c0_38], %103 {strides = array<i32>} : memref<32x64xf32, #tpu.memory_space<vmem>>, vector<16x16xf32>,
    %105 = vector.extract_strided_slice %72 {offsets = [0, 16], sizes = [16, 16], strides = [1, 1]} : vector<32x320xf32> to vector<16x16xf32>
    %106 = arith.mulf %105, %73 : vector<16x16xf32>
    %107 = vector.extract_strided_slice %72 {offsets = [0, 80], sizes = [16, 16], strides = [1, 1]} : vector<32x320xf32> to vector<16x16xf32>
    %108 = arith.mulf %107, %74 : vector<16x16xf32>
    %109 = arith.addf %106, %108 : vector<16x16xf32>
    %110 = vector.extract_strided_slice %72 {offsets = [0, 144], sizes = [16, 16], strides = [1, 1]} : vector<32x320xf32> to vector<16x16xf32>
    %111 = arith.mulf %110, %73 : vector<16x16xf32>
    %112 = vector.extract_strided_slice %72 {offsets = [0, 208], sizes = [16, 16], strides = [1, 1]} : vector<32x320xf32> to vector<16x16xf32>
    %113 = arith.mulf %112, %74 : vector<16x16xf32>
    %114 = arith.addf %111, %113 : vector<16x16xf32>
    %115 = vector.extract_strided_slice %72 {offsets = [0, 272], sizes = [16, 16], strides = [1, 1]} : vector<32x320xf32> to vector<16x16xf32>
    %116 = arith.truncf %109 : vector<16x16xf32> to vector<16x16xbf16>
    %117 = arith.truncf %114 : vector<16x16xf32> to vector<16x16xbf16>
    %cst_39 = arith.constant dense<0.000000e+00> : vector<16x16xf32>
    %118 = tpu.matmul %116, %117, %cst_39 {dimension_numbers = #tpu.dot_dimension_numbers<[1], [1], [0], [0], [0, 0, 1, 0], [], []>} : vector<16x16xbf16>, vector<16x16xbf16>, vector<16x16xf32> -> vector<16x16xf32>
    %cst_40 = arith.constant 2.500000e-01 : f32
    %119 = vector.broadcast %cst_40 : f32 to vector<16x16xf32>
    %120 = arith.mulf %118, %119 : vector<16x16xf32>
    %cst_41 = arith.constant dense<0xFF800000> : vector<16xf32>
    %121 = vector.multi_reduction <maximumf>, %120, %cst_41 [1] : vector<16x16xf32> to vector<16xf32>
    %122 = vector.shape_cast %121 : vector<16xf32> to vector<16x1xf32>
    %123 = vector.broadcast %122 : vector<16x1xf32> to vector<16x16xf32>
    %124 = arith.subf %120, %123 : vector<16x16xf32>
    %125 = math.exp %124 : vector<16x16xf32>
    %cst_42 = arith.constant dense<0.000000e+00> : vector<16xf32>
    %126 = vector.multi_reduction <add>, %125, %cst_42 [1] : vector<16x16xf32> to vector<16xf32>
    %127 = vector.shape_cast %126 : vector<16xf32> to vector<16x1xf32>
    %128 = tpu.reciprocal %127 {approx = true} : vector<16x1xf32> -> vector<16x1xf32>
    %129 = vector.broadcast %128 : vector<16x1xf32> to vector<16x16xf32>
    %130 = arith.mulf %125, %129 : vector<16x16xf32>
    %131 = arith.truncf %130 : vector<16x16xf32> to vector<16x16xbf16>
    %132 = arith.truncf %115 : vector<16x16xf32> to vector<16x16xbf16>
    %cst_43 = arith.constant dense<0.000000e+00> : vector<16x16xf32>
    %133 = tpu.matmul %131, %132, %cst_43 {dimension_numbers = #tpu.dot_dimension_numbers<[1], [0], [0], [1], [0, 0, 1, 1], [], []>} : vector<16x16xbf16>, vector<16x16xbf16>, vector<16x16xf32> -> vector<16x16xf32>
    %c0_44 = arith.constant 0 : index
    %c16 = arith.constant 16 : index
    %134 = vector.load %arg15[%c0_44, %c16] : memref<32x64xf32, #tpu.memory_space<vmem>>, vector<16x16xf32>
    tpu.vector_store %arg15[%c0_44, %c16], %133 {strides = array<i32>} : memref<32x64xf32, #tpu.memory_space<vmem>>, vector<16x16xf32>,
    %135 = vector.extract_strided_slice %72 {offsets = [0, 32], sizes = [16, 16], strides = [1, 1]} : vector<32x320xf32> to vector<16x16xf32>
    %136 = arith.mulf %135, %73 : vector<16x16xf32>
    %137 = vector.extract_strided_slice %72 {offsets = [0, 96], sizes = [16, 16], strides = [1, 1]} : vector<32x320xf32> to vector<16x16xf32>
    %138 = arith.mulf %137, %74 : vector<16x16xf32>
    %139 = arith.addf %136, %138 : vector<16x16xf32>
    %140 = vector.extract_strided_slice %72 {offsets = [0, 160], sizes = [16, 16], strides = [1, 1]} : vector<32x320xf32> to vector<16x16xf32>
    %141 = arith.mulf %140, %73 : vector<16x16xf32>
    %142 = vector.extract_strided_slice %72 {offsets = [0, 224], sizes = [16, 16], strides = [1, 1]} : vector<32x320xf32> to vector<16x16xf32>
    %143 = arith.mulf %142, %74 : vector<16x16xf32>
    %144 = arith.addf %141, %143 : vector<16x16xf32>
    %145 = vector.extract_strided_slice %72 {offsets = [0, 288], sizes = [16, 16], strides = [1, 1]} : vector<32x320xf32> to vector<16x16xf32>
    %146 = arith.truncf %139 : vector<16x16xf32> to vector<16x16xbf16>
    %147 = arith.truncf %144 : vector<16x16xf32> to vector<16x16xbf16>
    %cst_45 = arith.constant dense<0.000000e+00> : vector<16x16xf32>
    %148 = tpu.matmul %146, %147, %cst_45 {dimension_numbers = #tpu.dot_dimension_numbers<[1], [1], [0], [0], [0, 0, 1, 0], [], []>} : vector<16x16xbf16>, vector<16x16xbf16>, vector<16x16xf32> -> vector<16x16xf32>
    %cst_46 = arith.constant 2.500000e-01 : f32
    %149 = vector.broadcast %cst_46 : f32 to vector<16x16xf32>
    %150 = arith.mulf %148, %149 : vector<16x16xf32>
    %cst_47 = arith.constant dense<0xFF800000> : vector<16xf32>
    %151 = vector.multi_reduction <maximumf>, %150, %cst_47 [1] : vector<16x16xf32> to vector<16xf32>
    %152 = vector.shape_cast %151 : vector<16xf32> to vector<16x1xf32>
    %153 = vector.broadcast %152 : vector<16x1xf32> to vector<16x16xf32>
    %154 = arith.subf %150, %153 : vector<16x16xf32>
    %155 = math.exp %154 : vector<16x16xf32>
    %cst_48 = arith.constant dense<0.000000e+00> : vector<16xf32>
    %156 = vector.multi_reduction <add>, %155, %cst_48 [1] : vector<16x16xf32> to vector<16xf32>
    %157 = vector.shape_cast %156 : vector<16xf32> to vector<16x1xf32>
    %158 = tpu.reciprocal %157 {approx = true} : vector<16x1xf32> -> vector<16x1xf32>
    %159 = vector.broadcast %158 : vector<16x1xf32> to vector<16x16xf32>
    %160 = arith.mulf %155, %159 : vector<16x16xf32>
    %161 = arith.truncf %160 : vector<16x16xf32> to vector<16x16xbf16>
    %162 = arith.truncf %145 : vector<16x16xf32> to vector<16x16xbf16>
    %cst_49 = arith.constant dense<0.000000e+00> : vector<16x16xf32>
    %163 = tpu.matmul %161, %162, %cst_49 {dimension_numbers = #tpu.dot_dimension_numbers<[1], [0], [0], [1], [0, 0, 1, 1], [], []>} : vector<16x16xbf16>, vector<16x16xbf16>, vector<16x16xf32> -> vector<16x16xf32>
    %c0_50 = arith.constant 0 : index
    %c32 = arith.constant 32 : index
    %164 = vector.load %arg15[%c0_50, %c32] : memref<32x64xf32, #tpu.memory_space<vmem>>, vector<16x16xf32>
    tpu.vector_store %arg15[%c0_50, %c32], %163 {strides = array<i32>} : memref<32x64xf32, #tpu.memory_space<vmem>>, vector<16x16xf32>,
    %165 = vector.extract_strided_slice %72 {offsets = [0, 48], sizes = [16, 16], strides = [1, 1]} : vector<32x320xf32> to vector<16x16xf32>
    %166 = arith.mulf %165, %73 : vector<16x16xf32>
    %167 = vector.extract_strided_slice %72 {offsets = [0, 112], sizes = [16, 16], strides = [1, 1]} : vector<32x320xf32> to vector<16x16xf32>
    %168 = arith.mulf %167, %74 : vector<16x16xf32>
    %169 = arith.addf %166, %168 : vector<16x16xf32>
    %170 = vector.extract_strided_slice %72 {offsets = [0, 176], sizes = [16, 16], strides = [1, 1]} : vector<32x320xf32> to vector<16x16xf32>
    %171 = arith.mulf %170, %73 : vector<16x16xf32>
    %172 = vector.extract_strided_slice %72 {offsets = [0, 240], sizes = [16, 16], strides = [1, 1]} : vector<32x320xf32> to vector<16x16xf32>
    %173 = arith.mulf %172, %74 : vector<16x16xf32>
    %174 = arith.addf %171, %173 : vector<16x16xf32>
    %175 = vector.extract_strided_slice %72 {offsets = [0, 304], sizes = [16, 16], strides = [1, 1]} : vector<32x320xf32> to vector<16x16xf32>
    %176 = arith.truncf %169 : vector<16x16xf32> to vector<16x16xbf16>
    %177 = arith.truncf %174 : vector<16x16xf32> to vector<16x16xbf16>
    %cst_51 = arith.constant dense<0.000000e+00> : vector<16x16xf32>
    %178 = tpu.matmul %176, %177, %cst_51 {dimension_numbers = #tpu.dot_dimension_numbers<[1], [1], [0], [0], [0, 0, 1, 0], [], []>} : vector<16x16xbf16>, vector<16x16xbf16>, vector<16x16xf32> -> vector<16x16xf32>
    %cst_52 = arith.constant 2.500000e-01 : f32
    %179 = vector.broadcast %cst_52 : f32 to vector<16x16xf32>
    %180 = arith.mulf %178, %179 : vector<16x16xf32>
    %cst_53 = arith.constant dense<0xFF800000> : vector<16xf32>
    %181 = vector.multi_reduction <maximumf>, %180, %cst_53 [1] : vector<16x16xf32> to vector<16xf32>
    %182 = vector.shape_cast %181 : vector<16xf32> to vector<16x1xf32>
    %183 = vector.broadcast %182 : vector<16x1xf32> to vector<16x16xf32>
    %184 = arith.subf %180, %183 : vector<16x16xf32>
    %185 = math.exp %184 : vector<16x16xf32>
    %cst_54 = arith.constant dense<0.000000e+00> : vector<16xf32>
    %186 = vector.multi_reduction <add>, %185, %cst_54 [1] : vector<16x16xf32> to vector<16xf32>
    %187 = vector.shape_cast %186 : vector<16xf32> to vector<16x1xf32>
    %188 = tpu.reciprocal %187 {approx = true} : vector<16x1xf32> -> vector<16x1xf32>
    %189 = vector.broadcast %188 : vector<16x1xf32> to vector<16x16xf32>
    %190 = arith.mulf %185, %189 : vector<16x16xf32>
    %191 = arith.truncf %190 : vector<16x16xf32> to vector<16x16xbf16>
    %192 = arith.truncf %175 : vector<16x16xf32> to vector<16x16xbf16>
    %cst_55 = arith.constant dense<0.000000e+00> : vector<16x16xf32>
    %193 = tpu.matmul %191, %192, %cst_55 {dimension_numbers = #tpu.dot_dimension_numbers<[1], [0], [0], [1], [0, 0, 1, 1], [], []>} : vector<16x16xbf16>, vector<16x16xbf16>, vector<16x16xf32> -> vector<16x16xf32>
    %c0_56 = arith.constant 0 : index
    %c48 = arith.constant 48 : index
    %194 = vector.load %arg15[%c0_56, %c48] : memref<32x64xf32, #tpu.memory_space<vmem>>, vector<16x16xf32>
    tpu.vector_store %arg15[%c0_56, %c48], %193 {strides = array<i32>} : memref<32x64xf32, #tpu.memory_space<vmem>>, vector<16x16xf32>,
    %195 = vector.extract_strided_slice %72 {offsets = [16, 0], sizes = [16, 16], strides = [1, 1]} : vector<32x320xf32> to vector<16x16xf32>
    %196 = arith.mulf %195, %73 : vector<16x16xf32>
    %197 = vector.extract_strided_slice %72 {offsets = [16, 64], sizes = [16, 16], strides = [1, 1]} : vector<32x320xf32> to vector<16x16xf32>
    %198 = arith.mulf %197, %74 : vector<16x16xf32>
    %199 = arith.addf %196, %198 : vector<16x16xf32>
    %200 = vector.extract_strided_slice %72 {offsets = [16, 128], sizes = [16, 16], strides = [1, 1]} : vector<32x320xf32> to vector<16x16xf32>
    %201 = arith.mulf %200, %73 : vector<16x16xf32>
    %202 = vector.extract_strided_slice %72 {offsets = [16, 192], sizes = [16, 16], strides = [1, 1]} : vector<32x320xf32> to vector<16x16xf32>
    %203 = arith.mulf %202, %74 : vector<16x16xf32>
    %204 = arith.addf %201, %203 : vector<16x16xf32>
    %205 = vector.extract_strided_slice %72 {offsets = [16, 256], sizes = [16, 16], strides = [1, 1]} : vector<32x320xf32> to vector<16x16xf32>
    %206 = arith.truncf %199 : vector<16x16xf32> to vector<16x16xbf16>
    %207 = arith.truncf %204 : vector<16x16xf32> to vector<16x16xbf16>
    %cst_57 = arith.constant dense<0.000000e+00> : vector<16x16xf32>
    %208 = tpu.matmul %206, %207, %cst_57 {dimension_numbers = #tpu.dot_dimension_numbers<[1], [1], [0], [0], [0, 0, 1, 0], [], []>} : vector<16x16xbf16>, vector<16x16xbf16>, vector<16x16xf32> -> vector<16x16xf32>
    %cst_58 = arith.constant 2.500000e-01 : f32
    %209 = vector.broadcast %cst_58 : f32 to vector<16x16xf32>
    %210 = arith.mulf %208, %209 : vector<16x16xf32>
    %cst_59 = arith.constant dense<0xFF800000> : vector<16xf32>
    %211 = vector.multi_reduction <maximumf>, %210, %cst_59 [1] : vector<16x16xf32> to vector<16xf32>
    %212 = vector.shape_cast %211 : vector<16xf32> to vector<16x1xf32>
    %213 = vector.broadcast %212 : vector<16x1xf32> to vector<16x16xf32>
    %214 = arith.subf %210, %213 : vector<16x16xf32>
    %215 = math.exp %214 : vector<16x16xf32>
    %cst_60 = arith.constant dense<0.000000e+00> : vector<16xf32>
    %216 = vector.multi_reduction <add>, %215, %cst_60 [1] : vector<16x16xf32> to vector<16xf32>
    %217 = vector.shape_cast %216 : vector<16xf32> to vector<16x1xf32>
    %218 = tpu.reciprocal %217 {approx = true} : vector<16x1xf32> -> vector<16x1xf32>
    %219 = vector.broadcast %218 : vector<16x1xf32> to vector<16x16xf32>
    %220 = arith.mulf %215, %219 : vector<16x16xf32>
    %221 = arith.truncf %220 : vector<16x16xf32> to vector<16x16xbf16>
    %222 = arith.truncf %205 : vector<16x16xf32> to vector<16x16xbf16>
    %cst_61 = arith.constant dense<0.000000e+00> : vector<16x16xf32>
    %223 = tpu.matmul %221, %222, %cst_61 {dimension_numbers = #tpu.dot_dimension_numbers<[1], [0], [0], [1], [0, 0, 1, 1], [], []>} : vector<16x16xbf16>, vector<16x16xbf16>, vector<16x16xf32> -> vector<16x16xf32>
    %c16_62 = arith.constant 16 : index
    %c0_63 = arith.constant 0 : index
    %224 = vector.load %arg15[%c16_62, %c0_63] : memref<32x64xf32, #tpu.memory_space<vmem>>, vector<16x16xf32>
    tpu.vector_store %arg15[%c16_62, %c0_63], %223 {strides = array<i32>} : memref<32x64xf32, #tpu.memory_space<vmem>>, vector<16x16xf32>,
    %225 = vector.extract_strided_slice %72 {offsets = [16, 16], sizes = [16, 16], strides = [1, 1]} : vector<32x320xf32> to vector<16x16xf32>
    %226 = arith.mulf %225, %73 : vector<16x16xf32>
    %227 = vector.extract_strided_slice %72 {offsets = [16, 80], sizes = [16, 16], strides = [1, 1]} : vector<32x320xf32> to vector<16x16xf32>
    %228 = arith.mulf %227, %74 : vector<16x16xf32>
    %229 = arith.addf %226, %228 : vector<16x16xf32>
    %230 = vector.extract_strided_slice %72 {offsets = [16, 144], sizes = [16, 16], strides = [1, 1]} : vector<32x320xf32> to vector<16x16xf32>
    %231 = arith.mulf %230, %73 : vector<16x16xf32>
    %232 = vector.extract_strided_slice %72 {offsets = [16, 208], sizes = [16, 16], strides = [1, 1]} : vector<32x320xf32> to vector<16x16xf32>
    %233 = arith.mulf %232, %74 : vector<16x16xf32>
    %234 = arith.addf %231, %233 : vector<16x16xf32>
    %235 = vector.extract_strided_slice %72 {offsets = [16, 272], sizes = [16, 16], strides = [1, 1]} : vector<32x320xf32> to vector<16x16xf32>
    %236 = arith.truncf %229 : vector<16x16xf32> to vector<16x16xbf16>
    %237 = arith.truncf %234 : vector<16x16xf32> to vector<16x16xbf16>
    %cst_64 = arith.constant dense<0.000000e+00> : vector<16x16xf32>
    %238 = tpu.matmul %236, %237, %cst_64 {dimension_numbers = #tpu.dot_dimension_numbers<[1], [1], [0], [0], [0, 0, 1, 0], [], []>} : vector<16x16xbf16>, vector<16x16xbf16>, vector<16x16xf32> -> vector<16x16xf32>
    %cst_65 = arith.constant 2.500000e-01 : f32
    %239 = vector.broadcast %cst_65 : f32 to vector<16x16xf32>
    %240 = arith.mulf %238, %239 : vector<16x16xf32>
    %cst_66 = arith.constant dense<0xFF800000> : vector<16xf32>
    %241 = vector.multi_reduction <maximumf>, %240, %cst_66 [1] : vector<16x16xf32> to vector<16xf32>
    %242 = vector.shape_cast %241 : vector<16xf32> to vector<16x1xf32>
    %243 = vector.broadcast %242 : vector<16x1xf32> to vector<16x16xf32>
    %244 = arith.subf %240, %243 : vector<16x16xf32>
    %245 = math.exp %244 : vector<16x16xf32>
    %cst_67 = arith.constant dense<0.000000e+00> : vector<16xf32>
    %246 = vector.multi_reduction <add>, %245, %cst_67 [1] : vector<16x16xf32> to vector<16xf32>
    %247 = vector.shape_cast %246 : vector<16xf32> to vector<16x1xf32>
    %248 = tpu.reciprocal %247 {approx = true} : vector<16x1xf32> -> vector<16x1xf32>
    %249 = vector.broadcast %248 : vector<16x1xf32> to vector<16x16xf32>
    %250 = arith.mulf %245, %249 : vector<16x16xf32>
    %251 = arith.truncf %250 : vector<16x16xf32> to vector<16x16xbf16>
    %252 = arith.truncf %235 : vector<16x16xf32> to vector<16x16xbf16>
    %cst_68 = arith.constant dense<0.000000e+00> : vector<16x16xf32>
    %253 = tpu.matmul %251, %252, %cst_68 {dimension_numbers = #tpu.dot_dimension_numbers<[1], [0], [0], [1], [0, 0, 1, 1], [], []>} : vector<16x16xbf16>, vector<16x16xbf16>, vector<16x16xf32> -> vector<16x16xf32>
    %c16_69 = arith.constant 16 : index
    %c16_70 = arith.constant 16 : index
    %254 = vector.load %arg15[%c16_69, %c16_70] : memref<32x64xf32, #tpu.memory_space<vmem>>, vector<16x16xf32>
    tpu.vector_store %arg15[%c16_69, %c16_70], %253 {strides = array<i32>} : memref<32x64xf32, #tpu.memory_space<vmem>>, vector<16x16xf32>,
    %255 = vector.extract_strided_slice %72 {offsets = [16, 32], sizes = [16, 16], strides = [1, 1]} : vector<32x320xf32> to vector<16x16xf32>
    %256 = arith.mulf %255, %73 : vector<16x16xf32>
    %257 = vector.extract_strided_slice %72 {offsets = [16, 96], sizes = [16, 16], strides = [1, 1]} : vector<32x320xf32> to vector<16x16xf32>
    %258 = arith.mulf %257, %74 : vector<16x16xf32>
    %259 = arith.addf %256, %258 : vector<16x16xf32>
    %260 = vector.extract_strided_slice %72 {offsets = [16, 160], sizes = [16, 16], strides = [1, 1]} : vector<32x320xf32> to vector<16x16xf32>
    %261 = arith.mulf %260, %73 : vector<16x16xf32>
    %262 = vector.extract_strided_slice %72 {offsets = [16, 224], sizes = [16, 16], strides = [1, 1]} : vector<32x320xf32> to vector<16x16xf32>
    %263 = arith.mulf %262, %74 : vector<16x16xf32>
    %264 = arith.addf %261, %263 : vector<16x16xf32>
    %265 = vector.extract_strided_slice %72 {offsets = [16, 288], sizes = [16, 16], strides = [1, 1]} : vector<32x320xf32> to vector<16x16xf32>
    %266 = arith.truncf %259 : vector<16x16xf32> to vector<16x16xbf16>
    %267 = arith.truncf %264 : vector<16x16xf32> to vector<16x16xbf16>
    %cst_71 = arith.constant dense<0.000000e+00> : vector<16x16xf32>
    %268 = tpu.matmul %266, %267, %cst_71 {dimension_numbers = #tpu.dot_dimension_numbers<[1], [1], [0], [0], [0, 0, 1, 0], [], []>} : vector<16x16xbf16>, vector<16x16xbf16>, vector<16x16xf32> -> vector<16x16xf32>
    %cst_72 = arith.constant 2.500000e-01 : f32
    %269 = vector.broadcast %cst_72 : f32 to vector<16x16xf32>
    %270 = arith.mulf %268, %269 : vector<16x16xf32>
    %cst_73 = arith.constant dense<0xFF800000> : vector<16xf32>
    %271 = vector.multi_reduction <maximumf>, %270, %cst_73 [1] : vector<16x16xf32> to vector<16xf32>
    %272 = vector.shape_cast %271 : vector<16xf32> to vector<16x1xf32>
    %273 = vector.broadcast %272 : vector<16x1xf32> to vector<16x16xf32>
    %274 = arith.subf %270, %273 : vector<16x16xf32>
    %275 = math.exp %274 : vector<16x16xf32>
    %cst_74 = arith.constant dense<0.000000e+00> : vector<16xf32>
    %276 = vector.multi_reduction <add>, %275, %cst_74 [1] : vector<16x16xf32> to vector<16xf32>
    %277 = vector.shape_cast %276 : vector<16xf32> to vector<16x1xf32>
    %278 = tpu.reciprocal %277 {approx = true} : vector<16x1xf32> -> vector<16x1xf32>
    %279 = vector.broadcast %278 : vector<16x1xf32> to vector<16x16xf32>
    %280 = arith.mulf %275, %279 : vector<16x16xf32>
    %281 = arith.truncf %280 : vector<16x16xf32> to vector<16x16xbf16>
    %282 = arith.truncf %265 : vector<16x16xf32> to vector<16x16xbf16>
    %cst_75 = arith.constant dense<0.000000e+00> : vector<16x16xf32>
    %283 = tpu.matmul %281, %282, %cst_75 {dimension_numbers = #tpu.dot_dimension_numbers<[1], [0], [0], [1], [0, 0, 1, 1], [], []>} : vector<16x16xbf16>, vector<16x16xbf16>, vector<16x16xf32> -> vector<16x16xf32>
    %c16_76 = arith.constant 16 : index
    %c32_77 = arith.constant 32 : index
    %284 = vector.load %arg15[%c16_76, %c32_77] : memref<32x64xf32, #tpu.memory_space<vmem>>, vector<16x16xf32>
    tpu.vector_store %arg15[%c16_76, %c32_77], %283 {strides = array<i32>} : memref<32x64xf32, #tpu.memory_space<vmem>>, vector<16x16xf32>,
    %285 = vector.extract_strided_slice %72 {offsets = [16, 48], sizes = [16, 16], strides = [1, 1]} : vector<32x320xf32> to vector<16x16xf32>
    %286 = arith.mulf %285, %73 : vector<16x16xf32>
    %287 = vector.extract_strided_slice %72 {offsets = [16, 112], sizes = [16, 16], strides = [1, 1]} : vector<32x320xf32> to vector<16x16xf32>
    %288 = arith.mulf %287, %74 : vector<16x16xf32>
    %289 = arith.addf %286, %288 : vector<16x16xf32>
    %290 = vector.extract_strided_slice %72 {offsets = [16, 176], sizes = [16, 16], strides = [1, 1]} : vector<32x320xf32> to vector<16x16xf32>
    %291 = arith.mulf %290, %73 : vector<16x16xf32>
    %292 = vector.extract_strided_slice %72 {offsets = [16, 240], sizes = [16, 16], strides = [1, 1]} : vector<32x320xf32> to vector<16x16xf32>
    %293 = arith.mulf %292, %74 : vector<16x16xf32>
    %294 = arith.addf %291, %293 : vector<16x16xf32>
    %295 = vector.extract_strided_slice %72 {offsets = [16, 304], sizes = [16, 16], strides = [1, 1]} : vector<32x320xf32> to vector<16x16xf32>
    %296 = arith.truncf %289 : vector<16x16xf32> to vector<16x16xbf16>
    %297 = arith.truncf %294 : vector<16x16xf32> to vector<16x16xbf16>
    %cst_78 = arith.constant dense<0.000000e+00> : vector<16x16xf32>
    %298 = tpu.matmul %296, %297, %cst_78 {dimension_numbers = #tpu.dot_dimension_numbers<[1], [1], [0], [0], [0, 0, 1, 0], [], []>} : vector<16x16xbf16>, vector<16x16xbf16>, vector<16x16xf32> -> vector<16x16xf32>
    %cst_79 = arith.constant 2.500000e-01 : f32
    %299 = vector.broadcast %cst_79 : f32 to vector<16x16xf32>
    %300 = arith.mulf %298, %299 : vector<16x16xf32>
    %cst_80 = arith.constant dense<0xFF800000> : vector<16xf32>
    %301 = vector.multi_reduction <maximumf>, %300, %cst_80 [1] : vector<16x16xf32> to vector<16xf32>
    %302 = vector.shape_cast %301 : vector<16xf32> to vector<16x1xf32>
    %303 = vector.broadcast %302 : vector<16x1xf32> to vector<16x16xf32>
    %304 = arith.subf %300, %303 : vector<16x16xf32>
    %305 = math.exp %304 : vector<16x16xf32>
    %cst_81 = arith.constant dense<0.000000e+00> : vector<16xf32>
    %306 = vector.multi_reduction <add>, %305, %cst_81 [1] : vector<16x16xf32> to vector<16xf32>
    %307 = vector.shape_cast %306 : vector<16xf32> to vector<16x1xf32>
    %308 = tpu.reciprocal %307 {approx = true} : vector<16x1xf32> -> vector<16x1xf32>
    %309 = vector.broadcast %308 : vector<16x1xf32> to vector<16x16xf32>
    %310 = arith.mulf %305, %309 : vector<16x16xf32>
    %311 = arith.truncf %310 : vector<16x16xf32> to vector<16x16xbf16>
    %312 = arith.truncf %295 : vector<16x16xf32> to vector<16x16xbf16>
    %cst_82 = arith.constant dense<0.000000e+00> : vector<16x16xf32>
    %313 = tpu.matmul %311, %312, %cst_82 {dimension_numbers = #tpu.dot_dimension_numbers<[1], [0], [0], [1], [0, 0, 1, 1], [], []>} : vector<16x16xbf16>, vector<16x16xbf16>, vector<16x16xf32> -> vector<16x16xf32>
    %c16_83 = arith.constant 16 : index
    %c48_84 = arith.constant 48 : index
    %314 = vector.load %arg15[%c16_83, %c48_84] : memref<32x64xf32, #tpu.memory_space<vmem>>, vector<16x16xf32>
    tpu.vector_store %arg15[%c16_83, %c48_84], %313 {strides = array<i32>} : memref<32x64xf32, #tpu.memory_space<vmem>>, vector<16x16xf32>,
    %c0_85 = arith.constant 0 : index
    %c0_86 = arith.constant 0 : index
    %315 = vector.load %arg15[%c0_85, %c0_86] : memref<32x64xf32, #tpu.memory_space<vmem>>, vector<32x64xf32>
    %316 = arith.truncf %315 : vector<32x64xf32> to vector<32x64xbf16>
    %c0_87 = arith.constant 0 : index
    %c0_88 = arith.constant 0 : index
    %317 = vector.load %arg7[%c0_87, %c0_88] : memref<64x32xbf16, #tpu.memory_space<vmem>>, vector<64x32xbf16>
    %cst_89 = arith.constant dense<0.000000e+00> : vector<32x32xf32>
    %318 = tpu.matmul %316, %317, %cst_89 {dimension_numbers = #tpu.dot_dimension_numbers<[1], [0], [0], [1], [0, 0, 1, 1], [], []>} : vector<32x64xbf16>, vector<64x32xbf16>, vector<32x32xf32> -> vector<32x32xf32>
    %319 = arith.addf %45, %318 : vector<32x32xf32>
    %c6 = arith.constant 6 : index
    %c0_90 = arith.constant 0 : index
    %320 = vector.load %arg13[%c6, %c0_90] : memref<19x128xf32, #tpu.memory_space<vmem>>, vector<1x32xf32>
    %321 = vector.broadcast %320 : vector<1x32xf32> to vector<32x32xf32>
    %322 = arith.addf %319, %321 : vector<32x32xf32>
    %c7 = arith.constant 7 : index
    %c0_91 = arith.constant 0 : index
    %323 = vector.load %arg13[%c7, %c0_91] : memref<19x128xf32, #tpu.memory_space<vmem>>, vector<1x32xf32>
    %c8 = arith.constant 8 : index
    %c0_92 = arith.constant 0 : index
    %324 = vector.load %arg13[%c8, %c0_92] : memref<19x128xf32, #tpu.memory_space<vmem>>, vector<1x32xf32>
    %cst_93 = arith.constant dense<0.000000e+00> : vector<32xf32>
    %325 = vector.multi_reduction <add>, %322, %cst_93 [1] : vector<32x32xf32> to vector<32xf32>
    %326 = vector.shape_cast %325 : vector<32xf32> to vector<32x1xf32>
    %cst_94 = arith.constant 3.200000e+01 : f32
    %327 = vector.broadcast %cst_94 : f32 to vector<32x1xf32>
    %328 = arith.divf %326, %327 : vector<32x1xf32>
    %329 = vector.broadcast %328 : vector<32x1xf32> to vector<32x32xf32>
    %330 = arith.subf %322, %329 : vector<32x32xf32>
    %331 = arith.mulf %330, %330 : vector<32x32xf32>
    %cst_95 = arith.constant dense<0.000000e+00> : vector<32xf32>
    %332 = vector.multi_reduction <add>, %331, %cst_95 [1] : vector<32x32xf32> to vector<32xf32>
    %333 = vector.shape_cast %332 : vector<32xf32> to vector<32x1xf32>
    %cst_96 = arith.constant 3.200000e+01 : f32
    %334 = vector.broadcast %cst_96 : f32 to vector<32x1xf32>
    %335 = arith.divf %333, %334 : vector<32x1xf32>
    %336 = vector.broadcast %328 : vector<32x1xf32> to vector<32x32xf32>
    %337 = arith.subf %322, %336 : vector<32x32xf32>
    %cst_97 = arith.constant 9.99999974E-6 : f32
    %338 = vector.broadcast %cst_97 : f32 to vector<32x1xf32>
    %339 = arith.addf %335, %338 : vector<32x1xf32>
    %340 = math.rsqrt %339 : vector<32x1xf32>
    %341 = vector.broadcast %340 : vector<32x1xf32> to vector<32x32xf32>
    %342 = arith.mulf %337, %341 : vector<32x32xf32>
    %343 = vector.broadcast %323 : vector<1x32xf32> to vector<32x32xf32>
    %344 = arith.mulf %342, %343 : vector<32x32xf32>
    %345 = vector.broadcast %324 : vector<1x32xf32> to vector<32x32xf32>
    %346 = arith.addf %344, %345 : vector<32x32xf32>
    %347 = arith.truncf %346 : vector<32x32xf32> to vector<32x32xbf16>
    %c0_98 = arith.constant 0 : index
    %c0_99 = arith.constant 0 : index
    %348 = vector.load %arg8[%c0_98, %c0_99] : memref<32x128xbf16, #tpu.memory_space<vmem>>, vector<32x128xbf16>
    %cst_100 = arith.constant dense<0.000000e+00> : vector<32x128xf32>
    %349 = tpu.matmul %347, %348, %cst_100 {dimension_numbers = #tpu.dot_dimension_numbers<[1], [0], [0], [1], [0, 0, 1, 1], [], []>} : vector<32x32xbf16>, vector<32x128xbf16>, vector<32x128xf32> -> vector<32x128xf32>
    %c9 = arith.constant 9 : index
    %c0_101 = arith.constant 0 : index
    %350 = vector.load %arg13[%c9, %c0_101] : memref<19x128xf32, #tpu.memory_space<vmem>>, vector<1x128xf32>
    %351 = vector.broadcast %350 : vector<1x128xf32> to vector<32x128xf32>
    %352 = arith.addf %349, %351 : vector<32x128xf32>
    %353 = vector.extract_strided_slice %352 {offsets = [0, 0], sizes = [32, 64], strides = [1, 1]} : vector<32x128xf32> to vector<32x64xf32>
    %354 = vector.extract_strided_slice %352 {offsets = [0, 64], sizes = [32, 64], strides = [1, 1]} : vector<32x128xf32> to vector<32x64xf32>
    %355 = arith.negf %354 : vector<32x64xf32>
    %356 = math.exp %355 : vector<32x64xf32>
    %cst_102 = arith.constant 1.000000e+00 : f32
    %357 = vector.broadcast %cst_102 : f32 to vector<32x64xf32>
    %358 = arith.addf %357, %356 : vector<32x64xf32>
    %359 = arith.divf %357, %358 : vector<32x64xf32>
    %360 = arith.mulf %353, %359 : vector<32x64xf32>
    %cst_103 = arith.constant 0.000000e+00 : f32
    %361 = vector.broadcast %cst_103 : f32 to vector<2x64xf32>
    %cst_104 = arith.constant 0.000000e+00 : f32
    %362 = vector.broadcast %cst_104 : f32 to vector<2x64xf32>
    %363 = tpu.concatenate %361, %360, %362 in 0 : vector<2x64xf32>, vector<32x64xf32>, vector<2x64xf32> -> vector<36x64xf32>
    %c0_105 = arith.constant 0 : index
    %c0_106 = arith.constant 0 : index
    %364 = vector.load %arg9[%c0_105, %c0_106] : memref<5x64xf32, #tpu.memory_space<vmem>>, vector<5x64xf32>
    %365 = tpu.iota {dimensions = array<i32: 0>} : vector<32x1xi32>
    %c16_i32 = arith.constant 16 : i32
    %c0_i32 = arith.constant 0 : i32
    %366 = arith.cmpi eq, %c16_i32, %c0_i32 : i32
    %c1_i32 = arith.constant 1 : i32
    %367 = arith.select %366, %c1_i32, %c16_i32 : i32
    %368 = vector.broadcast %367 : i32 to vector<32x1xi32>
    %369 = arith.remsi %365, %368 : vector<32x1xi32>
    %c0_i32_107 = arith.constant 0 : i32
    %370 = vector.broadcast %c0_i32_107 : i32 to vector<32x1xi32>
    %371 = arith.cmpi ne, %369, %370 : vector<32x1xi32>
    %c0_i32_108 = arith.constant 0 : i32
    %372 = vector.broadcast %c0_i32_108 : i32 to vector<32x1xi32>
    %373 = arith.cmpi slt, %369, %372 : vector<32x1xi32>
    %c0_i32_109 = arith.constant 0 : i32
    %374 = arith.cmpi slt, %367, %c0_i32_109 : i32
    %375 = vector.broadcast %374 : i1 to vector<32x1xi1>
    %376 = vector.broadcast %375 : vector<32x1xi1> to vector<32x1xi1>
    %377 = arith.xori %373, %376 : vector<32x1xi1>
    %378 = arith.andi %377, %371 : vector<32x1xi1>
    %379 = vector.broadcast %367 : i32 to vector<32x1xi32>
    %380 = arith.addi %369, %379 : vector<32x1xi32>
    %381 = arith.select %378, %380, %369 : vector<32x1xi1>, vector<32x1xi32>
    %cst_110 = arith.constant 0.000000e+00 : f32
    %382 = vector.broadcast %cst_110 : f32 to vector<32x64xf32>
    %383 = vector.extract_strided_slice %363 {offsets = [0, 0], sizes = [32, 64], strides = [1, 1]} : vector<36x64xf32> to vector<32x64xf32>
    %c-2_i32 = arith.constant -2 : i32
    %384 = vector.broadcast %c-2_i32 : i32 to vector<32x1xi32>
    %385 = arith.addi %381, %384 : vector<32x1xi32>
    %c0_i32_111 = arith.constant 0 : i32
    %386 = vector.broadcast %c0_i32_111 : i32 to vector<32x1xi32>
    %387 = arith.cmpi sge, %385, %386 : vector<32x1xi32>
    %c-2_i32_112 = arith.constant -2 : i32
    %388 = vector.broadcast %c-2_i32_112 : i32 to vector<32x1xi32>
    %389 = arith.addi %381, %388 : vector<32x1xi32>
    %c16_i32_113 = arith.constant 16 : i32
    %390 = vector.broadcast %c16_i32_113 : i32 to vector<32x1xi32>
    %391 = arith.cmpi slt, %389, %390 : vector<32x1xi32>
    %392 = arith.andi %387, %391 : vector<32x1xi1>
    %cst_114 = arith.constant 0.000000e+00 : f32
    %393 = vector.shape_cast %392 : vector<32x1xi1> to vector<32x1xi1>
    %394 = vector.broadcast %393 : vector<32x1xi1> to vector<32x64xi1>
    %395 = vector.broadcast %cst_114 : f32 to vector<32x64xf32>
    %396 = arith.select %394, %383, %395 : vector<32x64xi1>, vector<32x64xf32>
    %397 = vector.extract_strided_slice %364 {offsets = [0, 0], sizes = [1, 64], strides = [1, 1]} : vector<5x64xf32> to vector<1x64xf32>
    %398 = vector.shape_cast %397 : vector<1x64xf32> to vector<64xf32>
    %399 = vector.shape_cast %398 : vector<64xf32> to vector<1x64xf32>
    %400 = vector.broadcast %399 : vector<1x64xf32> to vector<32x64xf32>
    %401 = arith.mulf %396, %400 : vector<32x64xf32>
    %402 = arith.addf %382, %401 : vector<32x64xf32>
    %403 = vector.extract_strided_slice %363 {offsets = [1, 0], sizes = [32, 64], strides = [1, 1]} : vector<36x64xf32> to vector<32x64xf32>
    %c-1_i32 = arith.constant -1 : i32
    %404 = vector.broadcast %c-1_i32 : i32 to vector<32x1xi32>
    %405 = arith.addi %381, %404 : vector<32x1xi32>
    %c0_i32_115 = arith.constant 0 : i32
    %406 = vector.broadcast %c0_i32_115 : i32 to vector<32x1xi32>
    %407 = arith.cmpi sge, %405, %406 : vector<32x1xi32>
    %c-1_i32_116 = arith.constant -1 : i32
    %408 = vector.broadcast %c-1_i32_116 : i32 to vector<32x1xi32>
    %409 = arith.addi %381, %408 : vector<32x1xi32>
    %c16_i32_117 = arith.constant 16 : i32
    %410 = vector.broadcast %c16_i32_117 : i32 to vector<32x1xi32>
    %411 = arith.cmpi slt, %409, %410 : vector<32x1xi32>
    %412 = arith.andi %407, %411 : vector<32x1xi1>
    %cst_118 = arith.constant 0.000000e+00 : f32
    %413 = vector.shape_cast %412 : vector<32x1xi1> to vector<32x1xi1>
    %414 = vector.broadcast %413 : vector<32x1xi1> to vector<32x64xi1>
    %415 = vector.broadcast %cst_118 : f32 to vector<32x64xf32>
    %416 = arith.select %414, %403, %415 : vector<32x64xi1>, vector<32x64xf32>
    %417 = vector.extract_strided_slice %364 {offsets = [1, 0], sizes = [1, 64], strides = [1, 1]} : vector<5x64xf32> to vector<1x64xf32>
    %418 = vector.shape_cast %417 : vector<1x64xf32> to vector<64xf32>
    %419 = vector.shape_cast %418 : vector<64xf32> to vector<1x64xf32>
    %420 = vector.broadcast %419 : vector<1x64xf32> to vector<32x64xf32>
    %421 = arith.mulf %416, %420 : vector<32x64xf32>
    %422 = arith.addf %402, %421 : vector<32x64xf32>
    %423 = vector.extract_strided_slice %363 {offsets = [2, 0], sizes = [32, 64], strides = [1, 1]} : vector<36x64xf32> to vector<32x64xf32>
    %c0_i32_119 = arith.constant 0 : i32
    %424 = vector.broadcast %c0_i32_119 : i32 to vector<32x1xi32>
    %425 = arith.addi %381, %424 : vector<32x1xi32>
    %c0_i32_120 = arith.constant 0 : i32
    %426 = vector.broadcast %c0_i32_120 : i32 to vector<32x1xi32>
    %427 = arith.cmpi sge, %425, %426 : vector<32x1xi32>
    %c0_i32_121 = arith.constant 0 : i32
    %428 = vector.broadcast %c0_i32_121 : i32 to vector<32x1xi32>
    %429 = arith.addi %381, %428 : vector<32x1xi32>
    %c16_i32_122 = arith.constant 16 : i32
    %430 = vector.broadcast %c16_i32_122 : i32 to vector<32x1xi32>
    %431 = arith.cmpi slt, %429, %430 : vector<32x1xi32>
    %432 = arith.andi %427, %431 : vector<32x1xi1>
    %cst_123 = arith.constant 0.000000e+00 : f32
    %433 = vector.shape_cast %432 : vector<32x1xi1> to vector<32x1xi1>
    %434 = vector.broadcast %433 : vector<32x1xi1> to vector<32x64xi1>
    %435 = vector.broadcast %cst_123 : f32 to vector<32x64xf32>
    %436 = arith.select %434, %423, %435 : vector<32x64xi1>, vector<32x64xf32>
    %437 = vector.extract_strided_slice %364 {offsets = [2, 0], sizes = [1, 64], strides = [1, 1]} : vector<5x64xf32> to vector<1x64xf32>
    %438 = vector.shape_cast %437 : vector<1x64xf32> to vector<64xf32>
    %439 = vector.shape_cast %438 : vector<64xf32> to vector<1x64xf32>
    %440 = vector.broadcast %439 : vector<1x64xf32> to vector<32x64xf32>
    %441 = arith.mulf %436, %440 : vector<32x64xf32>
    %442 = arith.addf %422, %441 : vector<32x64xf32>
    %443 = vector.extract_strided_slice %363 {offsets = [3, 0], sizes = [32, 64], strides = [1, 1]} : vector<36x64xf32> to vector<32x64xf32>
    %c1_i32_124 = arith.constant 1 : i32
    %444 = vector.broadcast %c1_i32_124 : i32 to vector<32x1xi32>
    %445 = arith.addi %381, %444 : vector<32x1xi32>
    %c0_i32_125 = arith.constant 0 : i32
    %446 = vector.broadcast %c0_i32_125 : i32 to vector<32x1xi32>
    %447 = arith.cmpi sge, %445, %446 : vector<32x1xi32>
    %c1_i32_126 = arith.constant 1 : i32
    %448 = vector.broadcast %c1_i32_126 : i32 to vector<32x1xi32>
    %449 = arith.addi %381, %448 : vector<32x1xi32>
    %c16_i32_127 = arith.constant 16 : i32
    %450 = vector.broadcast %c16_i32_127 : i32 to vector<32x1xi32>
    %451 = arith.cmpi slt, %449, %450 : vector<32x1xi32>
    %452 = arith.andi %447, %451 : vector<32x1xi1>
    %cst_128 = arith.constant 0.000000e+00 : f32
    %453 = vector.shape_cast %452 : vector<32x1xi1> to vector<32x1xi1>
    %454 = vector.broadcast %453 : vector<32x1xi1> to vector<32x64xi1>
    %455 = vector.broadcast %cst_128 : f32 to vector<32x64xf32>
    %456 = arith.select %454, %443, %455 : vector<32x64xi1>, vector<32x64xf32>
    %457 = vector.extract_strided_slice %364 {offsets = [3, 0], sizes = [1, 64], strides = [1, 1]} : vector<5x64xf32> to vector<1x64xf32>
    %458 = vector.shape_cast %457 : vector<1x64xf32> to vector<64xf32>
    %459 = vector.shape_cast %458 : vector<64xf32> to vector<1x64xf32>
    %460 = vector.broadcast %459 : vector<1x64xf32> to vector<32x64xf32>
    %461 = arith.mulf %456, %460 : vector<32x64xf32>
    %462 = arith.addf %442, %461 : vector<32x64xf32>
    %463 = vector.extract_strided_slice %363 {offsets = [4, 0], sizes = [32, 64], strides = [1, 1]} : vector<36x64xf32> to vector<32x64xf32>
    %c2_i32 = arith.constant 2 : i32
    %464 = vector.broadcast %c2_i32 : i32 to vector<32x1xi32>
    %465 = arith.addi %381, %464 : vector<32x1xi32>
    %c0_i32_129 = arith.constant 0 : i32
    %466 = vector.broadcast %c0_i32_129 : i32 to vector<32x1xi32>
    %467 = arith.cmpi sge, %465, %466 : vector<32x1xi32>
    %c2_i32_130 = arith.constant 2 : i32
    %468 = vector.broadcast %c2_i32_130 : i32 to vector<32x1xi32>
    %469 = arith.addi %381, %468 : vector<32x1xi32>
    %c16_i32_131 = arith.constant 16 : i32
    %470 = vector.broadcast %c16_i32_131 : i32 to vector<32x1xi32>
    %471 = arith.cmpi slt, %469, %470 : vector<32x1xi32>
    %472 = arith.andi %467, %471 : vector<32x1xi1>
    %cst_132 = arith.constant 0.000000e+00 : f32
    %473 = vector.shape_cast %472 : vector<32x1xi1> to vector<32x1xi1>
    %474 = vector.broadcast %473 : vector<32x1xi1> to vector<32x64xi1>
    %475 = vector.broadcast %cst_132 : f32 to vector<32x64xf32>
    %476 = arith.select %474, %463, %475 : vector<32x64xi1>, vector<32x64xf32>
    %477 = vector.extract_strided_slice %364 {offsets = [4, 0], sizes = [1, 64], strides = [1, 1]} : vector<5x64xf32> to vector<1x64xf32>
    %478 = vector.shape_cast %477 : vector<1x64xf32> to vector<64xf32>
    %479 = vector.shape_cast %478 : vector<64xf32> to vector<1x64xf32>
    %480 = vector.broadcast %479 : vector<1x64xf32> to vector<32x64xf32>
    %481 = arith.mulf %476, %480 : vector<32x64xf32>
    %482 = arith.addf %462, %481 : vector<32x64xf32>
    %c10 = arith.constant 10 : index
    %c0_133 = arith.constant 0 : index
    %483 = vector.load %arg13[%c10, %c0_133] : memref<19x128xf32, #tpu.memory_space<vmem>>, vector<1x64xf32>
    %484 = vector.broadcast %483 : vector<1x64xf32> to vector<32x64xf32>
    %485 = arith.addf %482, %484 : vector<32x64xf32>
    %486 = arith.negf %485 : vector<32x64xf32>
    %487 = math.exp %486 : vector<32x64xf32>
    %cst_134 = arith.constant 1.000000e+00 : f32
    %488 = vector.broadcast %cst_134 : f32 to vector<32x64xf32>
    %489 = arith.addf %488, %487 : vector<32x64xf32>
    %490 = arith.divf %488, %489 : vector<32x64xf32>
    %491 = arith.mulf %485, %490 : vector<32x64xf32>
    %cst_135 = arith.constant dense<0.000000e+00> : vector<32xf32>
    %492 = vector.multi_reduction <add>, %491, %cst_135 [1] : vector<32x64xf32> to vector<32xf32>
    %493 = vector.shape_cast %492 : vector<32xf32> to vector<32x1xf32>
    %cst_136 = arith.constant 6.400000e+01 : f32
    %494 = vector.broadcast %cst_136 : f32 to vector<32x1xf32>
    %495 = arith.divf %493, %494 : vector<32x1xf32>
    %496 = vector.broadcast %495 : vector<32x1xf32> to vector<32x64xf32>
    %497 = arith.subf %491, %496 : vector<32x64xf32>
    %498 = arith.mulf %497, %497 : vector<32x64xf32>
    %cst_137 = arith.constant dense<0.000000e+00> : vector<32xf32>
    %499 = vector.multi_reduction <add>, %498, %cst_137 [1] : vector<32x64xf32> to vector<32xf32>
    %500 = vector.shape_cast %499 : vector<32xf32> to vector<32x1xf32>
    %cst_138 = arith.constant 6.400000e+01 : f32
    %501 = vector.broadcast %cst_138 : f32 to vector<32x1xf32>
    %502 = arith.divf %500, %501 : vector<32x1xf32>
    %503 = vector.broadcast %495 : vector<32x1xf32> to vector<32x64xf32>
    %504 = arith.subf %491, %503 : vector<32x64xf32>
    %cst_139 = arith.constant 9.99999997E-7 : f32
    %505 = vector.broadcast %cst_139 : f32 to vector<32x1xf32>
    %506 = arith.maximumf %502, %505 : vector<32x1xf32>
    %507 = math.rsqrt %506 : vector<32x1xf32>
    %508 = vector.broadcast %507 : vector<32x1xf32> to vector<32x64xf32>
    %509 = arith.mulf %504, %508 : vector<32x64xf32>
    %c11 = arith.constant 11 : index
    %c0_140 = arith.constant 0 : index
    %510 = vector.load %arg13[%c11, %c0_140] : memref<19x128xf32, #tpu.memory_space<vmem>>, vector<1x64xf32>
    %511 = vector.broadcast %510 : vector<1x64xf32> to vector<32x64xf32>
    %512 = arith.mulf %509, %511 : vector<32x64xf32>
    %513 = arith.truncf %512 : vector<32x64xf32> to vector<32x64xbf16>
    %c0_141 = arith.constant 0 : index
    %c0_142 = arith.constant 0 : index
    %514 = vector.load %arg10[%c0_141, %c0_142] : memref<64x32xbf16, #tpu.memory_space<vmem>>, vector<64x32xbf16>
    %cst_143 = arith.constant dense<0.000000e+00> : vector<32x32xf32>
    %515 = tpu.matmul %513, %514, %cst_143 {dimension_numbers = #tpu.dot_dimension_numbers<[1], [0], [0], [1], [0, 0, 1, 1], [], []>} : vector<32x64xbf16>, vector<64x32xbf16>, vector<32x32xf32> -> vector<32x32xf32>
    %516 = arith.addf %322, %515 : vector<32x32xf32>
    %c12 = arith.constant 12 : index
    %c0_144 = arith.constant 0 : index
    %517 = vector.load %arg13[%c12, %c0_144] : memref<19x128xf32, #tpu.memory_space<vmem>>, vector<1x32xf32>
    %518 = vector.broadcast %517 : vector<1x32xf32> to vector<32x32xf32>
    %519 = arith.addf %516, %518 : vector<32x32xf32>
    %c13 = arith.constant 13 : index
    %c0_145 = arith.constant 0 : index
    %520 = vector.load %arg13[%c13, %c0_145] : memref<19x128xf32, #tpu.memory_space<vmem>>, vector<1x32xf32>
    %c14 = arith.constant 14 : index
    %c0_146 = arith.constant 0 : index
    %521 = vector.load %arg13[%c14, %c0_146] : memref<19x128xf32, #tpu.memory_space<vmem>>, vector<1x32xf32>
    %c15 = arith.constant 15 : index
    %c0_147 = arith.constant 0 : index
    %522 = vector.load %arg13[%c15, %c0_147] : memref<19x128xf32, #tpu.memory_space<vmem>>, vector<1x128xf32>
    %c16_148 = arith.constant 16 : index
    %c0_149 = arith.constant 0 : index
    %523 = vector.load %arg13[%c16_148, %c0_149] : memref<19x128xf32, #tpu.memory_space<vmem>>, vector<1x32xf32>
    %cst_150 = arith.constant dense<0.000000e+00> : vector<32xf32>
    %524 = vector.multi_reduction <add>, %519, %cst_150 [1] : vector<32x32xf32> to vector<32xf32>
    %525 = vector.shape_cast %524 : vector<32xf32> to vector<32x1xf32>
    %cst_151 = arith.constant 3.200000e+01 : f32
    %526 = vector.broadcast %cst_151 : f32 to vector<32x1xf32>
    %527 = arith.divf %525, %526 : vector<32x1xf32>
    %528 = vector.broadcast %527 : vector<32x1xf32> to vector<32x32xf32>
    %529 = arith.subf %519, %528 : vector<32x32xf32>
    %530 = arith.mulf %529, %529 : vector<32x32xf32>
    %cst_152 = arith.constant dense<0.000000e+00> : vector<32xf32>
    %531 = vector.multi_reduction <add>, %530, %cst_152 [1] : vector<32x32xf32> to vector<32xf32>
    %532 = vector.shape_cast %531 : vector<32xf32> to vector<32x1xf32>
    %cst_153 = arith.constant 3.200000e+01 : f32
    %533 = vector.broadcast %cst_153 : f32 to vector<32x1xf32>
    %534 = arith.divf %532, %533 : vector<32x1xf32>
    %535 = vector.broadcast %527 : vector<32x1xf32> to vector<32x32xf32>
    %536 = arith.subf %519, %535 : vector<32x32xf32>
    %cst_154 = arith.constant 9.99999974E-6 : f32
    %537 = vector.broadcast %cst_154 : f32 to vector<32x1xf32>
    %538 = arith.addf %534, %537 : vector<32x1xf32>
    %539 = math.rsqrt %538 : vector<32x1xf32>
    %540 = vector.broadcast %539 : vector<32x1xf32> to vector<32x32xf32>
    %541 = arith.mulf %536, %540 : vector<32x32xf32>
    %542 = vector.broadcast %520 : vector<1x32xf32> to vector<32x32xf32>
    %543 = arith.mulf %541, %542 : vector<32x32xf32>
    %544 = vector.broadcast %521 : vector<1x32xf32> to vector<32x32xf32>
    %545 = arith.addf %543, %544 : vector<32x32xf32>
    %546 = arith.truncf %545 : vector<32x32xf32> to vector<32x32xbf16>
    %c0_155 = arith.constant 0 : index
    %c0_156 = arith.constant 0 : index
    %547 = vector.load %arg11[%c0_155, %c0_156] : memref<32x128xbf16, #tpu.memory_space<vmem>>, vector<32x128xbf16>
    %cst_157 = arith.constant dense<0.000000e+00> : vector<32x128xf32>
    %548 = tpu.matmul %546, %547, %cst_157 {dimension_numbers = #tpu.dot_dimension_numbers<[1], [0], [0], [1], [0, 0, 1, 1], [], []>} : vector<32x32xbf16>, vector<32x128xbf16>, vector<32x128xf32> -> vector<32x128xf32>
    %549 = vector.broadcast %522 : vector<1x128xf32> to vector<32x128xf32>
    %550 = arith.addf %548, %549 : vector<32x128xf32>
    %551 = arith.negf %550 : vector<32x128xf32>
    %552 = math.exp %551 : vector<32x128xf32>
    %cst_158 = arith.constant 1.000000e+00 : f32
    %553 = vector.broadcast %cst_158 : f32 to vector<32x128xf32>
    %554 = arith.addf %553, %552 : vector<32x128xf32>
    %555 = arith.divf %553, %554 : vector<32x128xf32>
    %556 = arith.mulf %550, %555 : vector<32x128xf32>
    %557 = arith.truncf %556 : vector<32x128xf32> to vector<32x128xbf16>
    %c0_159 = arith.constant 0 : index
    %c0_160 = arith.constant 0 : index
    %558 = vector.load %arg12[%c0_159, %c0_160] : memref<128x32xbf16, #tpu.memory_space<vmem>>, vector<128x32xbf16>
    %cst_161 = arith.constant dense<0.000000e+00> : vector<32x32xf32>
    %559 = tpu.matmul %557, %558, %cst_161 {dimension_numbers = #tpu.dot_dimension_numbers<[1], [0], [0], [1], [0, 0, 1, 1], [], []>} : vector<32x128xbf16>, vector<128x32xbf16>, vector<32x32xf32> -> vector<32x32xf32>
    %560 = vector.broadcast %523 : vector<1x32xf32> to vector<32x32xf32>
    %561 = arith.addf %559, %560 : vector<32x32xf32>
    %cst_162 = arith.constant 5.000000e-01 : f32
    %562 = vector.broadcast %cst_162 : f32 to vector<32x32xf32>
    %563 = arith.mulf %562, %561 : vector<32x32xf32>
    %564 = arith.addf %519, %563 : vector<32x32xf32>
    %c17 = arith.constant 17 : index
    %c0_163 = arith.constant 0 : index
    %565 = vector.load %arg13[%c17, %c0_163] : memref<19x128xf32, #tpu.memory_space<vmem>>, vector<1x32xf32>
    %c18 = arith.constant 18 : index
    %c0_164 = arith.constant 0 : index
    %566 = vector.load %arg13[%c18, %c0_164] : memref<19x128xf32, #tpu.memory_space<vmem>>, vector<1x32xf32>
    %cst_165 = arith.constant dense<0.000000e+00> : vector<32xf32>
    %567 = vector.multi_reduction <add>, %564, %cst_165 [1] : vector<32x32xf32> to vector<32xf32>
    %568 = vector.shape_cast %567 : vector<32xf32> to vector<32x1xf32>
    %cst_166 = arith.constant 3.200000e+01 : f32
    %569 = vector.broadcast %cst_166 : f32 to vector<32x1xf32>
    %570 = arith.divf %568, %569 : vector<32x1xf32>
    %571 = vector.broadcast %570 : vector<32x1xf32> to vector<32x32xf32>
    %572 = arith.subf %564, %571 : vector<32x32xf32>
    %573 = arith.mulf %572, %572 : vector<32x32xf32>
    %cst_167 = arith.constant dense<0.000000e+00> : vector<32xf32>
    %574 = vector.multi_reduction <add>, %573, %cst_167 [1] : vector<32x32xf32> to vector<32xf32>
    %575 = vector.shape_cast %574 : vector<32xf32> to vector<32x1xf32>
    %cst_168 = arith.constant 3.200000e+01 : f32
    %576 = vector.broadcast %cst_168 : f32 to vector<32x1xf32>
    %577 = arith.divf %575, %576 : vector<32x1xf32>
    %578 = vector.broadcast %570 : vector<32x1xf32> to vector<32x32xf32>
    %579 = arith.subf %564, %578 : vector<32x32xf32>
    %cst_169 = arith.constant 9.99999974E-6 : f32
    %580 = vector.broadcast %cst_169 : f32 to vector<32x1xf32>
    %581 = arith.addf %577, %580 : vector<32x1xf32>
    %582 = math.rsqrt %581 : vector<32x1xf32>
    %583 = vector.broadcast %582 : vector<32x1xf32> to vector<32x32xf32>
    %584 = arith.mulf %579, %583 : vector<32x32xf32>
    %585 = vector.broadcast %565 : vector<1x32xf32> to vector<32x32xf32>
    %586 = arith.mulf %584, %585 : vector<32x32xf32>
    %587 = vector.broadcast %566 : vector<1x32xf32> to vector<32x32xf32>
    %588 = arith.addf %586, %587 : vector<32x32xf32>
    %c0_170 = arith.constant 0 : index
    %c0_171 = arith.constant 0 : index
    %589 = vector.load %arg14[%c0_170, %c0_171] : memref<32x32xf32, #tpu.memory_space<vmem>>, vector<32x32xf32>
    tpu.vector_store %arg14[%c0_170, %c0_171], %588 {strides = array<i32>} : memref<32x32xf32, #tpu.memory_space<vmem>>, vector<32x32xf32>,
    return
  }
  func.func @transform_0(%arg0: i32) -> (i32, i32) {
    %c0_i32 = arith.constant 0 : i32
    %c0_i32_0 = arith.constant 0 : i32
    return %arg0, %c0_i32 : i32, i32
  }
  func.func @transform_1(%arg0: i32) -> (i32, i32) {
    %c0_i32 = arith.constant 0 : i32
    %c0_i32_0 = arith.constant 0 : i32
    %c0_i32_1 = arith.constant 0 : i32
    return %c0_i32, %c0_i32_0 : i32, i32
  }
  func.func @transform_2(%arg0: i32) -> (i32, i32) {
    %c0_i32 = arith.constant 0 : i32
    %c0_i32_0 = arith.constant 0 : i32
    %c0_i32_1 = arith.constant 0 : i32
    return %c0_i32, %c0_i32_0 : i32, i32
  }
  func.func @transform_3(%arg0: i32) -> (i32, i32) {
    %c0_i32 = arith.constant 0 : i32
    %c0_i32_0 = arith.constant 0 : i32
    %c0_i32_1 = arith.constant 0 : i32
    return %c0_i32, %c0_i32_0 : i32, i32
  }
  func.func @transform_4(%arg0: i32) -> (i32, i32) {
    %c0_i32 = arith.constant 0 : i32
    %c0_i32_0 = arith.constant 0 : i32
    %c0_i32_1 = arith.constant 0 : i32
    return %c0_i32, %c0_i32_0 : i32, i32
  }
  func.func @transform_5(%arg0: i32) -> (i32, i32) {
    %c0_i32 = arith.constant 0 : i32
    %c0_i32_0 = arith.constant 0 : i32
    %c0_i32_1 = arith.constant 0 : i32
    return %c0_i32, %c0_i32_0 : i32, i32
  }
  func.func @transform_6(%arg0: i32) -> (i32, i32) {
    %c0_i32 = arith.constant 0 : i32
    %c0_i32_0 = arith.constant 0 : i32
    %c0_i32_1 = arith.constant 0 : i32
    return %c0_i32, %c0_i32_0 : i32, i32
  }
  func.func @transform_7(%arg0: i32) -> (i32, i32) {
    %c0_i32 = arith.constant 0 : i32
    %c0_i32_0 = arith.constant 0 : i32
    %c0_i32_1 = arith.constant 0 : i32
    return %c0_i32, %c0_i32_0 : i32, i32
  }
  func.func @transform_8(%arg0: i32) -> (i32, i32) {
    %c0_i32 = arith.constant 0 : i32
    %c0_i32_0 = arith.constant 0 : i32
    %c0_i32_1 = arith.constant 0 : i32
    return %c0_i32, %c0_i32_0 : i32, i32
  }
  func.func @transform_9(%arg0: i32) -> (i32, i32) {
    %c0_i32 = arith.constant 0 : i32
    %c0_i32_0 = arith.constant 0 : i32
    %c0_i32_1 = arith.constant 0 : i32
    return %c0_i32, %c0_i32_0 : i32, i32
  }
  func.func @transform_10(%arg0: i32) -> (i32, i32) {
    %c0_i32 = arith.constant 0 : i32
    %c0_i32_0 = arith.constant 0 : i32
    %c0_i32_1 = arith.constant 0 : i32
    return %c0_i32, %c0_i32_0 : i32, i32
  }
  func.func @transform_11(%arg0: i32) -> (i32, i32) {
    %c0_i32 = arith.constant 0 : i32
    %c0_i32_0 = arith.constant 0 : i32
    %c0_i32_1 = arith.constant 0 : i32
    return %c0_i32, %c0_i32_0 : i32, i32
  }
  func.func @transform_12(%arg0: i32) -> (i32, i32) {
    %c0_i32 = arith.constant 0 : i32
    %c0_i32_0 = arith.constant 0 : i32
    %c0_i32_1 = arith.constant 0 : i32
    return %c0_i32, %c0_i32_0 : i32, i32
  }
  func.func @transform_13(%arg0: i32) -> (i32, i32) {
    %c0_i32 = arith.constant 0 : i32
    %c0_i32_0 = arith.constant 0 : i32
    return %arg0, %c0_i32 : i32, i32
  }
}

</mosaic_0001>

<llo_original>
// kernel: tpu_custom_call.1
$region0: #{tpu_custom_call.1}
  #allocation0 [shape = 'u32[]', space=smem, size = 0x4, offset = 0x4, fixed_abs, tag = 'smem constant byte address 0x4 - core index']
  #allocation1 [shape = 'u32[144,128]{1,0:T(1,128)}', space=vmem, size = 0x12000, scoped, tag = 'internal scratch']
  #allocation2 [shape = 'f32[32,64]{1,0:T(8,128)}', space=vmem, size = 0x4000, scoped, tag = 'scratch operand']
  %s0 = inlined_call_operand.vmem [shape: f32[64,32], index: 0, kind: input, shape index: {}]
  %s1 = inlined_call_operand.vmem [shape: f32[16,16], index: 1, kind: input, shape index: {}]
  %s2 = inlined_call_operand.vmem [shape: f32[16,16], index: 2, kind: input, shape index: {}]
  %s3 = inlined_call_operand.vmem [shape: bf16[32,128], index: 3, kind: input, shape index: {}]
  %s4 = inlined_call_operand.vmem [shape: bf16[128,32], index: 4, kind: input, shape index: {}]
  %s5 = inlined_call_operand.vmem [shape: bf16[32,320], index: 5, kind: input, shape index: {}]
  %s6 = inlined_call_operand.vmem [shape: bf16[64,32], index: 6, kind: input, shape index: {}]
  %s7 = inlined_call_operand.vmem [shape: bf16[32,128], index: 7, kind: input, shape index: {}]
  %s8 = inlined_call_operand.vmem [shape: f32[5,64], index: 8, kind: input, shape index: {}]
  %s9 = inlined_call_operand.vmem [shape: bf16[64,32], index: 9, kind: input, shape index: {}]
  %s10 = inlined_call_operand.vmem [shape: bf16[32,128], index: 10, kind: input, shape index: {}]
  %s11 = inlined_call_operand.vmem [shape: bf16[128,32], index: 11, kind: input, shape index: {}]
  %s12 = inlined_call_operand.vmem [shape: f32[19,128], index: 12, kind: input, shape index: {}]
  %s13 = inlined_call_operand.vmem [shape: f32[64,32], index: 13, kind: output, shape index: {}]
  %s14 = sld [smem:[#allocation0]]
  $region85: #{tpu_custom_call.1} parent=0
    _
  %s16 = ssub.s32 1, %s14
  %s17 = scalar_select 0, %s16, %s14
  loop: start=0, step=1, limit=4
  $region2: #{tpu_custom_call.1} parent=0 // loop_pre_header
    _
  $region3: #{tpu_custom_call.1} parent=0 // loop_header
    %s19 = sphi 0, %s23
    %p20 = scmp.ge.s32.totalorder %s19, 4
    %s29 = sphi 0, %s31
    %s32 = sphi 0, %s29
    %s33 = sphi 0, %s32
    %s49 = sphi 0, %s33
    %s53 = sphi 0, %s53
    %s55 = sphi 0, %s53
    %s56 = sphi 0, %s55
    %s70 = sphi 0, %s56
    %s74 = sphi 0, %s74
    %s76 = sphi 0, %s74
    %s77 = sphi 0, %s76
    %s91 = sphi 0, %s77
    %s95 = sphi 0, %s95
    %s97 = sphi 0, %s95
    %s98 = sphi 0, %s97
    %s112 = sphi 0, %s98
    %s116 = sphi 0, %s116
    %s118 = sphi 0, %s116
    %s119 = sphi 0, %s118
    %s133 = sphi 0, %s119
    %s137 = sphi 0, %s137
    %s139 = sphi 0, %s137
    %s140 = sphi 0, %s139
    %s154 = sphi 0, %s140
    %s158 = sphi 0, %s158
    %s160 = sphi 0, %s158
    %s161 = sphi 0, %s160
    %s175 = sphi 0, %s161
    %s179 = sphi 0, %s179
    %s181 = sphi 0, %s179
    %s182 = sphi 0, %s181
    %s196 = sphi 0, %s182
    %s200 = sphi 0, %s200
    %s202 = sphi 0, %s200
    %s203 = sphi 0, %s202
    %s217 = sphi 0, %s203
    %s221 = sphi 0, %s221
    %s223 = sphi 0, %s221
    %s224 = sphi 0, %s223
    %s238 = sphi 0, %s224
    %s242 = sphi 0, %s242
    %s244 = sphi 0, %s242
    %s245 = sphi 0, %s244
    %s259 = sphi 0, %s245
    %s263 = sphi 0, %s263
    %s265 = sphi 0, %s263
    %s266 = sphi 0, %s265
    %s280 = sphi 0, %s266
    %s284 = sphi 0, %s284
    %s286 = sphi 0, %s284
    %s287 = sphi 0, %s286
    %s301 = sphi 0, %s287
    %s307 = sphi 0, %s309
    %s310 = sphi 0, %s307
    %s311 = sphi 0, %s310
    %s327 = sphi 0, %s311
  $region4: #{tpu_custom_call.1} parent=0 // loop_header_branch
    %22 = sbr.rel (%p20) target = $region8
  $region5: #{tpu_custom_call.1} parent=0 // loop_body
    %s24 = ssub.s32 %s19, 1
    %s25 = ssub.s32 %s19, 2
    %s26 = sadd.s32 %s19, 1
    %s27 = ssub.s32 %s19, %s26
    %p28 = scmp.eq.s32.totalorder %s27, 0
    %s30 = sadd.s32 %s29, 1
    %s31 = scalar_select %p28, %s29, %s30
    %p34 = pneg %p28
    %p35 = scmp.eq.s32.totalorder %s19, 1
    %p36 = por %p34, %p35
    %p37 = scmp.ne.s32.totalorder %s29, %s32
    %p38 = scmp.eq.s32.totalorder %s19, 0
    %p39 = por %p37, %p38
    %p40 = scmp.ne.s32.totalorder %s29, %s32
    %p41 = scmp.eq.s32.totalorder %s24, 1
    %p42 = por %p40, %p41
    %p43 = scmp.ne.s32.totalorder %s32, %s33
    %p44 = scmp.eq.s32.totalorder %s24, 0
    %p45 = por %p43, %p44
    %p46 = scmp.ne.s32.totalorder %s32, %s33
    %p47 = scmp.eq.s32.totalorder %s25, 1
    %p48 = por %p46, %p47
    %p50 = scmp.ne.s32.totalorder %s33, %s49
    %p51 = scmp.eq.s32.totalorder %s25, 0
    %p52 = por %p50, %p51
    %s54 = sadd.s32 %s53, 1
    %p57 = scmp.eq.s32.totalorder %s19, 1
    %p58 = scmp.ne.s32.totalorder %s53, %s55
    %p59 = scmp.eq.s32.totalorder %s19, 0
    %p60 = por %p58, %p59
    %p61 = scmp.ne.s32.totalorder %s53, %s55
    %p62 = scmp.eq.s32.totalorder %s24, 1
    %p63 = por %p61, %p62
    %p64 = scmp.ne.s32.totalorder %s55, %s56
    %p65 = scmp.eq.s32.totalorder %s24, 0
    %p66 = por %p64, %p65
    %p67 = scmp.ne.s32.totalorder %s55, %s56
    %p68 = scmp.eq.s32.totalorder %s25, 1
    %p69 = por %p67, %p68
    %p71 = scmp.ne.s32.totalorder %s56, %s70
    %p72 = scmp.eq.s32.totalorder %s25, 0
    %p73 = por %p71, %p72
    %s75 = sadd.s32 %s74, 1
    %p78 = scmp.eq.s32.totalorder %s19, 1
    %p79 = scmp.ne.s32.totalorder %s74, %s76
    %p80 = scmp.eq.s32.totalorder %s19, 0
    %p81 = por %p79, %p80
    %p82 = scmp.ne.s32.totalorder %s74, %s76
    %p83 = scmp.eq.s32.totalorder %s24, 1
    %p84 = por %p82, %p83
    %p85 = scmp.ne.s32.totalorder %s76, %s77
    %p86 = scmp.eq.s32.totalorder %s24, 0
    %p87 = por %p85, %p86
    %p88 = scmp.ne.s32.totalorder %s76, %s77
    %p89 = scmp.eq.s32.totalorder %s25, 1
    %p90 = por %p88, %p89
    %p92 = scmp.ne.s32.totalorder %s77, %s91
    %p93 = scmp.eq.s32.totalorder %s25, 0
    %p94 = por %p92, %p93
    %s96 = sadd.s32 %s95, 1
    %p99 = scmp.eq.s32.totalorder %s19, 1
    %p100 = scmp.ne.s32.totalorder %s95, %s97
    %p101 = scmp.eq.s32.totalorder %s19, 0
    %p102 = por %p100, %p101
    %p103 = scmp.ne.s32.totalorder %s95, %s97
    %p104 = scmp.eq.s32.totalorder %s24, 1
    %p105 = por %p103, %p104
    %p106 = scmp.ne.s32.totalorder %s97, %s98
    %p107 = scmp.eq.s32.totalorder %s24, 0
    %p108 = por %p106, %p107
    %p109 = scmp.ne.s32.totalorder %s97, %s98
    %p110 = scmp.eq.s32.totalorder %s25, 1
    %p111 = por %p109, %p110
    %p113 = scmp.ne.s32.totalorder %s98, %s112
    %p114 = scmp.eq.s32.totalorder %s25, 0
    %p115 = por %p113, %p114
    %s117 = sadd.s32 %s116, 1
    %p120 = scmp.eq.s32.totalorder %s19, 1
    %p121 = scmp.ne.s32.totalorder %s116, %s118
    %p122 = scmp.eq.s32.totalorder %s19, 0
    %p123 = por %p121, %p122
    %p124 = scmp.ne.s32.totalorder %s116, %s118
    %p125 = scmp.eq.s32.totalorder %s24, 1
    %p126 = por %p124, %p125
    %p127 = scmp.ne.s32.totalorder %s118, %s119
    %p128 = scmp.eq.s32.totalorder %s24, 0
    %p129 = por %p127, %p128
    %p130 = scmp.ne.s32.totalorder %s118, %s119
    %p131 = scmp.eq.s32.totalorder %s25, 1
    %p132 = por %p130, %p131
    %p134 = scmp.ne.s32.totalorder %s119, %s133
    %p135 = scmp.eq.s32.totalorder %s25, 0
    %p136 = por %p134, %p135
    %s138 = sadd.s32 %s137, 1
    %p141 = scmp.eq.s32.totalorder %s19, 1
    %p142 = scmp.ne.s32.totalorder %s137, %s139
    %p143 = scmp.eq.s32.totalorder %s19, 0
    %p144 = por %p142, %p143
    %p145 = scmp.ne.s32.totalorder %s137, %s139
    %p146 = scmp.eq.s32.totalorder %s24, 1
    %p147 = por %p145, %p146
    %p148 = scmp.ne.s32.totalorder %s139, %s140
    %p149 = scmp.eq.s32.totalorder %s24, 0
    %p150 = por %p148, %p149
    %p151 = scmp.ne.s32.totalorder %s139, %s140
    %p152 = scmp.eq.s32.totalorder %s25, 1
    %p153 = por %p151, %p152
    %p155 = scmp.ne.s32.totalorder %s140, %s154
    %p156 = scmp.eq.s32.totalorder %s25, 0
    %p157 = por %p155, %p156
    %s159 = sadd.s32 %s158, 1
    %p162 = scmp.eq.s32.totalorder %s19, 1
    %p163 = scmp.ne.s32.totalorder %s158, %s160
    %p164 = scmp.eq.s32.totalorder %s19, 0
    %p165 = por %p163, %p164
    %p166 = scmp.ne.s32.totalorder %s158, %s160
    %p167 = scmp.eq.s32.totalorder %s24, 1
    %p168 = por %p166, %p167
    %p169 = scmp.ne.s32.totalorder %s160, %s161
    %p170 = scmp.eq.s32.totalorder %s24, 0
    %p171 = por %p169, %p170
    %p172 = scmp.ne.s32.totalorder %s160, %s161
    %p173 = scmp.eq.s32.totalorder %s25, 1
    %p174 = por %p172, %p173
    %p176 = scmp.ne.s32.totalorder %s161, %s175
    %p177 = scmp.eq.s32.totalorder %s25, 0
    %p178 = por %p176, %p177
    %s180 = sadd.s32 %s179, 1
    %p183 = scmp.eq.s32.totalorder %s19, 1
    %p184 = scmp.ne.s32.totalorder %s179, %s181
    %p185 = scmp.eq.s32.totalorder %s19, 0
    %p186 = por %p184, %p185
    %p187 = scmp.ne.s32.totalorder %s179, %s181
    %p188 = scmp.eq.s32.totalorder %s24, 1
    %p189 = por %p187, %p188
    %p190 = scmp.ne.s32.totalorder %s181, %s182
    %p191 = scmp.eq.s32.totalorder %s24, 0
    %p192 = por %p190, %p191
    %p193 = scmp.ne.s32.totalorder %s181, %s182
    %p194 = scmp.eq.s32.totalorder %s25, 1
    %p195 = por %p193, %p194
    %p197 = scmp.ne.s32.totalorder %s182, %s196
    %p198 = scmp.eq.s32.totalorder %s25, 0
    %p199 = por %p197, %p198
    %s201 = sadd.s32 %s200, 1
    %p204 = scmp.eq.s32.totalorder %s19, 1
    %p205 = scmp.ne.s32.totalorder %s200, %s202
    %p206 = scmp.eq.s32.totalorder %s19, 0
    %p207 = por %p205, %p206
    %p208 = scmp.ne.s32.totalorder %s200, %s202
    %p209 = scmp.eq.s32.totalorder %s24, 1
    %p210 = por %p208, %p209
    %p211 = scmp.ne.s32.totalorder %s202, %s203
    %p212 = scmp.eq.s32.totalorder %s24, 0
    %p213 = por %p211, %p212
    %p214 = scmp.ne.s32.totalorder %s202, %s203
    %p215 = scmp.eq.s32.totalorder %s25, 1
    %p216 = por %p214, %p215
    %p218 = scmp.ne.s32.totalorder %s203, %s217
    %p219 = scmp.eq.s32.totalorder %s25, 0
    %p220 = por %p218, %p219
    %s222 = sadd.s32 %s221, 1
    %p225 = scmp.eq.s32.totalorder %s19, 1
    %p226 = scmp.ne.s32.totalorder %s221, %s223
    %p227 = scmp.eq.s32.totalorder %s19, 0
    %p228 = por %p226, %p227
    %p229 = scmp.ne.s32.totalorder %s221, %s223
    %p230 = scmp.eq.s32.totalorder %s24, 1
    %p231 = por %p229, %p230
    %p232 = scmp.ne.s32.totalorder %s223, %s224
    %p233 = scmp.eq.s32.totalorder %s24, 0
    %p234 = por %p232, %p233
    %p235 = scmp.ne.s32.totalorder %s223, %s224
    %p236 = scmp.eq.s32.totalorder %s25, 1
    %p237 = por %p235, %p236
    %p239 = scmp.ne.s32.totalorder %s224, %s238
    %p240 = scmp.eq.s32.totalorder %s25, 0
    %p241 = por %p239, %p240
    %s243 = sadd.s32 %s242, 1
    %p246 = scmp.eq.s32.totalorder %s19, 1
    %p247 = scmp.ne.s32.totalorder %s242, %s244
    %p248 = scmp.eq.s32.totalorder %s19, 0
    %p249 = por %p247, %p248
    %p250 = scmp.ne.s32.totalorder %s242, %s244
    %p251 = scmp.eq.s32.totalorder %s24, 1
    %p252 = por %p250, %p251
    %p253 = scmp.ne.s32.totalorder %s244, %s245
    %p254 = scmp.eq.s32.totalorder %s24, 0
    %p255 = por %p253, %p254
    %p256 = scmp.ne.s32.totalorder %s244, %s245
    %p257 = scmp.eq.s32.totalorder %s25, 1
    %p258 = por %p256, %p257
    %p260 = scmp.ne.s32.totalorder %s245, %s259
    %p261 = scmp.eq.s32.totalorder %s25, 0
    %p262 = por %p260, %p261
    %s264 = sadd.s32 %s263, 1
    %p267 = scmp.eq.s32.totalorder %s19, 1
    %p268 = scmp.ne.s32.totalorder %s263, %s265
    %p269 = scmp.eq.s32.totalorder %s19, 0
    %p270 = por %p268, %p269
    %p271 = scmp.ne.s32.totalorder %s263, %s265
    %p272 = scmp.eq.s32.totalorder %s24, 1
    %p273 = por %p271, %p272
    %p274 = scmp.ne.s32.totalorder %s265, %s266
    %p275 = scmp.eq.s32.totalorder %s24, 0
    %p276 = por %p274, %p275
    %p277 = scmp.ne.s32.totalorder %s265, %s266
    %p278 = scmp.eq.s32.totalorder %s25, 1
    %p279 = por %p277, %p278
    %p281 = scmp.ne.s32.totalorder %s266, %s280
    %p282 = scmp.eq.s32.totalorder %s25, 0
    %p283 = por %p281, %p282
    %s285 = sadd.s32 %s284, 1
    %p288 = scmp.eq.s32.totalorder %s19, 1
    %p289 = scmp.ne.s32.totalorder %s284, %s286
    %p290 = scmp.eq.s32.totalorder %s19, 0
    %p291 = por %p289, %p290
    %p292 = scmp.ne.s32.totalorder %s284, %s286
    %p293 = scmp.eq.s32.totalorder %s24, 1
    %p294 = por %p292, %p293
    %p295 = scmp.ne.s32.totalorder %s286, %s287
    %p296 = scmp.eq.s32.totalorder %s24, 0
    %p297 = por %p295, %p296
    %p298 = scmp.ne.s32.totalorder %s286, %s287
    %p299 = scmp.eq.s32.totalorder %s25, 1
    %p300 = por %p298, %p299
    %p302 = scmp.ne.s32.totalorder %s287, %s301
    %p303 = scmp.eq.s32.totalorder %s25, 0
    %p304 = por %p302, %p303
    %s305 = ssub.s32 %s19, %s26
    %p306 = scmp.eq.s32.totalorder %s305, 0
    %s308 = sadd.s32 %s307, 1
    %s309 = scalar_select %p306, %s307, %s308
    %p312 = pneg %p306
    %p313 = scmp.eq.s32.totalorder %s19, 1
    %p314 = por %p312, %p313
    %p315 = scmp.ne.s32.totalorder %s307, %s310
    %p316 = scmp.eq.s32.totalorder %s19, 0
    %p317 = por %p315, %p316
    %p318 = scmp.ne.s32.totalorder %s307, %s310
    %p319 = scmp.eq.s32.totalorder %s24, 1
    %p320 = por %p318, %p319
    %p321 = scmp.ne.s32.totalorder %s310, %s311
    %p322 = scmp.eq.s32.totalorder %s24, 0
    %p323 = por %p321, %p322
    %p324 = scmp.ne.s32.totalorder %s310, %s311
    %p325 = scmp.eq.s32.totalorder %s25, 1
    %p326 = por %p324, %p325
    %p328 = scmp.ne.s32.totalorder %s311, %s327
    %p329 = scmp.eq.s32.totalorder %s25, 0
    %p330 = por %p328, %p329
    %p331 = scmp.le.s32.totalorder 1, %s19
    %p332 = scmp.lt.s32.totalorder %s19, 3
    %p333 = pnand %p331, %p332
    %p334 = pneg %p333
    // Predicated region
    $region9: #{tpu_custom_call.1} parent=5 // pred_check
      _
    $region10: #{tpu_custom_call.1} parent=5 // pred_check_branch
      %336 = sbr.rel (%p333) target = $region12
    $region11: #{tpu_custom_call.1} parent=5 // pred_region
      %s337 = ssub.s32 %s19, 1
      // Predicated region
      $region13: #{tpu_custom_call.1} parent=11 // pred_check
        %p338 = pneg %p66
      $region14: #{tpu_custom_call.1} parent=11 // pred_check_branch
        %340 = sbr.rel (%p338) target = $region16
      $region15: #{tpu_custom_call.1} parent=11 // pred_region
        _
      $region16: #{tpu_custom_call.1} parent=11 // pred_fallthru
        _
      // Predicated region
      $region17: #{tpu_custom_call.1} parent=11 // pred_check
        %p341 = pneg %p87
      $region18: #{tpu_custom_call.1} parent=11 // pred_check_branch
        %343 = sbr.rel (%p341) target = $region20
      $region19: #{tpu_custom_call.1} parent=11 // pred_region
        _
      $region20: #{tpu_custom_call.1} parent=11 // pred_fallthru
        _
      // Predicated region
      $region21: #{tpu_custom_call.1} parent=11 // pred_check
        %p344 = pneg %p108
      $region22: #{tpu_custom_call.1} parent=11 // pred_check_branch
        %346 = sbr.rel (%p344) target = $region24
      $region23: #{tpu_custom_call.1} parent=11 // pred_region
        _
      $region24: #{tpu_custom_call.1} parent=11 // pred_fallthru
        _
      // Predicated region
      $region25: #{tpu_custom_call.1} parent=11 // pred_check
        %p347 = pneg %p129
      $region26: #{tpu_custom_call.1} parent=11 // pred_check_branch
        %349 = sbr.rel (%p347) target = $region28
      $region27: #{tpu_custom_call.1} parent=11 // pred_region
        _
      $region28: #{tpu_custom_call.1} parent=11 // pred_fallthru
        _
      // Predicated region
      $region29: #{tpu_custom_call.1} parent=11 // pred_check
        %p350 = pneg %p150
      $region30: #{tpu_custom_call.1} parent=11 // pred_check_branch
        %352 = sbr.rel (%p350) target = $region32
      $region31: #{tpu_custom_call.1} parent=11 // pred_region
        _
      $region32: #{tpu_custom_call.1} parent=11 // pred_fallthru
        _
      // Predicated region
      $region33: #{tpu_custom_call.1} parent=11 // pred_check
        %p353 = pneg %p171
      $region34: #{tpu_custom_call.1} parent=11 // pred_check_branch
        %355 = sbr.rel (%p353) target = $region36
      $region35: #{tpu_custom_call.1} parent=11 // pred_region
        _
      $region36: #{tpu_custom_call.1} parent=11 // pred_fallthru
        _
      // Predicated region
      $region37: #{tpu_custom_call.1} parent=11 // pred_check
        %p356 = pneg %p192
      $region38: #{tpu_custom_call.1} parent=11 // pred_check_branch
        %358 = sbr.rel (%p356) target = $region40
      $region39: #{tpu_custom_call.1} parent=11 // pred_region
        _
      $region40: #{tpu_custom_call.1} parent=11 // pred_fallthru
        _
      // Predicated region
      $region41: #{tpu_custom_call.1} parent=11 // pred_check
        %p359 = pneg %p213
      $region42: #{tpu_custom_call.1} parent=11 // pred_check_branch
        %361 = sbr.rel (%p359) target = $region44
      $region43: #{tpu_custom_call.1} parent=11 // pred_region
        _
      $region44: #{tpu_custom_call.1} parent=11 // pred_fallthru
        _
      // Predicated region
      $region45: #{tpu_custom_call.1} parent=11 // pred_check
        %p362 = pneg %p234
      $region46: #{tpu_custom_call.1} parent=11 // pred_check_branch
        %364 = sbr.rel (%p362) target = $region48
      $region47: #{tpu_custom_call.1} parent=11 // pred_region
        _
      $region48: #{tpu_custom_call.1} parent=11 // pred_fallthru
        _
      // Predicated region
      $region49: #{tpu_custom_call.1} parent=11 // pred_check
        %p365 = pneg %p255
      $region50: #{tpu_custom_call.1} parent=11 // pred_check_branch
        %367 = sbr.rel (%p365) target = $region52
      $region51: #{tpu_custom_call.1} parent=11 // pred_region
        _
      $region52: #{tpu_custom_call.1} parent=11 // pred_fallthru
        _
      // Predicated region
      $region53: #{tpu_custom_call.1} parent=11 // pred_check
        %p368 = pneg %p276
      $region54: #{tpu_custom_call.1} parent=11 // pred_check_branch
        %370 = sbr.rel (%p368) target = $region56
      $region55: #{tpu_custom_call.1} parent=11 // pred_region
        _
      $region56: #{tpu_custom_call.1} parent=11 // pred_fallthru
        _
      // Predicated region
      $region57: #{tpu_custom_call.1} parent=11 // pred_check
        %p371 = pneg %p297
      $region58: #{tpu_custom_call.1} parent=11 // pred_check_branch
        %373 = sbr.rel (%p371) target = $region60
      $region59: #{tpu_custom_call.1} parent=11 // pred_region
        _
      $region60: #{tpu_custom_call.1} parent=11 // pred_fallthru
        _
    $region12: #{tpu_custom_call.1} parent=5 // pred_fallthru
      _
    %p374 = scmp.lt.s32.totalorder %s19, 2
    // Predicated region
    $region61: #{tpu_custom_call.1} parent=5 // pred_check
      %p375 = pneg %p374
    $region62: #{tpu_custom_call.1} parent=5 // pred_check_branch
      %377 = sbr.rel (%p375) target = $region64
    $region63: #{tpu_custom_call.1} parent=5 // pred_region
      // Predicated region
      $region65: #{tpu_custom_call.1} parent=63 // pred_check
        %p378 = pneg %p39
      $region66: #{tpu_custom_call.1} parent=63 // pred_check_branch
        %380 = sbr.rel (%p378) target = $region68
      $region67: #{tpu_custom_call.1} parent=63 // pred_region
        %s381 = smul.u32 4, %s19
        %p382 = scmp.lt.s32.totalorder %s381, 7
        %s383 = scalar_select %p382, %s381, 7
        %s384 = smul.addr %s383, 8
        %s385 = scalar_lea.vmem %s0, %s384
        %s386 = smul.u32 4, %s19
      $region68: #{tpu_custom_call.1} parent=63 // pred_fallthru
        _
    $region64: #{tpu_custom_call.1} parent=5 // pred_fallthru
      _
    %p387 = scmp.le.s32.totalorder 1, %s19
    %p388 = scmp.lt.s32.totalorder %s19, 3
    %p389 = pnand %p387, %p388
    %p390 = pneg %p389
    // Predicated region
    $region69: #{tpu_custom_call.1} parent=5 // pred_check
      _
    $region70: #{tpu_custom_call.1} parent=5 // pred_check_branch
      %392 = sbr.rel (%p389) target = $region72
    $region71: #{tpu_custom_call.1} parent=5 // pred_region
      %s393 = ssub.s32 %s19, 1
      %s394 = smul.u32 4, %s24
      %p395 = scmp.lt.s32.totalorder %s394, 7
      %s396 = scalar_select %p395, %s394, 7
      %s397 = smul.addr %s396, 8
      %s398 = scalar_lea.vmem %s0, %s397
      %p399 = pneg %p45
      %p400 = pneg %p42
      %p401 = pneg %p66
      %p402 = pneg %p63
      %p403 = pneg %p87
      %p404 = pneg %p84
      %p405 = pneg %p108
      %p406 = pneg %p105
      %p407 = pneg %p129
      %p408 = pneg %p126
      %p409 = pneg %p150
      %p410 = pneg %p147
      %p411 = pneg %p171
      %p412 = pneg %p168
      %p413 = pneg %p192
      %p414 = pneg %p189
      %p415 = pneg %p213
      %p416 = pneg %p210
      %p417 = pneg %p234
      %p418 = pneg %p231
      %p419 = pneg %p255
      %p420 = pneg %p252
      %p421 = pneg %p276
      %p422 = pneg %p273
      %p423 = pneg %p297
      %p424 = pneg %p294
      %p425 = pneg %p323
      %p426 = pneg %p320
      %s427 = smul.u32 4, %s24
      %p428 = scmp.lt.s32.totalorder %s427, 7
      %s429 = scalar_select %p428, %s427, 7
      %s430 = smul.addr %s429, 8
      %s431 = scalar_lea.vmem %s13, %s430
      %s432 = smul.u32 4, %s24
      %p433 = scmp.lt.s32.totalorder %s432, 7
      %s434 = scalar_select %p433, %s432, 7
      %s435 = smul.addr %s434, 8
      %s436 = scalar_lea.vmem %s0, %s435
      %s437 = smul.u32 4, %s24
      %s438 = smul.u32 4, %s24
      %p439 = scmp.lt.s32.totalorder %s438, 7
      %s440 = scalar_select %p439, %s438, 7
      %s441 = smul.addr %s440, 8
      %s442 = scalar_lea.vmem %s13, %s441
      %s443 = smul.u32 4, %s24
      %v445 = vld [vmem:[%s436] sm:$0xff]
      %v446 = vld [vmem:[%s436 + $0x8] sm:$0xff]
      %v447 = vld [vmem:[%s436 + $0x10] sm:$0xff]
      %v448 = vld [vmem:[%s436 + $0x18] sm:$0xff]
      %v449 = vld [vmem:[%s12] sm:$0x1]
      %v450 = vld [vmem:[%s12 + $0x1] sm:$0x1]
      %v451 = vld [vmem:[%s12 + $0x2] sm:$0x1]
      %v452 = vld [vmem:[%s12 + $0x3] sm:$0x1]
      %vm453 = vcmask 261120
      %v454 = vsel %vm453, %v445, 0.0
      %455 = vadd.xlane.f32.xlu0 %v454
      %v456 = vpop.xlane.xlu0 %455
      %v457 = vsel %vm453, %v446, 0.0
      %458 = vadd.xlane.f32.xlu0 %v457
      %v459 = vpop.xlane.xlu0 %458
      %v460 = vsel %vm453, %v447, 0.0
      %461 = vadd.xlane.f32.xlu0 %v460
      %v462 = vpop.xlane.xlu0 %461
      %v463 = vsel %vm453, %v448, 0.0
      %464 = vadd.xlane.f32.xlu0 %v463
      %v465 = vpop.xlane.xlu0 %464
      %v466 = vrcp.pop 32.0
      %v467 = vmul.f32 %v456, %v466
      %v468 = vmul.f32 %v459, %v466
      %v469 = vmul.f32 %v462, %v466
      %v470 = vmul.f32 %v465, %v466
      %v471 = vsub.f32 %v445, %v467
      %v472 = vsub.f32 %v446, %v468
      %v473 = vsub.f32 %v447, %v469
      %v474 = vsub.f32 %v448, %v470
      %v475 = vmul.f32 %v471, %v471
      %v476 = vmul.f32 %v472, %v472
      %v477 = vmul.f32 %v473, %v473
      %v478 = vmul.f32 %v474, %v474
      %v479 = vsel %vm453, %v475, 0.0
      %480 = vadd.xlane.f32.xlu0 %v479
      %v481 = vpop.xlane.xlu0 %480
      %v482 = vsel %vm453, %v476, 0.0
      %483 = vadd.xlane.f32.xlu0 %v482
      %v484 = vpop.xlane.xlu0 %483
      %v485 = vsel %vm453, %v477, 0.0
      %486 = vadd.xlane.f32.xlu0 %v485
      %v487 = vpop.xlane.xlu0 %486
      %v488 = vsel %vm453, %v478, 0.0
      %489 = vadd.xlane.f32.xlu0 %v488
      %v490 = vpop.xlane.xlu0 %489
      %v491 = vmul.f32 %v481, %v466
      %v492 = vmul.f32 %v484, %v466
      %v493 = vmul.f32 %v487, %v466
      %v494 = vmul.f32 %v490, %v466
      %v495 = vadd.f32 %v491, 1e-05
      %v496 = vadd.f32 %v492, 1e-05
      %v497 = vadd.f32 %v493, 1e-05
      %v498 = vadd.f32 %v494, 1e-05
      %v499 = vrsqrt.pop %v495
      %v500 = vrsqrt.pop %v496
      %v501 = vrsqrt.pop %v497
      %v502 = vrsqrt.pop %v498
      %v503 = vmul.f32 %v471, %v499
      %v504 = vmul.f32 %v472, %v500
      %v505 = vmul.f32 %v473, %v501
      %v506 = vmul.f32 %v474, %v502
      %v507 = vlaneseq
      %v508 = vshrl.u32 %v507, 7
      %v509 = vsub.s32 0, %v508
      %v510 = vrot.slane %v449, %v509
      %v511 = vmul.f32 %v503, %v510
      %v512 = vmul.f32 %v504, %v510
      %v513 = vmul.f32 %v505, %v510
      %v514 = vmul.f32 %v506, %v510
      %v515 = vlaneseq
      %v516 = vshrl.u32 %v515, 7
      %v517 = vsub.s32 0, %v516
      %v518 = vrot.slane %v450, %v517
      %v519 = vadd.f32 %v511, %v518
      %v520 = vadd.f32 %v512, %v518
      %v521 = vadd.f32 %v513, %v518
      %v522 = vadd.f32 %v514, %v518
      %v523 = vpack.c.bf16 %v520, %v519
      %v524 = vpack.c.bf16 %v522, %v521
      %v525 = vld [vmem:[%s3] sm:$0xf]
      %v526 = vld [vmem:[%s3 + $0x4] sm:$0xf]
      %v527 = vld [vmem:[%s3 + $0x8] sm:$0xf]
      %v528 = vld [vmem:[%s3 + $0xc] sm:$0xf]
      %v529 = vlaneseq
      %v530 = vshrl.u32 %v529, 7
      %v531 = vsub.s32 0, %v530
      %v532 = vrot.slane %v451, %v531
      %v537 = vunpack.c.l.b16 %v525
      %v538 = vunpack.c.l.b16 %v526
      %v539 = vunpack.c.l.b16 %v527
      %v540 = vunpack.c.l.b16 %v528
      %v541 = vpack.c.b16 %v538, %v537
      %v542 = vpack.c.b16 %v540, %v539
      %v546 = vsel %vm453, %v523, 0
      %v549 = vsel %vm453, %v524, 0
      %551 = vmatprep.subr.bf16.mxu0 0
      %552 = vmatpush1.bf16.msra.mxu0 0
      %553 = vmatprep.subr.bf16.mxu0 0
      %554 = vmatpush1.bf16.msra.mxu0 0
      %555 = vmatprep.subr.bf16.mxu0 0
      %556 = vmatpush1.bf16.msra.mxu0 0
      %557 = vmatprep.subr.bf16.mxu0 0
      %558 = vmatpush1.bf16.msra.mxu0 0
      %559 = vmatprep.subr.bf16.mxu0 0
      %560 = vmatpush1.bf16.msra.mxu0 0
      %561 = vmatprep.subr.bf16.mxu0 0
      %562 = vmatpush1.bf16.msra.mxu0 0
      %563 = vmatprep.subr.bf16.mxu0 0
      %564 = vmatpush1.bf16.msra.mxu0 %v542
      %565 = vmatprep.subr.bf16.mxu0 0
      %566 = vmatpush1.bf16.msra.mxu0 %v541
      %567 = vmatprep.subr.bf16.mxu0 0
      %568 = vmatpush2.bf16.msra.mxu0 0
      %569 = vmatprep.subr.bf16.mxu0 0
      %570 = vmatpush2.bf16.msra.mxu0 0
      %571 = vmatprep.subr.bf16.mxu0 0
      %572 = vmatpush2.bf16.msra.mxu0 0
      %573 = vmatprep.subr.bf16.mxu0 0
      %574 = vmatpush2.bf16.msra.mxu0 0
      %575 = vmatprep.subr.bf16.mxu0 0
      %576 = vmatpush2.bf16.msra.mxu0 0
      %577 = vmatprep.subr.bf16.mxu0 0
      %578 = vmatpush2.bf16.msra.mxu0 0
      %579 = vmatprep.subr.bf16.mxu0 0
      %580 = vmatpush2.bf16.msra.mxu0 0
      %581 = vmatprep.subr.bf16.mxu0 0
      %582 = vmatpush2.bf16.msra.mxu0 0
      %583 = vmatprep.mubr.bf16.mxu0 0
      %584 = vmatmul.mubr.bf16.gmra.mxu0 %v546
      %v585 = vpop.f32.mrf.mxu0
      %v586 = vadd.f32 %v532, %v585
      %v587 = vpop.f32.mrf.mxu0
      %v588 = vpop.f32.mrf.mxu0
      %v589 = vadd.f32 %v532, %v588
      %v590 = vpop.f32.mrf.mxu0
      %591 = vmatprep.mubr.bf16.mxu0 0
      %592 = vmatmul.mubr.bf16.gmra.mxu0 %v549
      %v593 = vpop.f32.mrf.mxu0
      %v594 = vadd.f32 %v532, %v593
      %v595 = vpop.f32.mrf.mxu0
      %v596 = vpop.f32.mrf.mxu0
      %v597 = vadd.f32 %v532, %v596
      %v598 = vpop.f32.mrf.mxu0
      %599 = vdwg.mxu0
      %v600 = vxor.u32 %v586, 2147483648
      %v601 = vxor.u32 %v589, 2147483648
      %v602 = vxor.u32 %v594, 2147483648
      %v603 = vxor.u32 %v597, 2147483648
      %v604 = vmul.f32 %v600, 1.442695
      %v605 = vpow.pop %v604
      %v606 = vmul.f32 %v601, 1.442695
      %v607 = vpow.pop %v606
      %v608 = vmul.f32 %v602, 1.442695
      %v609 = vpow.pop %v608
      %v610 = vmul.f32 %v603, 1.442695
      %v611 = vpow.pop %v610
      %v612 = vadd.f32 %v605, 1.0
      %v613 = vadd.f32 %v607, 1.0
      %v614 = vadd.f32 %v609, 1.0
      %v615 = vadd.f32 %v611, 1.0
      %v616 = vrcp.pop %v612
      %v617 = vmul.f32 1.0, %v616
      %v618 = vrcp.pop %v613
      %v619 = vmul.f32 1.0, %v618
      %v620 = vrcp.pop %v614
      %v621 = vmul.f32 1.0, %v620
      %v622 = vrcp.pop %v615
      %v623 = vmul.f32 1.0, %v622
      %v624 = vmul.f32 %v586, %v617
      %v625 = vmul.f32 %v589, %v619
      %v626 = vmul.f32 %v594, %v621
      %v627 = vmul.f32 %v597, %v623
      %v628 = vpack.c.bf16 %v625, %v624
      %v629 = vpack.c.bf16 %v627, %v626
      %v630 = vld [vmem:[%s4] sm:$0xf]
      %v631 = vld [vmem:[%s4 + $0x4] sm:$0xf]
      %v632 = vld [vmem:[%s4 + $0x8] sm:$0xf]
      %v633 = vld [vmem:[%s4 + $0xc] sm:$0xf]
      %v634 = vld [vmem:[%s4 + $0x10] sm:$0xf]
      %v635 = vld [vmem:[%s4 + $0x14] sm:$0xf]
      %v636 = vld [vmem:[%s4 + $0x18] sm:$0xf]
      %v637 = vld [vmem:[%s4 + $0x1c] sm:$0xf]
      %v638 = vld [vmem:[%s4 + $0x20] sm:$0xf]
      %v639 = vld [vmem:[%s4 + $0x24] sm:$0xf]
      %v640 = vld [vmem:[%s4 + $0x28] sm:$0xf]
      %v641 = vld [vmem:[%s4 + $0x2c] sm:$0xf]
      %v642 = vld [vmem:[%s4 + $0x30] sm:$0xf]
      %v643 = vld [vmem:[%s4 + $0x34] sm:$0xf]
      %v644 = vld [vmem:[%s4 + $0x38] sm:$0xf]
      %v645 = vld [vmem:[%s4 + $0x3c] sm:$0xf]
      %v646 = vlaneseq
      %v647 = vshrl.u32 %v646, 7
      %v648 = vsub.s32 0, %v647
      %v649 = vrot.slane %v452, %v648
      %v666 = vunpack.c.l.b16 %v630
      %v667 = vunpack.c.l.b16 %v631
      %v668 = vunpack.c.l.b16 %v632
      %v669 = vunpack.c.l.b16 %v633
      %v670 = vunpack.c.l.b16 %v634
      %v671 = vunpack.c.l.b16 %v635
      %v672 = vunpack.c.l.b16 %v636
      %v673 = vunpack.c.l.b16 %v637
      %v674 = vunpack.c.l.b16 %v638
      %v675 = vunpack.c.l.b16 %v639
      %v676 = vunpack.c.l.b16 %v640
      %v677 = vunpack.c.l.b16 %v641
      %v678 = vunpack.c.l.b16 %v642
      %v679 = vunpack.c.l.b16 %v643
      %v680 = vunpack.c.l.b16 %v644
      %v681 = vunpack.c.l.b16 %v645
      %v682 = vpack.c.b16 %v667, %v666
      %v683 = vpack.c.b16 %v669, %v668
      %v684 = vpack.c.b16 %v671, %v670
      %v685 = vpack.c.b16 %v673, %v672
      %v686 = vpack.c.b16 %v675, %v674
      %v687 = vpack.c.b16 %v677, %v676
      %v688 = vpack.c.b16 %v679, %v678
      %v689 = vpack.c.b16 %v681, %v680
      %698 = vmatprep.subr.bf16.mxu0 0
      %699 = vmatpush1.bf16.msra.mxu0 %v689
      %700 = vmatprep.subr.bf16.mxu0 0
      %701 = vmatpush1.bf16.msra.mxu0 %v688
      %702 = vmatprep.subr.bf16.mxu0 0
      %703 = vmatpush1.bf16.msra.mxu0 %v687
      %704 = vmatprep.subr.bf16.mxu0 0
      %705 = vmatpush1.bf16.msra.mxu0 %v686
      %706 = vmatprep.subr.bf16.mxu0 0
      %707 = vmatpush1.bf16.msra.mxu0 %v685
      %708 = vmatprep.subr.bf16.mxu0 0
      %709 = vmatpush1.bf16.msra.mxu0 %v684
      %710 = vmatprep.subr.bf16.mxu0 0
      %711 = vmatpush1.bf16.msra.mxu0 %v683
      %712 = vmatprep.subr.bf16.mxu0 0
      %713 = vmatpush1.bf16.msra.mxu0 %v682
      %714 = vmatprep.subr.bf16.mxu0 0
      %715 = vmatpush2.bf16.msra.mxu0 0
      %716 = vmatprep.subr.bf16.mxu0 0
      %717 = vmatpush2.bf16.msra.mxu0 0
      %718 = vmatprep.subr.bf16.mxu0 0
      %719 = vmatpush2.bf16.msra.mxu0 0
      %720 = vmatprep.subr.bf16.mxu0 0
      %721 = vmatpush2.bf16.msra.mxu0 0
      %722 = vmatprep.subr.bf16.mxu0 0
      %723 = vmatpush2.bf16.msra.mxu0 0
      %724 = vmatprep.subr.bf16.mxu0 0
      %725 = vmatpush2.bf16.msra.mxu0 0
      %726 = vmatprep.subr.bf16.mxu0 0
      %727 = vmatpush2.bf16.msra.mxu0 0
      %728 = vmatprep.subr.bf16.mxu0 0
      %729 = vmatpush2.bf16.msra.mxu0 0
      %730 = vmatprep.mubr.bf16.mxu0 0
      %731 = vmatmul.mubr.bf16.gmra.mxu0 %v628
      %v732 = vpop.f32.mrf.mxu0
      %v733 = vadd.f32 %v649, %v732
      %v734 = vpop.f32.mrf.mxu0
      %v735 = vpop.f32.mrf.mxu0
      %v736 = vadd.f32 %v649, %v735
      %v737 = vpop.f32.mrf.mxu0
      %738 = vmatprep.mubr.bf16.mxu0 0
      %739 = vmatmul.mubr.bf16.gmra.mxu0 %v629
      %v740 = vpop.f32.mrf.mxu0
      %v741 = vadd.f32 %v649, %v740
      %v742 = vpop.f32.mrf.mxu0
      %v743 = vpop.f32.mrf.mxu0
      %v744 = vadd.f32 %v649, %v743
      %v745 = vpop.f32.mrf.mxu0
      %746 = vdwg.mxu0
      %v747 = vmul.f32 %v733, 0.5
      %v748 = vmul.f32 %v736, 0.5
      %v749 = vmul.f32 %v741, 0.5
      %v750 = vmul.f32 %v744, 0.5
      %v751 = vadd.f32 %v445, %v747
      %v752 = vadd.f32 %v446, %v748
      %v753 = vadd.f32 %v447, %v749
      %v754 = vadd.f32 %v448, %v750
      %v755 = vld [vmem:[%s12 + $0x4] sm:$0x1]
      %v756 = vld [vmem:[%s12 + $0x5] sm:$0x1]
      %v757 = vsel %vm453, %v751, 0.0
      %758 = vadd.xlane.f32.xlu0 %v757
      %v759 = vpop.xlane.xlu0 %758
      %v760 = vsel %vm453, %v752, 0.0
      %761 = vadd.xlane.f32.xlu0 %v760
      %v762 = vpop.xlane.xlu0 %761
      %v763 = vsel %vm453, %v753, 0.0
      %764 = vadd.xlane.f32.xlu0 %v763
      %v765 = vpop.xlane.xlu0 %764
      %v766 = vsel %vm453, %v754, 0.0
      %767 = vadd.xlane.f32.xlu0 %v766
      %v768 = vpop.xlane.xlu0 %767
      %v769 = vmul.f32 %v759, %v466
      %v770 = vmul.f32 %v762, %v466
      %v771 = vmul.f32 %v765, %v466
      %v772 = vmul.f32 %v768, %v466
      %v773 = vsub.f32 %v751, %v769
      %v774 = vsub.f32 %v752, %v770
      %v775 = vsub.f32 %v753, %v771
      %v776 = vsub.f32 %v754, %v772
      %v777 = vmul.f32 %v773, %v773
      %v778 = vmul.f32 %v774, %v774
      %v779 = vmul.f32 %v775, %v775
      %v780 = vmul.f32 %v776, %v776
      %v781 = vsel %vm453, %v777, 0.0
      %782 = vadd.xlane.f32.xlu0 %v781
      %v783 = vpop.xlane.xlu0 %782
      %v784 = vsel %vm453, %v778, 0.0
      %785 = vadd.xlane.f32.xlu0 %v784
      %v786 = vpop.xlane.xlu0 %785
      %v787 = vsel %vm453, %v779, 0.0
      %788 = vadd.xlane.f32.xlu0 %v787
      %v789 = vpop.xlane.xlu0 %788
      %v790 = vsel %vm453, %v780, 0.0
      %791 = vadd.xlane.f32.xlu0 %v790
      %v792 = vpop.xlane.xlu0 %791
      %v793 = vmul.f32 %v783, %v466
      %v794 = vmul.f32 %v786, %v466
      %v795 = vmul.f32 %v789, %v466
      %v796 = vmul.f32 %v792, %v466
      %v797 = vadd.f32 %v793, 1e-05
      %v798 = vadd.f32 %v794, 1e-05
      %v799 = vadd.f32 %v795, 1e-05
      %v800 = vadd.f32 %v796, 1e-05
      %v801 = vrsqrt.pop %v797
      %v802 = vrsqrt.pop %v798
      %v803 = vrsqrt.pop %v799
      %v804 = vrsqrt.pop %v800
      %v805 = vmul.f32 %v773, %v801
      %v806 = vmul.f32 %v774, %v802
      %v807 = vmul.f32 %v775, %v803
      %v808 = vmul.f32 %v776, %v804
      %v809 = vlaneseq
      %v810 = vshrl.u32 %v809, 7
      %v811 = vsub.s32 0, %v810
      %v812 = vrot.slane %v755, %v811
      %v813 = vmul.f32 %v805, %v812
      %v814 = vmul.f32 %v806, %v812
      %v815 = vmul.f32 %v807, %v812
      %v816 = vmul.f32 %v808, %v812
      %v817 = vlaneseq
      %v818 = vshrl.u32 %v817, 7
      %v819 = vsub.s32 0, %v818
      %v820 = vrot.slane %v756, %v819
      %v821 = vadd.f32 %v813, %v820
      %v822 = vadd.f32 %v814, %v820
      %v823 = vadd.f32 %v815, %v820
      %v824 = vadd.f32 %v816, %v820
      %v825 = vpack.c.bf16 %v822, %v821
      %v826 = vpack.c.bf16 %v824, %v823
      %v827 = vld [vmem:[%s5] sm:$0xff]
      %v828 = vld [vmem:[%s5 + $0x8] sm:$0xf]
      %v829 = vld [vmem:[%s5 + $0xc] sm:$0xff]
      %v830 = vld [vmem:[%s5 + $0x14] sm:$0xf]
      %v831 = vld [vmem:[%s5 + $0x18] sm:$0xff]
      %v832 = vld [vmem:[%s5 + $0x20] sm:$0xf]
      %v833 = vld [vmem:[%s5 + $0x24] sm:$0xff]
      %v834 = vld [vmem:[%s5 + $0x2c] sm:$0xf]
      %v843 = vunpack.c.l.b16 %v827
      %v844 = vunpack.c.h.b16 %v827
      %v845 = vunpack.c.l.b16 %v828
      %v846 = vunpack.c.l.b16 %v829
      %v847 = vunpack.c.h.b16 %v829
      %v848 = vunpack.c.l.b16 %v830
      %v849 = vunpack.c.l.b16 %v831
      %v850 = vunpack.c.h.b16 %v831
      %v851 = vunpack.c.l.b16 %v832
      %v852 = vunpack.c.l.b16 %v833
      %v853 = vunpack.c.h.b16 %v833
      %v854 = vunpack.c.l.b16 %v834
      %v855 = vpack.c.b16 %v846, %v843
      %v856 = vpack.c.b16 %v847, %v844
      %v857 = vpack.c.b16 %v848, %v845
      %v858 = vpack.c.b16 %v852, %v849
      %v859 = vpack.c.b16 %v853, %v850
      %v860 = vpack.c.b16 %v854, %v851
      %v868 = vsel %vm453, %v825, 0
      %v871 = vsel %vm453, %v826, 0
      %873 = vmatprep.subr.bf16.mxu0 0
      %874 = vmatpush1.bf16.msra.mxu0 0
      %875 = vmatprep.subr.bf16.mxu0 0
      %876 = vmatpush1.bf16.msra.mxu0 0
      %877 = vmatprep.subr.bf16.mxu0 0
      %878 = vmatpush1.bf16.msra.mxu0 0
      %879 = vmatprep.subr.bf16.mxu0 0
      %880 = vmatpush1.bf16.msra.mxu0 0
      %881 = vmatprep.subr.bf16.mxu0 0
      %882 = vmatpush1.bf16.msra.mxu0 0
      %883 = vmatprep.subr.bf16.mxu0 0
      %884 = vmatpush1.bf16.msra.mxu0 0
      %885 = vmatprep.subr.bf16.mxu0 %v859
      %886 = vmatpush1.bf16.msra.mxu0 %v858
      %887 = vmatprep.subr.bf16.mxu0 %v856
      %888 = vmatpush1.bf16.msra.mxu0 %v855
      %889 = vmatprep.subr.bf16.mxu0 0
      %890 = vmatpush2.bf16.msra.mxu0 0
      %891 = vmatprep.subr.bf16.mxu0 0
      %892 = vmatpush2.bf16.msra.mxu0 0
      %893 = vmatprep.subr.bf16.mxu0 0
      %894 = vmatpush2.bf16.msra.mxu0 0
      %895 = vmatprep.subr.bf16.mxu0 0
      %896 = vmatpush2.bf16.msra.mxu0 0
      %897 = vmatprep.subr.bf16.mxu0 0
      %898 = vmatpush2.bf16.msra.mxu0 0
      %899 = vmatprep.subr.bf16.mxu0 0
      %900 = vmatpush2.bf16.msra.mxu0 0
      %901 = vmatprep.subr.bf16.mxu0 0
      %902 = vmatpush2.bf16.msra.mxu0 0
      %903 = vmatprep.subr.bf16.mxu0 0
      %904 = vmatpush2.bf16.msra.mxu0 0
      %905 = vmatprep.mubr.bf16.mxu0 0
      %906 = vmatmul.mubr.bf16.gmra.mxu0 %v868
      %v907 = vpop.f32.mrf.mxu0
      %v908 = vadd.f32 0.0, %v907
      %v909 = vpop.f32.mrf.mxu0
      %v910 = vadd.f32 0.0, %v909
      %v911 = vpop.f32.mrf.mxu0
      %v912 = vadd.f32 0.0, %v911
      %v913 = vpop.f32.mrf.mxu0
      %v914 = vadd.f32 0.0, %v913
      %915 = vmatprep.mubr.bf16.mxu0 0
      %916 = vmatmul.mubr.bf16.gmra.mxu0 %v871
      %v917 = vpop.f32.mrf.mxu0
      %v918 = vadd.f32 0.0, %v917
      %v919 = vpop.f32.mrf.mxu0
      %v920 = vadd.f32 0.0, %v919
      %v921 = vpop.f32.mrf.mxu0
      %v922 = vadd.f32 0.0, %v921
      %v923 = vpop.f32.mrf.mxu0
      %v924 = vadd.f32 0.0, %v923
      %925 = vdwg.mxu0
      %926 = vmatprep.subr.bf16.mxu0 0
      %927 = vmatpush1.bf16.msra.mxu0 0
      %928 = vmatprep.subr.bf16.mxu0 0
      %929 = vmatpush1.bf16.msra.mxu0 0
      %930 = vmatprep.subr.bf16.mxu0 0
      %931 = vmatpush1.bf16.msra.mxu0 0
      %932 = vmatprep.subr.bf16.mxu0 0
      %933 = vmatpush1.bf16.msra.mxu0 0
      %934 = vmatprep.subr.bf16.mxu0 0
      %935 = vmatpush1.bf16.msra.mxu0 0
      %936 = vmatprep.subr.bf16.mxu0 0
      %937 = vmatpush1.bf16.msra.mxu0 0
      %938 = vmatprep.subr.bf16.mxu0 0
      %939 = vmatpush1.bf16.msra.mxu0 %v860
      %940 = vmatprep.subr.bf16.mxu0 0
      %941 = vmatpush1.bf16.msra.mxu0 %v857
      %942 = vmatprep.subr.bf16.mxu0 0
      %943 = vmatpush2.bf16.msra.mxu0 0
      %944 = vmatprep.subr.bf16.mxu0 0
      %945 = vmatpush2.bf16.msra.mxu0 0
      %946 = vmatprep.subr.bf16.mxu0 0
      %947 = vmatpush2.bf16.msra.mxu0 0
      %948 = vmatprep.subr.bf16.mxu0 0
      %949 = vmatpush2.bf16.msra.mxu0 0
      %950 = vmatprep.subr.bf16.mxu0 0
      %951 = vmatpush2.bf16.msra.mxu0 0
      %952 = vmatprep.subr.bf16.mxu0 0
      %953 = vmatpush2.bf16.msra.mxu0 0
      %954 = vmatprep.subr.bf16.mxu0 0
      %955 = vmatpush2.bf16.msra.mxu0 0
      %956 = vmatprep.subr.bf16.mxu0 0
      %957 = vmatpush2.bf16.msra.mxu0 0
      %958 = vmatprep.mubr.bf16.mxu0 0
      %959 = vmatmul.mubr.bf16.gmra.mxu0 %v868
      %v960 = vpop.f32.mrf.mxu0
      %v961 = vadd.f32 0.0, %v960
      %v962 = vpop.f32.mrf.mxu0
      %v963 = vpop.f32.mrf.mxu0
      %v964 = vadd.f32 0.0, %v963
      %v965 = vpop.f32.mrf.mxu0
      %966 = vmatprep.mubr.bf16.mxu0 0
      %967 = vmatmul.mubr.bf16.gmra.mxu0 %v871
      %v968 = vpop.f32.mrf.mxu0
      %v969 = vadd.f32 0.0, %v968
      %v970 = vpop.f32.mrf.mxu0
      %v971 = vpop.f32.mrf.mxu0
      %v972 = vadd.f32 0.0, %v971
      %v973 = vpop.f32.mrf.mxu0
      %974 = vdwg.mxu0
      %v975 = vld [vmem:[%s1] sm:$0xff]
      %v976 = vld [vmem:[%s1 + $0x8] sm:$0xff]
      %v977 = vld [vmem:[%s2] sm:$0xff]
      %v978 = vld [vmem:[%s2 + $0x8] sm:$0xff]
      %v979 = vmul.f32 %v908, %v975
      %v980 = vmul.f32 %v912, %v976
      %983 = vrot.lane.b32.xlu0 %v977, 64
      %v984 = vpop.permute.xlu0 %983
      %985 = vrot.lane.b32.xlu0 %v978, 64
      %v986 = vpop.permute.xlu0 %985
      %v989 = vmul.f32 %v908, %v984
      %v990 = vmul.f32 %v912, %v986
      %993 = vrot.lane.b32.xlu0 %v989, 64
      %v994 = vpop.permute.xlu0 %993
      %995 = vrot.lane.b32.xlu0 %v990, 64
      %v996 = vpop.permute.xlu0 %995
      %v999 = vadd.f32 %v979, %v994
      %v1000 = vadd.f32 %v980, %v996
      %v1001 = vmul.f32 %v910, %v975
      %v1002 = vmul.f32 %v914, %v976
      %v1003 = vmul.f32 %v910, %v984
      %v1004 = vmul.f32 %v914, %v986
      %1007 = vrot.lane.b32.xlu0 %v1003, 64
      %v1008 = vpop.permute.xlu0 %1007
      %1009 = vrot.lane.b32.xlu0 %v1004, 64
      %v1010 = vpop.permute.xlu0 %1009
      %v1013 = vadd.f32 %v1001, %v1008
      %v1014 = vadd.f32 %v1002, %v1010
      %v1015 = vpack.c.bf16 %v1000, %v999
      %v1016 = vpack.c.bf16 %v1014, %v1013
      %vm1017 = vcmask 130048
      %v1019 = vsel %vm1017, %v1015, 0
      %v1022 = vsel %vm1017, %v1016, 0
      %1024 = vmatprep.subr.bf16.mxu0 0
      %1025 = vmatpush1.bf16.xpose.msra.mxu0 0
      %1026 = vmatprep.subr.bf16.mxu0 0
      %1027 = vmatpush1.bf16.xpose.msra.mxu0 0
      %1028 = vmatprep.subr.bf16.mxu0 0
      %1029 = vmatpush1.bf16.xpose.msra.mxu0 0
      %1030 = vmatprep.subr.bf16.mxu0 0
      %1031 = vmatpush1.bf16.xpose.msra.mxu0 0
      %1032 = vmatprep.subr.bf16.mxu0 0
      %1033 = vmatpush1.bf16.xpose.msra.mxu0 0
      %1034 = vmatprep.subr.bf16.mxu0 0
      %1035 = vmatpush1.bf16.xpose.msra.mxu0 0
      %1036 = vmatprep.subr.bf16.mxu0 0
      %1037 = vmatpush1.bf16.xpose.msra.mxu0 0
      %1038 = vmatprep.subr.bf16.mxu0 0
      %1039 = vmatpush1.bf16.xpose.msra.mxu0 %v1022
      %1040 = vmatprep.subr.bf16.mxu0 0
      %1041 = vmatpush2.bf16.xpose.msra.mxu0 0
      %1042 = vmatprep.subr.bf16.mxu0 0
      %1043 = vmatpush2.bf16.xpose.msra.mxu0 0
      %1044 = vmatprep.subr.bf16.mxu0 0
      %1045 = vmatpush2.bf16.xpose.msra.mxu0 0
      %1046 = vmatprep.subr.bf16.mxu0 0
      %1047 = vmatpush2.bf16.xpose.msra.mxu0 0
      %1048 = vmatprep.subr.bf16.mxu0 0
      %1049 = vmatpush2.bf16.xpose.msra.mxu0 0
      %1050 = vmatprep.subr.bf16.mxu0 0
      %1051 = vmatpush2.bf16.xpose.msra.mxu0 0
      %1052 = vmatprep.subr.bf16.mxu0 0
      %1053 = vmatpush2.bf16.xpose.msra.mxu0 0
      %1054 = vmatprep.subr.bf16.mxu0 0
      %1055 = vmatpush2.bf16.xpose.msra.mxu0 0
      %1056 = vmatprep.mubr.bf16.mxu0 0
      %1057 = vmatmul.mubr.bf16.gmra.mxu0 %v1019
      %v1058 = vpop.f32.mrf.mxu0
      %v1059 = vadd.f32 0.0, %v1058
      %v1060 = vpop.f32.mrf.mxu0
      %v1061 = vpop.f32.mrf.mxu0
      %v1062 = vadd.f32 0.0, %v1061
      %v1063 = vpop.f32.mrf.mxu0
      %1064 = vdwg.mxu0
      %v1065 = vmul.f32 %v1059, 0.25
      %v1066 = vmul.f32 %v1062, 0.25
      %v1067 = vsel %vm1017, %v1065, -inf
      %1068 = vmax.xlane.f32.xlu0 %v1067
      %v1069 = vpop.xlane.xlu0 %1068
      %v1070 = vsel %vm1017, %v1066, -inf
      %1071 = vmax.xlane.f32.xlu0 %v1070
      %v1072 = vpop.xlane.xlu0 %1071
      %v1073 = vsub.f32 %v1065, %v1069
      %v1074 = vsub.f32 %v1066, %v1072
      %v1075 = vmul.f32 %v1073, 1.442695
      %v1076 = vpow.pop %v1075
      %v1077 = vmul.f32 %v1074, 1.442695
      %v1078 = vpow.pop %v1077
      %v1079 = vsel %vm1017, %v1076, 0.0
      %1080 = vadd.xlane.f32.xlu0 %v1079
      %v1081 = vpop.xlane.xlu0 %1080
      %v1082 = vsel %vm1017, %v1078, 0.0
      %1083 = vadd.xlane.f32.xlu0 %v1082
      %v1084 = vpop.xlane.xlu0 %1083
      %v1085 = vrcp.pop %v1081
      %v1086 = vrcp.pop %v1084
      %v1087 = vmul.f32 %v1076, %v1085
      %v1088 = vmul.f32 %v1078, %v1086
      %v1089 = vpack.c.bf16 %v1088, %v1087
      %v1090 = vpack.c.bf16 %v964, %v961
      %v1092 = vsel %vm1017, %v1089, 0
      %1094 = vmatprep.subr.bf16.mxu0 0
      %1095 = vmatpush1.bf16.msra.mxu0 0
      %1096 = vmatprep.subr.bf16.mxu0 0
      %1097 = vmatpush1.bf16.msra.mxu0 0
      %1098 = vmatprep.subr.bf16.mxu0 0
      %1099 = vmatpush1.bf16.msra.mxu0 0
      %1100 = vmatprep.subr.bf16.mxu0 0
      %1101 = vmatpush1.bf16.msra.mxu0 0
      %1102 = vmatprep.subr.bf16.mxu0 0
      %1103 = vmatpush1.bf16.msra.mxu0 0
      %1104 = vmatprep.subr.bf16.mxu0 0
      %1105 = vmatpush1.bf16.msra.mxu0 0
      %1106 = vmatprep.subr.bf16.mxu0 0
      %1107 = vmatpush1.bf16.msra.mxu0 0
      %1108 = vmatprep.subr.bf16.mxu0 0
      %1109 = vmatpush1.bf16.msra.mxu0 %v1090
      %1110 = vmatprep.subr.bf16.mxu0 0
      %1111 = vmatpush2.bf16.msra.mxu0 0
      %1112 = vmatprep.subr.bf16.mxu0 0
      %1113 = vmatpush2.bf16.msra.mxu0 0
      %1114 = vmatprep.subr.bf16.mxu0 0
      %1115 = vmatpush2.bf16.msra.mxu0 0
      %1116 = vmatprep.subr.bf16.mxu0 0
      %1117 = vmatpush2.bf16.msra.mxu0 0
      %1118 = vmatprep.subr.bf16.mxu0 0
      %1119 = vmatpush2.bf16.msra.mxu0 0
      %1120 = vmatprep.subr.bf16.mxu0 0
      %1121 = vmatpush2.bf16.msra.mxu0 0
      %1122 = vmatprep.subr.bf16.mxu0 0
      %1123 = vmatpush2.bf16.msra.mxu0 0
      %1124 = vmatprep.subr.bf16.mxu0 0
      %1125 = vmatpush2.bf16.msra.mxu0 0
      %1126 = vmatprep.mubr.bf16.mxu0 0
      %1127 = vmatmul.mubr.bf16.gmra.mxu0 %v1092
      %v1128 = vpop.f32.mrf.mxu0
      %v1129 = vadd.f32 0.0, %v1128
      %v1130 = vpop.f32.mrf.mxu0
      %v1131 = vpop.f32.mrf.mxu0
      %v1132 = vadd.f32 0.0, %v1131
      %v1133 = vpop.f32.mrf.mxu0
      %1134 = vdwg.mxu0
      %1135 = vst.msk [vmem:[#allocation2] sm:$0xff] %vm1017, %v1129
      %1136 = vst.msk [vmem:[#allocation2 + $0x8] sm:$0xff] %vm1017, %v1132
      %1139 = vrot.lane.b32.xlu0 %v975, 16
      %v1140 = vpop.permute.xlu0 %1139
      %1141 = vrot.lane.b32.xlu0 %v976, 16
      %v1142 = vpop.permute.xlu0 %1141
      %v1145 = vmul.f32 %v908, %v1140
      %v1146 = vmul.f32 %v912, %v1142
      %1147 = vrot.lane.b32.xlu0 %v977, 80
      %v1148 = vpop.permute.xlu0 %1147
      %1149 = vrot.lane.b32.xlu0 %v978, 80
      %v1150 = vpop.permute.xlu0 %1149
      %v1153 = vmul.f32 %v908, %v1148
      %v1154 = vmul.f32 %v912, %v1150
      %1157 = vrot.lane.b32.xlu0 %v1153, 64
      %v1158 = vpop.permute.xlu0 %1157
      %1159 = vrot.lane.b32.xlu0 %v1154, 64
      %v1160 = vpop.permute.xlu0 %1159
      %v1163 = vadd.f32 %v1145, %v1158
      %v1164 = vadd.f32 %v1146, %v1160
      %v1165 = vmul.f32 %v910, %v1140
      %v1166 = vmul.f32 %v914, %v1142
      %v1167 = vmul.f32 %v910, %v1148
      %v1168 = vmul.f32 %v914, %v1150
      %1171 = vrot.lane.b32.xlu0 %v1167, 64
      %v1172 = vpop.permute.xlu0 %1171
      %1173 = vrot.lane.b32.xlu0 %v1168, 64
      %v1174 = vpop.permute.xlu0 %1173
      %v1177 = vadd.f32 %v1165, %v1172
      %v1178 = vadd.f32 %v1166, %v1174
      %v1179 = vpack.c.bf16 %v1164, %v1163
      %v1180 = vpack.c.bf16 %v1178, %v1177
      %1182 = vrot.lane.b32.xlu0 %v1179, 112
      %v1183 = vpop.permute.xlu0 %1182
      %1185 = vrot.lane.b32.xlu0 %v1180, 112
      %v1186 = vpop.permute.xlu0 %1185
      %v1188 = vsel %vm1017, %v1183, 0
      %v1191 = vsel %vm1017, %v1186, 0
      %1193 = vmatprep.subr.bf16.mxu0 0
      %1194 = vmatpush1.bf16.xpose.msra.mxu0 0
      %1195 = vmatprep.subr.bf16.mxu0 0
      %1196 = vmatpush1.bf16.xpose.msra.mxu0 0
      %1197 = vmatprep.subr.bf16.mxu0 0
      %1198 = vmatpush1.bf16.xpose.msra.mxu0 0
      %1199 = vmatprep.subr.bf16.mxu0 0
      %1200 = vmatpush1.bf16.xpose.msra.mxu0 0
      %1201 = vmatprep.subr.bf16.mxu0 0
      %1202 = vmatpush1.bf16.xpose.msra.mxu0 0
      %1203 = vmatprep.subr.bf16.mxu0 0
      %1204 = vmatpush1.bf16.xpose.msra.mxu0 0
      %1205 = vmatprep.subr.bf16.mxu0 0
      %1206 = vmatpush1.bf16.xpose.msra.mxu0 0
      %1207 = vmatprep.subr.bf16.mxu0 0
      %1208 = vmatpush1.bf16.xpose.msra.mxu0 %v1191
      %1209 = vmatprep.subr.bf16.mxu0 0
      %1210 = vmatpush2.bf16.xpose.msra.mxu0 0
      %1211 = vmatprep.subr.bf16.mxu0 0
      %1212 = vmatpush2.bf16.xpose.msra.mxu0 0
      %1213 = vmatprep.subr.bf16.mxu0 0
      %1214 = vmatpush2.bf16.xpose.msra.mxu0 0
      %1215 = vmatprep.subr.bf16.mxu0 0
      %1216 = vmatpush2.bf16.xpose.msra.mxu0 0
      %1217 = vmatprep.subr.bf16.mxu0 0
      %1218 = vmatpush2.bf16.xpose.msra.mxu0 0
      %1219 = vmatprep.subr.bf16.mxu0 0
      %1220 = vmatpush2.bf16.xpose.msra.mxu0 0
      %1221 = vmatprep.subr.bf16.mxu0 0
      %1222 = vmatpush2.bf16.xpose.msra.mxu0 0
      %1223 = vmatprep.subr.bf16.mxu0 0
      %1224 = vmatpush2.bf16.xpose.msra.mxu0 0
      %1225 = vmatprep.mubr.bf16.mxu0 0
      %1226 = vmatmul.mubr.bf16.gmra.mxu0 %v1188
      %v1227 = vpop.f32.mrf.mxu0
      %v1228 = vadd.f32 0.0, %v1227
      %v1229 = vpop.f32.mrf.mxu0
      %v1230 = vpop.f32.mrf.mxu0
      %v1231 = vadd.f32 0.0, %v1230
      %v1232 = vpop.f32.mrf.mxu0
      %1233 = vdwg.mxu0
      %v1234 = vmul.f32 %v1228, 0.25
      %v1235 = vmul.f32 %v1231, 0.25
      %v1236 = vsel %vm1017, %v1234, -inf
      %1237 = vmax.xlane.f32.xlu0 %v1236
      %v1238 = vpop.xlane.xlu0 %1237
      %v1239 = vsel %vm1017, %v1235, -inf
      %1240 = vmax.xlane.f32.xlu0 %v1239
      %v1241 = vpop.xlane.xlu0 %1240
      %v1242 = vsub.f32 %v1234, %v1238
      %v1243 = vsub.f32 %v1235, %v1241
      %v1244 = vmul.f32 %v1242, 1.442695
      %v1245 = vpow.pop %v1244
      %v1246 = vmul.f32 %v1243, 1.442695
      %v1247 = vpow.pop %v1246
      %v1248 = vsel %vm1017, %v1245, 0.0
      %1249 = vadd.xlane.f32.xlu0 %v1248
      %v1250 = vpop.xlane.xlu0 %1249
      %v1251 = vsel %vm1017, %v1247, 0.0
      %1252 = vadd.xlane.f32.xlu0 %v1251
      %v1253 = vpop.xlane.xlu0 %1252
      %v1254 = vrcp.pop %v1250
      %v1255 = vrcp.pop %v1253
      %v1256 = vmul.f32 %v1245, %v1254
      %v1257 = vmul.f32 %v1247, %v1255
      %v1258 = vpack.c.bf16 %v1257, %v1256
      %1260 = vrot.lane.b32.xlu0 %v1090, 112
      %v1261 = vpop.permute.xlu0 %1260
      %v1264 = vsel %vm1017, %v1258, 0
      %1266 = vmatprep.subr.bf16.mxu0 0
      %1267 = vmatpush1.bf16.msra.mxu0 0
      %1268 = vmatprep.subr.bf16.mxu0 0
      %1269 = vmatpush1.bf16.msra.mxu0 0
      %1270 = vmatprep.subr.bf16.mxu0 0
      %1271 = vmatpush1.bf16.msra.mxu0 0
      %1272 = vmatprep.subr.bf16.mxu0 0
      %1273 = vmatpush1.bf16.msra.mxu0 0
      %1274 = vmatprep.subr.bf16.mxu0 0
      %1275 = vmatpush1.bf16.msra.mxu0 0
      %1276 = vmatprep.subr.bf16.mxu0 0
      %1277 = vmatpush1.bf16.msra.mxu0 0
      %1278 = vmatprep.subr.bf16.mxu0 0
      %1279 = vmatpush1.bf16.msra.mxu0 0
      %1280 = vmatprep.subr.bf16.mxu0 0
      %1281 = vmatpush1.bf16.msra.mxu0 %v1261
      %1282 = vmatprep.subr.bf16.mxu0 0
      %1283 = vmatpush2.bf16.msra.mxu0 0
      %1284 = vmatprep.subr.bf16.mxu0 0
      %1285 = vmatpush2.bf16.msra.mxu0 0
      %1286 = vmatprep.subr.bf16.mxu0 0
      %1287 = vmatpush2.bf16.msra.mxu0 0
      %1288 = vmatprep.subr.bf16.mxu0 0
      %1289 = vmatpush2.bf16.msra.mxu0 0
      %1290 = vmatprep.subr.bf16.mxu0 0
      %1291 = vmatpush2.bf16.msra.mxu0 0
      %1292 = vmatprep.subr.bf16.mxu0 0
      %1293 = vmatpush2.bf16.msra.mxu0 0
      %1294 = vmatprep.subr.bf16.mxu0 0
      %1295 = vmatpush2.bf16.msra.mxu0 0
      %1296 = vmatprep.subr.bf16.mxu0 0
      %1297 = vmatpush2.bf16.msra.mxu0 0
      %1298 = vmatprep.mubr.bf16.mxu0 0
      %1299 = vmatmul.mubr.bf16.gmra.mxu0 %v1264
      %v1300 = vpop.f32.mrf.mxu0
      %v1301 = vadd.f32 0.0, %v1300
      %v1302 = vpop.f32.mrf.mxu0
      %v1303 = vpop.f32.mrf.mxu0
      %v1304 = vadd.f32 0.0, %v1303
      %v1305 = vpop.f32.mrf.mxu0
      %1306 = vdwg.mxu0
      %1309 = vrot.lane.b32.xlu0 %v1301, 16
      %v1310 = vpop.permute.xlu0 %1309
      %1311 = vrot.lane.b32.xlu0 %v1304, 16
      %v1312 = vpop.permute.xlu0 %1311
      %vm1315 = vcmask 261248
      %1316 = vst.msk [vmem:[#allocation2] sm:$0xff] %vm1315, %v1310
      %1317 = vst.msk [vmem:[#allocation2 + $0x8] sm:$0xff] %vm1315, %v1312
      %1318 = vrot.lane.b32.xlu0 %v975, 32
      %v1319 = vpop.permute.xlu0 %1318
      %1320 = vrot.lane.b32.xlu0 %v976, 32
      %v1321 = vpop.permute.xlu0 %1320
      %v1324 = vmul.f32 %v908, %v1319
      %v1325 = vmul.f32 %v912, %v1321
      %1326 = vrot.lane.b32.xlu0 %v977, 96
      %v1327 = vpop.permute.xlu0 %1326
      %1328 = vrot.lane.b32.xlu0 %v978, 96
      %v1329 = vpop.permute.xlu0 %1328
      %v1332 = vmul.f32 %v908, %v1327
      %v1333 = vmul.f32 %v912, %v1329
      %1336 = vrot.lane.b32.xlu0 %v1332, 64
      %v1337 = vpop.permute.xlu0 %1336
      %1338 = vrot.lane.b32.xlu0 %v1333, 64
      %v1339 = vpop.permute.xlu0 %1338
      %v1342 = vadd.f32 %v1324, %v1337
      %v1343 = vadd.f32 %v1325, %v1339
      %v1344 = vmul.f32 %v910, %v1319
      %v1345 = vmul.f32 %v914, %v1321
      %v1346 = vmul.f32 %v910, %v1327
      %v1347 = vmul.f32 %v914, %v1329
      %1350 = vrot.lane.b32.xlu0 %v1346, 64
      %v1351 = vpop.permute.xlu0 %1350
      %1352 = vrot.lane.b32.xlu0 %v1347, 64
      %v1353 = vpop.permute.xlu0 %1352
      %v1356 = vadd.f32 %v1344, %v1351
      %v1357 = vadd.f32 %v1345, %v1353
      %v1358 = vpack.c.bf16 %v1343, %v1342
      %v1359 = vpack.c.bf16 %v1357, %v1356
      %1361 = vrot.lane.b32.xlu0 %v1358, 96
      %v1362 = vpop.permute.xlu0 %1361
      %1364 = vrot.lane.b32.xlu0 %v1359, 96
      %v1365 = vpop.permute.xlu0 %1364
      %v1367 = vsel %vm1017, %v1362, 0
      %v1370 = vsel %vm1017, %v1365, 0
      %1372 = vmatprep.subr.bf16.mxu0 0
      %1373 = vmatpush1.bf16.xpose.msra.mxu0 0
      %1374 = vmatprep.subr.bf16.mxu0 0
      %1375 = vmatpush1.bf16.xpose.msra.mxu0 0
      %1376 = vmatprep.subr.bf16.mxu0 0
      %1377 = vmatpush1.bf16.xpose.msra.mxu0 0
      %1378 = vmatprep.subr.bf16.mxu0 0
      %1379 = vmatpush1.bf16.xpose.msra.mxu0 0
      %1380 = vmatprep.subr.bf16.mxu0 0
      %1381 = vmatpush1.bf16.xpose.msra.mxu0 0
      %1382 = vmatprep.subr.bf16.mxu0 0
      %1383 = vmatpush1.bf16.xpose.msra.mxu0 0
      %1384 = vmatprep.subr.bf16.mxu0 0
      %1385 = vmatpush1.bf16.xpose.msra.mxu0 0
      %1386 = vmatprep.subr.bf16.mxu0 0
      %1387 = vmatpush1.bf16.xpose.msra.mxu0 %v1370
      %1388 = vmatprep.subr.bf16.mxu0 0
      %1389 = vmatpush2.bf16.xpose.msra.mxu0 0
      %1390 = vmatprep.subr.bf16.mxu0 0
      %1391 = vmatpush2.bf16.xpose.msra.mxu0 0
      %1392 = vmatprep.subr.bf16.mxu0 0
      %1393 = vmatpush2.bf16.xpose.msra.mxu0 0
      %1394 = vmatprep.subr.bf16.mxu0 0
      %1395 = vmatpush2.bf16.xpose.msra.mxu0 0
      %1396 = vmatprep.subr.bf16.mxu0 0
      %1397 = vmatpush2.bf16.xpose.msra.mxu0 0
      %1398 = vmatprep.subr.bf16.mxu0 0
      %1399 = vmatpush2.bf16.xpose.msra.mxu0 0
      %1400 = vmatprep.subr.bf16.mxu0 0
      %1401 = vmatpush2.bf16.xpose.msra.mxu0 0
      %1402 = vmatprep.subr.bf16.mxu0 0
      %1403 = vmatpush2.bf16.xpose.msra.mxu0 0
      %1404 = vmatprep.mubr.bf16.mxu0 0
      %1405 = vmatmul.mubr.bf16.gmra.mxu0 %v1367
      %v1406 = vpop.f32.mrf.mxu0
      %v1407 = vadd.f32 0.0, %v1406
      %v1408 = vpop.f32.mrf.mxu0
      %v1409 = vpop.f32.mrf.mxu0
      %v1410 = vadd.f32 0.0, %v1409
      %v1411 = vpop.f32.mrf.mxu0
      %1412 = vdwg.mxu0
      %v1413 = vmul.f32 %v1407, 0.25
      %v1414 = vmul.f32 %v1410, 0.25
      %v1415 = vsel %vm1017, %v1413, -inf
      %1416 = vmax.xlane.f32.xlu0 %v1415
      %v1417 = vpop.xlane.xlu0 %1416
      %v1418 = vsel %vm1017, %v1414, -inf
      %1419 = vmax.xlane.f32.xlu0 %v1418
      %v1420 = vpop.xlane.xlu0 %1419
      %v1421 = vsub.f32 %v1413, %v1417
      %v1422 = vsub.f32 %v1414, %v1420
      %v1423 = vmul.f32 %v1421, 1.442695
      %v1424 = vpow.pop %v1423
      %v1425 = vmul.f32 %v1422, 1.442695
      %v1426 = vpow.pop %v1425
      %v1427 = vsel %vm1017, %v1424, 0.0
      %1428 = vadd.xlane.f32.xlu0 %v1427
      %v1429 = vpop.xlane.xlu0 %1428
      %v1430 = vsel %vm1017, %v1426, 0.0
      %1431 = vadd.xlane.f32.xlu0 %v1430
      %v1432 = vpop.xlane.xlu0 %1431
      %v1433 = vrcp.pop %v1429
      %v1434 = vrcp.pop %v1432
      %v1435 = vmul.f32 %v1424, %v1433
      %v1436 = vmul.f32 %v1426, %v1434
      %v1437 = vpack.c.bf16 %v1436, %v1435
      %1438 = vrot.lane.b32.xlu0 %v1090, 96
      %v1439 = vpop.permute.xlu0 %1438
      %v1442 = vsel %vm1017, %v1437, 0
      %1444 = vmatprep.subr.bf16.mxu0 0
      %1445 = vmatpush1.bf16.msra.mxu0 0
      %1446 = vmatprep.subr.bf16.mxu0 0
      %1447 = vmatpush1.bf16.msra.mxu0 0
      %1448 = vmatprep.subr.bf16.mxu0 0
      %1449 = vmatpush1.bf16.msra.mxu0 0
      %1450 = vmatprep.subr.bf16.mxu0 0
      %1451 = vmatpush1.bf16.msra.mxu0 0
      %1452 = vmatprep.subr.bf16.mxu0 0
      %1453 = vmatpush1.bf16.msra.mxu0 0
      %1454 = vmatprep.subr.bf16.mxu0 0
      %1455 = vmatpush1.bf16.msra.mxu0 0
      %1456 = vmatprep.subr.bf16.mxu0 0
      %1457 = vmatpush1.bf16.msra.mxu0 0
      %1458 = vmatprep.subr.bf16.mxu0 0
      %1459 = vmatpush1.bf16.msra.mxu0 %v1439
      %1460 = vmatprep.subr.bf16.mxu0 0
      %1461 = vmatpush2.bf16.msra.mxu0 0
      %1462 = vmatprep.subr.bf16.mxu0 0
      %1463 = vmatpush2.bf16.msra.mxu0 0
      %1464 = vmatprep.subr.bf16.mxu0 0
      %1465 = vmatpush2.bf16.msra.mxu0 0
      %1466 = vmatprep.subr.bf16.mxu0 0
      %1467 = vmatpush2.bf16.msra.mxu0 0
      %1468 = vmatprep.subr.bf16.mxu0 0
      %1469 = vmatpush2.bf16.msra.mxu0 0
      %1470 = vmatprep.subr.bf16.mxu0 0
      %1471 = vmatpush2.bf16.msra.mxu0 0
      %1472 = vmatprep.subr.bf16.mxu0 0
      %1473 = vmatpush2.bf16.msra.mxu0 0
      %1474 = vmatprep.subr.bf16.mxu0 0
      %1475 = vmatpush2.bf16.msra.mxu0 0
      %1476 = vmatprep.mubr.bf16.mxu0 0
      %1477 = vmatmul.mubr.bf16.gmra.mxu0 %v1442
      %v1478 = vpop.f32.mrf.mxu0
      %v1479 = vadd.f32 0.0, %v1478
      %v1480 = vpop.f32.mrf.mxu0
      %v1481 = vpop.f32.mrf.mxu0
      %v1482 = vadd.f32 0.0, %v1481
      %v1483 = vpop.f32.mrf.mxu0
      %1484 = vdwg.mxu0
      %1487 = vrot.lane.b32.xlu0 %v1479, 32
      %v1488 = vpop.permute.xlu0 %1487
      %1489 = vrot.lane.b32.xlu0 %v1482, 32
      %v1490 = vpop.permute.xlu0 %1489
      %vm1493 = vcmask 392448
      %1494 = vst.msk [vmem:[#allocation2] sm:$0xff] %vm1493, %v1488
      %1495 = vst.msk [vmem:[#allocation2 + $0x8] sm:$0xff] %vm1493, %v1490
      %1496 = vrot.lane.b32.xlu0 %v975, 48
      %v1497 = vpop.permute.xlu0 %1496
      %1498 = vrot.lane.b32.xlu0 %v976, 48
      %v1499 = vpop.permute.xlu0 %1498
      %v1502 = vmul.f32 %v908, %v1497
      %v1503 = vmul.f32 %v912, %v1499
      %1504 = vrot.lane.b32.xlu0 %v977, 112
      %v1505 = vpop.permute.xlu0 %1504
      %1506 = vrot.lane.b32.xlu0 %v978, 112
      %v1507 = vpop.permute.xlu0 %1506
      %v1510 = vmul.f32 %v908, %v1505
      %v1511 = vmul.f32 %v912, %v1507
      %1514 = vrot.lane.b32.xlu0 %v1510, 64
      %v1515 = vpop.permute.xlu0 %1514
      %1516 = vrot.lane.b32.xlu0 %v1511, 64
      %v1517 = vpop.permute.xlu0 %1516
      %v1520 = vadd.f32 %v1502, %v1515
      %v1521 = vadd.f32 %v1503, %v1517
      %v1522 = vmul.f32 %v910, %v1497
      %v1523 = vmul.f32 %v914, %v1499
      %v1524 = vmul.f32 %v910, %v1505
      %v1525 = vmul.f32 %v914, %v1507
      %1528 = vrot.lane.b32.xlu0 %v1524, 64
      %v1529 = vpop.permute.xlu0 %1528
      %1530 = vrot.lane.b32.xlu0 %v1525, 64
      %v1531 = vpop.permute.xlu0 %1530
      %v1534 = vadd.f32 %v1522, %v1529
      %v1535 = vadd.f32 %v1523, %v1531
      %v1536 = vpack.c.bf16 %v1521, %v1520
      %v1537 = vpack.c.bf16 %v1535, %v1534
      %1539 = vrot.lane.b32.xlu0 %v1536, 80
      %v1540 = vpop.permute.xlu0 %1539
      %1542 = vrot.lane.b32.xlu0 %v1537, 80
      %v1543 = vpop.permute.xlu0 %1542
      %v1545 = vsel %vm1017, %v1540, 0
      %v1548 = vsel %vm1017, %v1543, 0
      %1550 = vmatprep.subr.bf16.mxu0 0
      %1551 = vmatpush1.bf16.xpose.msra.mxu0 0
      %1552 = vmatprep.subr.bf16.mxu0 0
      %1553 = vmatpush1.bf16.xpose.msra.mxu0 0
      %1554 = vmatprep.subr.bf16.mxu0 0
      %1555 = vmatpush1.bf16.xpose.msra.mxu0 0
      %1556 = vmatprep.subr.bf16.mxu0 0
      %1557 = vmatpush1.bf16.xpose.msra.mxu0 0
      %1558 = vmatprep.subr.bf16.mxu0 0
      %1559 = vmatpush1.bf16.xpose.msra.mxu0 0
      %1560 = vmatprep.subr.bf16.mxu0 0
      %1561 = vmatpush1.bf16.xpose.msra.mxu0 0
      %1562 = vmatprep.subr.bf16.mxu0 0
      %1563 = vmatpush1.bf16.xpose.msra.mxu0 0
      %1564 = vmatprep.subr.bf16.mxu0 0
      %1565 = vmatpush1.bf16.xpose.msra.mxu0 %v1548
      %1566 = vmatprep.subr.bf16.mxu0 0
      %1567 = vmatpush2.bf16.xpose.msra.mxu0 0
      %1568 = vmatprep.subr.bf16.mxu0 0
      %1569 = vmatpush2.bf16.xpose.msra.mxu0 0
      %1570 = vmatprep.subr.bf16.mxu0 0
      %1571 = vmatpush2.bf16.xpose.msra.mxu0 0
      %1572 = vmatprep.subr.bf16.mxu0 0
      %1573 = vmatpush2.bf16.xpose.msra.mxu0 0
      %1574 = vmatprep.subr.bf16.mxu0 0
      %1575 = vmatpush2.bf16.xpose.msra.mxu0 0
      %1576 = vmatprep.subr.bf16.mxu0 0
      %1577 = vmatpush2.bf16.xpose.msra.mxu0 0
      %1578 = vmatprep.subr.bf16.mxu0 0
      %1579 = vmatpush2.bf16.xpose.msra.mxu0 0
      %1580 = vmatprep.subr.bf16.mxu0 0
      %1581 = vmatpush2.bf16.xpose.msra.mxu0 0
      %1582 = vmatprep.mubr.bf16.mxu0 0
      %1583 = vmatmul.mubr.bf16.gmra.mxu0 %v1545
      %v1584 = vpop.f32.mrf.mxu0
      %v1585 = vadd.f32 0.0, %v1584
      %v1586 = vpop.f32.mrf.mxu0
      %v1587 = vpop.f32.mrf.mxu0
      %v1588 = vadd.f32 0.0, %v1587
      %v1589 = vpop.f32.mrf.mxu0
      %1590 = vdwg.mxu0
      %v1591 = vmul.f32 %v1585, 0.25
      %v1592 = vmul.f32 %v1588, 0.25
      %v1593 = vsel %vm1017, %v1591, -inf
      %1594 = vmax.xlane.f32.xlu0 %v1593
      %v1595 = vpop.xlane.xlu0 %1594
      %v1596 = vsel %vm1017, %v1592, -inf
      %1597 = vmax.xlane.f32.xlu0 %v1596
      %v1598 = vpop.xlane.xlu0 %1597
      %v1599 = vsub.f32 %v1591, %v1595
      %v1600 = vsub.f32 %v1592, %v1598
      %v1601 = vmul.f32 %v1599, 1.442695
      %v1602 = vpow.pop %v1601
      %v1603 = vmul.f32 %v1600, 1.442695
      %v1604 = vpow.pop %v1603
      %v1605 = vsel %vm1017, %v1602, 0.0
      %1606 = vadd.xlane.f32.xlu0 %v1605
      %v1607 = vpop.xlane.xlu0 %1606
      %v1608 = vsel %vm1017, %v1604, 0.0
      %1609 = vadd.xlane.f32.xlu0 %v1608
      %v1610 = vpop.xlane.xlu0 %1609
      %v1611 = vrcp.pop %v1607
      %v1612 = vrcp.pop %v1610
      %v1613 = vmul.f32 %v1602, %v1611
      %v1614 = vmul.f32 %v1604, %v1612
      %v1615 = vpack.c.bf16 %v1614, %v1613
      %1616 = vrot.lane.b32.xlu0 %v1090, 80
      %v1617 = vpop.permute.xlu0 %1616
      %v1620 = vsel %vm1017, %v1615, 0
      %1622 = vmatprep.subr.bf16.mxu0 0
      %1623 = vmatpush1.bf16.msra.mxu0 0
      %1624 = vmatprep.subr.bf16.mxu0 0
      %1625 = vmatpush1.bf16.msra.mxu0 0
      %1626 = vmatprep.subr.bf16.mxu0 0
      %1627 = vmatpush1.bf16.msra.mxu0 0
      %1628 = vmatprep.subr.bf16.mxu0 0
      %1629 = vmatpush1.bf16.msra.mxu0 0
      %1630 = vmatprep.subr.bf16.mxu0 0
      %1631 = vmatpush1.bf16.msra.mxu0 0
      %1632 = vmatprep.subr.bf16.mxu0 0
      %1633 = vmatpush1.bf16.msra.mxu0 0
      %1634 = vmatprep.subr.bf16.mxu0 0
      %1635 = vmatpush1.bf16.msra.mxu0 0
      %1636 = vmatprep.subr.bf16.mxu0 0
      %1637 = vmatpush1.bf16.msra.mxu0 %v1617
      %1638 = vmatprep.subr.bf16.mxu0 0
      %1639 = vmatpush2.bf16.msra.mxu0 0
      %1640 = vmatprep.subr.bf16.mxu0 0
      %1641 = vmatpush2.bf16.msra.mxu0 0
      %1642 = vmatprep.subr.bf16.mxu0 0
      %1643 = vmatpush2.bf16.msra.mxu0 0
      %1644 = vmatprep.subr.bf16.mxu0 0
      %1645 = vmatpush2.bf16.msra.mxu0 0
      %1646 = vmatprep.subr.bf16.mxu0 0
      %1647 = vmatpush2.bf16.msra.mxu0 0
      %1648 = vmatprep.subr.bf16.mxu0 0
      %1649 = vmatpush2.bf16.msra.mxu0 0
      %1650 = vmatprep.subr.bf16.mxu0 0
      %1651 = vmatpush2.bf16.msra.mxu0 0
      %1652 = vmatprep.subr.bf16.mxu0 0
      %1653 = vmatpush2.bf16.msra.mxu0 0
      %1654 = vmatprep.mubr.bf16.mxu0 0
      %1655 = vmatmul.mubr.bf16.gmra.mxu0 %v1620
      %v1656 = vpop.f32.mrf.mxu0
      %v1657 = vadd.f32 0.0, %v1656
      %v1658 = vpop.f32.mrf.mxu0
      %v1659 = vpop.f32.mrf.mxu0
      %v1660 = vadd.f32 0.0, %v1659
      %v1661 = vpop.f32.mrf.mxu0
      %1662 = vdwg.mxu0
      %1665 = vrot.lane.b32.xlu0 %v1657, 48
      %v1666 = vpop.permute.xlu0 %1665
      %1667 = vrot.lane.b32.xlu0 %v1660, 48
      %v1668 = vpop.permute.xlu0 %1667
      %vm1671 = vcmask 523648
      %1672 = vst.msk [vmem:[#allocation2] sm:$0xff] %vm1671, %v1666
      %1673 = vst.msk [vmem:[#allocation2 + $0x8] sm:$0xff] %vm1671, %v1668
      %v1674 = vmul.f32 %v918, %v975
      %v1675 = vmul.f32 %v922, %v976
      %v1676 = vmul.f32 %v918, %v984
      %v1677 = vmul.f32 %v922, %v986
      %1680 = vrot.lane.b32.xlu0 %v1676, 64
      %v1681 = vpop.permute.xlu0 %1680
      %1682 = vrot.lane.b32.xlu0 %v1677, 64
      %v1683 = vpop.permute.xlu0 %1682
      %v1686 = vadd.f32 %v1674, %v1681
      %v1687 = vadd.f32 %v1675, %v1683
      %v1688 = vmul.f32 %v920, %v975
      %v1689 = vmul.f32 %v924, %v976
      %v1690 = vmul.f32 %v920, %v984
      %v1691 = vmul.f32 %v924, %v986
      %1694 = vrot.lane.b32.xlu0 %v1690, 64
      %v1695 = vpop.permute.xlu0 %1694
      %1696 = vrot.lane.b32.xlu0 %v1691, 64
      %v1697 = vpop.permute.xlu0 %1696
      %v1700 = vadd.f32 %v1688, %v1695
      %v1701 = vadd.f32 %v1689, %v1697
      %v1702 = vpack.c.bf16 %v1687, %v1686
      %v1703 = vpack.c.bf16 %v1701, %v1700
      %v1705 = vsel %vm1017, %v1702, 0
      %v1708 = vsel %vm1017, %v1703, 0
      %1710 = vmatprep.subr.bf16.mxu0 0
      %1711 = vmatpush1.bf16.xpose.msra.mxu0 0
      %1712 = vmatprep.subr.bf16.mxu0 0
      %1713 = vmatpush1.bf16.xpose.msra.mxu0 0
      %1714 = vmatprep.subr.bf16.mxu0 0
      %1715 = vmatpush1.bf16.xpose.msra.mxu0 0
      %1716 = vmatprep.subr.bf16.mxu0 0
      %1717 = vmatpush1.bf16.xpose.msra.mxu0 0
      %1718 = vmatprep.subr.bf16.mxu0 0
      %1719 = vmatpush1.bf16.xpose.msra.mxu0 0
      %1720 = vmatprep.subr.bf16.mxu0 0
      %1721 = vmatpush1.bf16.xpose.msra.mxu0 0
      %1722 = vmatprep.subr.bf16.mxu0 0
      %1723 = vmatpush1.bf16.xpose.msra.mxu0 0
      %1724 = vmatprep.subr.bf16.mxu0 0
      %1725 = vmatpush1.bf16.xpose.msra.mxu0 %v1708
      %1726 = vmatprep.subr.bf16.mxu0 0
      %1727 = vmatpush2.bf16.xpose.msra.mxu0 0
      %1728 = vmatprep.subr.bf16.mxu0 0
      %1729 = vmatpush2.bf16.xpose.msra.mxu0 0
      %1730 = vmatprep.subr.bf16.mxu0 0
      %1731 = vmatpush2.bf16.xpose.msra.mxu0 0
      %1732 = vmatprep.subr.bf16.mxu0 0
      %1733 = vmatpush2.bf16.xpose.msra.mxu0 0
      %1734 = vmatprep.subr.bf16.mxu0 0
      %1735 = vmatpush2.bf16.xpose.msra.mxu0 0
      %1736 = vmatprep.subr.bf16.mxu0 0
      %1737 = vmatpush2.bf16.xpose.msra.mxu0 0
      %1738 = vmatprep.subr.bf16.mxu0 0
      %1739 = vmatpush2.bf16.xpose.msra.mxu0 0
      %1740 = vmatprep.subr.bf16.mxu0 0
      %1741 = vmatpush2.bf16.xpose.msra.mxu0 0
      %1742 = vmatprep.mubr.bf16.mxu0 0
      %1743 = vmatmul.mubr.bf16.gmra.mxu0 %v1705
      %v1744 = vpop.f32.mrf.mxu0
      %v1745 = vadd.f32 0.0, %v1744
      %v1746 = vpop.f32.mrf.mxu0
      %v1747 = vpop.f32.mrf.mxu0
      %v1748 = vadd.f32 0.0, %v1747
      %v1749 = vpop.f32.mrf.mxu0
      %1750 = vdwg.mxu0
      %v1751 = vmul.f32 %v1745, 0.25
      %v1752 = vmul.f32 %v1748, 0.25
      %v1753 = vsel %vm1017, %v1751, -inf
      %1754 = vmax.xlane.f32.xlu0 %v1753
      %v1755 = vpop.xlane.xlu0 %1754
      %v1756 = vsel %vm1017, %v1752, -inf
      %1757 = vmax.xlane.f32.xlu0 %v1756
      %v1758 = vpop.xlane.xlu0 %1757
      %v1759 = vsub.f32 %v1751, %v1755
      %v1760 = vsub.f32 %v1752, %v1758
      %v1761 = vmul.f32 %v1759, 1.442695
      %v1762 = vpow.pop %v1761
      %v1763 = vmul.f32 %v1760, 1.442695
      %v1764 = vpow.pop %v1763
      %v1765 = vsel %vm1017, %v1762, 0.0
      %1766 = vadd.xlane.f32.xlu0 %v1765
      %v1767 = vpop.xlane.xlu0 %1766
      %v1768 = vsel %vm1017, %v1764, 0.0
      %1769 = vadd.xlane.f32.xlu0 %v1768
      %v1770 = vpop.xlane.xlu0 %1769
      %v1771 = vrcp.pop %v1767
      %v1772 = vrcp.pop %v1770
      %v1773 = vmul.f32 %v1762, %v1771
      %v1774 = vmul.f32 %v1764, %v1772
      %v1775 = vpack.c.bf16 %v1774, %v1773
      %v1776 = vpack.c.bf16 %v972, %v969
      %v1778 = vsel %vm1017, %v1775, 0
      %1780 = vmatprep.subr.bf16.mxu0 0
      %1781 = vmatpush1.bf16.msra.mxu0 0
      %1782 = vmatprep.subr.bf16.mxu0 0
      %1783 = vmatpush1.bf16.msra.mxu0 0
      %1784 = vmatprep.subr.bf16.mxu0 0
      %1785 = vmatpush1.bf16.msra.mxu0 0
      %1786 = vmatprep.subr.bf16.mxu0 0
      %1787 = vmatpush1.bf16.msra.mxu0 0
      %1788 = vmatprep.subr.bf16.mxu0 0
      %1789 = vmatpush1.bf16.msra.mxu0 0
      %1790 = vmatprep.subr.bf16.mxu0 0
      %1791 = vmatpush1.bf16.msra.mxu0 0
      %1792 = vmatprep.subr.bf16.mxu0 0
      %1793 = vmatpush1.bf16.msra.mxu0 0
      %1794 = vmatprep.subr.bf16.mxu0 0
      %1795 = vmatpush1.bf16.msra.mxu0 %v1776
      %1796 = vmatprep.subr.bf16.mxu0 0
      %1797 = vmatpush2.bf16.msra.mxu0 0
      %1798 = vmatprep.subr.bf16.mxu0 0
      %1799 = vmatpush2.bf16.msra.mxu0 0
      %1800 = vmatprep.subr.bf16.mxu0 0
      %1801 = vmatpush2.bf16.msra.mxu0 0
      %1802 = vmatprep.subr.bf16.mxu0 0
      %1803 = vmatpush2.bf16.msra.mxu0 0
      %1804 = vmatprep.subr.bf16.mxu0 0
      %1805 = vmatpush2.bf16.msra.mxu0 0
      %1806 = vmatprep.subr.bf16.mxu0 0
      %1807 = vmatpush2.bf16.msra.mxu0 0
      %1808 = vmatprep.subr.bf16.mxu0 0
      %1809 = vmatpush2.bf16.msra.mxu0 0
      %1810 = vmatprep.subr.bf16.mxu0 0
      %1811 = vmatpush2.bf16.msra.mxu0 0
      %1812 = vmatprep.mubr.bf16.mxu0 0
      %1813 = vmatmul.mubr.bf16.gmra.mxu0 %v1778
      %v1814 = vpop.f32.mrf.mxu0
      %v1815 = vadd.f32 0.0, %v1814
      %v1816 = vpop.f32.mrf.mxu0
      %v1817 = vpop.f32.mrf.mxu0
      %v1818 = vadd.f32 0.0, %v1817
      %v1819 = vpop.f32.mrf.mxu0
      %1820 = vdwg.mxu0
      %1821 = vst.msk [vmem:[#allocation2 + $0x10] sm:$0xff] %vm1017, %v1815
      %1822 = vst.msk [vmem:[#allocation2 + $0x18] sm:$0xff] %vm1017, %v1818
      %v1823 = vmul.f32 %v918, %v1140
      %v1824 = vmul.f32 %v922, %v1142
      %v1825 = vmul.f32 %v918, %v1148
      %v1826 = vmul.f32 %v922, %v1150
      %1829 = vrot.lane.b32.xlu0 %v1825, 64
      %v1830 = vpop.permute.xlu0 %1829
      %1831 = vrot.lane.b32.xlu0 %v1826, 64
      %v1832 = vpop.permute.xlu0 %1831
      %v1835 = vadd.f32 %v1823, %v1830
      %v1836 = vadd.f32 %v1824, %v1832
      %v1837 = vmul.f32 %v920, %v1140
      %v1838 = vmul.f32 %v924, %v1142
      %v1839 = vmul.f32 %v920, %v1148
      %v1840 = vmul.f32 %v924, %v1150
      %1843 = vrot.lane.b32.xlu0 %v1839, 64
      %v1844 = vpop.permute.xlu0 %1843
      %1845 = vrot.lane.b32.xlu0 %v1840, 64
      %v1846 = vpop.permute.xlu0 %1845
      %v1849 = vadd.f32 %v1837, %v1844
      %v1850 = vadd.f32 %v1838, %v1846
      %v1851 = vpack.c.bf16 %v1836, %v1835
      %v1852 = vpack.c.bf16 %v1850, %v1849
      %1854 = vrot.lane.b32.xlu0 %v1851, 112
      %v1855 = vpop.permute.xlu0 %1854
      %1857 = vrot.lane.b32.xlu0 %v1852, 112
      %v1858 = vpop.permute.xlu0 %1857
      %v1860 = vsel %vm1017, %v1855, 0
      %v1863 = vsel %vm1017, %v1858, 0
      %1865 = vmatprep.subr.bf16.mxu0 0
      %1866 = vmatpush1.bf16.xpose.msra.mxu0 0
      %1867 = vmatprep.subr.bf16.mxu0 0
      %1868 = vmatpush1.bf16.xpose.msra.mxu0 0
      %1869 = vmatprep.subr.bf16.mxu0 0
      %1870 = vmatpush1.bf16.xpose.msra.mxu0 0
      %1871 = vmatprep.subr.bf16.mxu0 0
      %1872 = vmatpush1.bf16.xpose.msra.mxu0 0
      %1873 = vmatprep.subr.bf16.mxu0 0
      %1874 = vmatpush1.bf16.xpose.msra.mxu0 0
      %1875 = vmatprep.subr.bf16.mxu0 0
      %1876 = vmatpush1.bf16.xpose.msra.mxu0 0
      %1877 = vmatprep.subr.bf16.mxu0 0
      %1878 = vmatpush1.bf16.xpose.msra.mxu0 0
      %1879 = vmatprep.subr.bf16.mxu0 0
      %1880 = vmatpush1.bf16.xpose.msra.mxu0 %v1863
      %1881 = vmatprep.subr.bf16.mxu0 0
      %1882 = vmatpush2.bf16.xpose.msra.mxu0 0
      %1883 = vmatprep.subr.bf16.mxu0 0
      %1884 = vmatpush2.bf16.xpose.msra.mxu0 0
      %1885 = vmatprep.subr.bf16.mxu0 0
      %1886 = vmatpush2.bf16.xpose.msra.mxu0 0
      %1887 = vmatprep.subr.bf16.mxu0 0
      %1888 = vmatpush2.bf16.xpose.msra.mxu0 0
      %1889 = vmatprep.subr.bf16.mxu0 0
      %1890 = vmatpush2.bf16.xpose.msra.mxu0 0
      %1891 = vmatprep.subr.bf16.mxu0 0
      %1892 = vmatpush2.bf16.xpose.msra.mxu0 0
      %1893 = vmatprep.subr.bf16.mxu0 0
      %1894 = vmatpush2.bf16.xpose.msra.mxu0 0
      %1895 = vmatprep.subr.bf16.mxu0 0
      %1896 = vmatpush2.bf16.xpose.msra.mxu0 0
      %1897 = vmatprep.mubr.bf16.mxu0 0
      %1898 = vmatmul.mubr.bf16.gmra.mxu0 %v1860
      %v1899 = vpop.f32.mrf.mxu0
      %v1900 = vadd.f32 0.0, %v1899
      %v1901 = vpop.f32.mrf.mxu0
      %v1902 = vpop.f32.mrf.mxu0
      %v1903 = vadd.f32 0.0, %v1902
      %v1904 = vpop.f32.mrf.mxu0
      %1905 = vdwg.mxu0
      %v1906 = vmul.f32 %v1900, 0.25
      %v1907 = vmul.f32 %v1903, 0.25
      %v1908 = vsel %vm1017, %v1906, -inf
      %1909 = vmax.xlane.f32.xlu0 %v1908
      %v1910 = vpop.xlane.xlu0 %1909
      %v1911 = vsel %vm1017, %v1907, -inf
      %1912 = vmax.xlane.f32.xlu0 %v1911
      %v1913 = vpop.xlane.xlu0 %1912
      %v1914 = vsub.f32 %v1906, %v1910
      %v1915 = vsub.f32 %v1907, %v1913
      %v1916 = vmul.f32 %v1914, 1.442695
      %v1917 = vpow.pop %v1916
      %v1918 = vmul.f32 %v1915, 1.442695
      %v1919 = vpow.pop %v1918
      %v1920 = vsel %vm1017, %v1917, 0.0
      %1921 = vadd.xlane.f32.xlu0 %v1920
      %v1922 = vpop.xlane.xlu0 %1921
      %v1923 = vsel %vm1017, %v1919, 0.0
      %1924 = vadd.xlane.f32.xlu0 %v1923
      %v1925 = vpop.xlane.xlu0 %1924
      %v1926 = vrcp.pop %v1922
      %v1927 = vrcp.pop %v1925
      %v1928 = vmul.f32 %v1917, %v1926
      %v1929 = vmul.f32 %v1919, %v1927
      %v1930 = vpack.c.bf16 %v1929, %v1928
      %1932 = vrot.lane.b32.xlu0 %v1776, 112
      %v1933 = vpop.permute.xlu0 %1932
      %v1936 = vsel %vm1017, %v1930, 0
      %1938 = vmatprep.subr.bf16.mxu0 0
      %1939 = vmatpush1.bf16.msra.mxu0 0
      %1940 = vmatprep.subr.bf16.mxu0 0
      %1941 = vmatpush1.bf16.msra.mxu0 0
      %1942 = vmatprep.subr.bf16.mxu0 0
      %1943 = vmatpush1.bf16.msra.mxu0 0
      %1944 = vmatprep.subr.bf16.mxu0 0
      %1945 = vmatpush1.bf16.msra.mxu0 0
      %1946 = vmatprep.subr.bf16.mxu0 0
      %1947 = vmatpush1.bf16.msra.mxu0 0
      %1948 = vmatprep.subr.bf16.mxu0 0
      %1949 = vmatpush1.bf16.msra.mxu0 0
      %1950 = vmatprep.subr.bf16.mxu0 0
      %1951 = vmatpush1.bf16.msra.mxu0 0
      %1952 = vmatprep.subr.bf16.mxu0 0
      %1953 = vmatpush1.bf16.msra.mxu0 %v1933
      %1954 = vmatprep.subr.bf16.mxu0 0
      %1955 = vmatpush2.bf16.msra.mxu0 0
      %1956 = vmatprep.subr.bf16.mxu0 0
      %1957 = vmatpush2.bf16.msra.mxu0 0
      %1958 = vmatprep.subr.bf16.mxu0 0
      %1959 = vmatpush2.bf16.msra.mxu0 0
      %1960 = vmatprep.subr.bf16.mxu0 0
      %1961 = vmatpush2.bf16.msra.mxu0 0
      %1962 = vmatprep.subr.bf16.mxu0 0
      %1963 = vmatpush2.bf16.msra.mxu0 0
      %1964 = vmatprep.subr.bf16.mxu0 0
      %1965 = vmatpush2.bf16.msra.mxu0 0
      %1966 = vmatprep.subr.bf16.mxu0 0
      %1967 = vmatpush2.bf16.msra.mxu0 0
      %1968 = vmatprep.subr.bf16.mxu0 0
      %1969 = vmatpush2.bf16.msra.mxu0 0
      %1970 = vmatprep.mubr.bf16.mxu0 0
      %1971 = vmatmul.mubr.bf16.gmra.mxu0 %v1936
      %v1972 = vpop.f32.mrf.mxu0
      %v1973 = vadd.f32 0.0, %v1972
      %v1974 = vpop.f32.mrf.mxu0
      %v1975 = vpop.f32.mrf.mxu0
      %v1976 = vadd.f32 0.0, %v1975
      %v1977 = vpop.f32.mrf.mxu0
      %1978 = vdwg.mxu0
      %1981 = vrot.lane.b32.xlu0 %v1973, 16
      %v1982 = vpop.permute.xlu0 %1981
      %1983 = vrot.lane.b32.xlu0 %v1976, 16
      %v1984 = vpop.permute.xlu0 %1983
      %1987 = vst.msk [vmem:[#allocation2 + $0x10] sm:$0xff] %vm1315, %v1982
      %1988 = vst.msk [vmem:[#allocation2 + $0x18] sm:$0xff] %vm1315, %v1984
      %v1989 = vmul.f32 %v918, %v1319
      %v1990 = vmul.f32 %v922, %v1321
      %v1991 = vmul.f32 %v918, %v1327
      %v1992 = vmul.f32 %v922, %v1329
      %1995 = vrot.lane.b32.xlu0 %v1991, 64
      %v1996 = vpop.permute.xlu0 %1995
      %1997 = vrot.lane.b32.xlu0 %v1992, 64
      %v1998 = vpop.permute.xlu0 %1997
      %v2001 = vadd.f32 %v1989, %v1996
      %v2002 = vadd.f32 %v1990, %v1998
      %v2003 = vmul.f32 %v920, %v1319
      %v2004 = vmul.f32 %v924, %v1321
      %v2005 = vmul.f32 %v920, %v1327
      %v2006 = vmul.f32 %v924, %v1329
      %2009 = vrot.lane.b32.xlu0 %v2005, 64
      %v2010 = vpop.permute.xlu0 %2009
      %2011 = vrot.lane.b32.xlu0 %v2006, 64
      %v2012 = vpop.permute.xlu0 %2011
      %v2015 = vadd.f32 %v2003, %v2010
      %v2016 = vadd.f32 %v2004, %v2012
      %v2017 = vpack.c.bf16 %v2002, %v2001
      %v2018 = vpack.c.bf16 %v2016, %v2015
      %2020 = vrot.lane.b32.xlu0 %v2017, 96
      %v2021 = vpop.permute.xlu0 %2020
      %2023 = vrot.lane.b32.xlu0 %v2018, 96
      %v2024 = vpop.permute.xlu0 %2023
      %v2026 = vsel %vm1017, %v2021, 0
      %v2029 = vsel %vm1017, %v2024, 0
      %2031 = vmatprep.subr.bf16.mxu0 0
      %2032 = vmatpush1.bf16.xpose.msra.mxu0 0
      %2033 = vmatprep.subr.bf16.mxu0 0
      %2034 = vmatpush1.bf16.xpose.msra.mxu0 0
      %2035 = vmatprep.subr.bf16.mxu0 0
      %2036 = vmatpush1.bf16.xpose.msra.mxu0 0
      %2037 = vmatprep.subr.bf16.mxu0 0
      %2038 = vmatpush1.bf16.xpose.msra.mxu0 0
      %2039 = vmatprep.subr.bf16.mxu0 0
      %2040 = vmatpush1.bf16.xpose.msra.mxu0 0
      %2041 = vmatprep.subr.bf16.mxu0 0
      %2042 = vmatpush1.bf16.xpose.msra.mxu0 0
      %2043 = vmatprep.subr.bf16.mxu0 0
      %2044 = vmatpush1.bf16.xpose.msra.mxu0 0
      %2045 = vmatprep.subr.bf16.mxu0 0
      %2046 = vmatpush1.bf16.xpose.msra.mxu0 %v2029
      %2047 = vmatprep.subr.bf16.mxu0 0
      %2048 = vmatpush2.bf16.xpose.msra.mxu0 0
      %2049 = vmatprep.subr.bf16.mxu0 0
      %2050 = vmatpush2.bf16.xpose.msra.mxu0 0
      %2051 = vmatprep.subr.bf16.mxu0 0
      %2052 = vmatpush2.bf16.xpose.msra.mxu0 0
      %2053 = vmatprep.subr.bf16.mxu0 0
      %2054 = vmatpush2.bf16.xpose.msra.mxu0 0
      %2055 = vmatprep.subr.bf16.mxu0 0
      %2056 = vmatpush2.bf16.xpose.msra.mxu0 0
      %2057 = vmatprep.subr.bf16.mxu0 0
      %2058 = vmatpush2.bf16.xpose.msra.mxu0 0
      %2059 = vmatprep.subr.bf16.mxu0 0
      %2060 = vmatpush2.bf16.xpose.msra.mxu0 0
      %2061 = vmatprep.subr.bf16.mxu0 0
      %2062 = vmatpush2.bf16.xpose.msra.mxu0 0
      %2063 = vmatprep.mubr.bf16.mxu0 0
      %2064 = vmatmul.mubr.bf16.gmra.mxu0 %v2026
      %v2065 = vpop.f32.mrf.mxu0
      %v2066 = vadd.f32 0.0, %v2065
      %v2067 = vpop.f32.mrf.mxu0
      %v2068 = vpop.f32.mrf.mxu0
      %v2069 = vadd.f32 0.0, %v2068
      %v2070 = vpop.f32.mrf.mxu0
      %2071 = vdwg.mxu0
      %v2072 = vmul.f32 %v2066, 0.25
      %v2073 = vmul.f32 %v2069, 0.25
      %v2074 = vsel %vm1017, %v2072, -inf
      %2075 = vmax.xlane.f32.xlu0 %v2074
      %v2076 = vpop.xlane.xlu0 %2075
      %v2077 = vsel %vm1017, %v2073, -inf
      %2078 = vmax.xlane.f32.xlu0 %v2077
      %v2079 = vpop.xlane.xlu0 %2078
      %v2080 = vsub.f32 %v2072, %v2076
      %v2081 = vsub.f32 %v2073, %v2079
      %v2082 = vmul.f32 %v2080, 1.442695
      %v2083 = vpow.pop %v2082
      %v2084 = vmul.f32 %v2081, 1.442695
      %v2085 = vpow.pop %v2084
      %v2086 = vsel %vm1017, %v2083, 0.0
      %2087 = vadd.xlane.f32.xlu0 %v2086
      %v2088 = vpop.xlane.xlu0 %2087
      %v2089 = vsel %vm1017, %v2085, 0.0
      %2090 = vadd.xlane.f32.xlu0 %v2089
      %v2091 = vpop.xlane.xlu0 %2090
      %v2092 = vrcp.pop %v2088
      %v2093 = vrcp.pop %v2091
      %v2094 = vmul.f32 %v2083, %v2092
      %v2095 = vmul.f32 %v2085, %v2093
      %v2096 = vpack.c.bf16 %v2095, %v2094
      %2097 = vrot.lane.b32.xlu0 %v1776, 96
      %v2098 = vpop.permute.xlu0 %2097
      %v2101 = vsel %vm1017, %v2096, 0
      %2103 = vmatprep.subr.bf16.mxu0 0
      %2104 = vmatpush1.bf16.msra.mxu0 0
      %2105 = vmatprep.subr.bf16.mxu0 0
      %2106 = vmatpush1.bf16.msra.mxu0 0
      %2107 = vmatprep.subr.bf16.mxu0 0
      %2108 = vmatpush1.bf16.msra.mxu0 0
      %2109 = vmatprep.subr.bf16.mxu0 0
      %2110 = vmatpush1.bf16.msra.mxu0 0
      %2111 = vmatprep.subr.bf16.mxu0 0
      %2112 = vmatpush1.bf16.msra.mxu0 0
      %2113 = vmatprep.subr.bf16.mxu0 0
      %2114 = vmatpush1.bf16.msra.mxu0 0
      %2115 = vmatprep.subr.bf16.mxu0 0
      %2116 = vmatpush1.bf16.msra.mxu0 0
      %2117 = vmatprep.subr.bf16.mxu0 0
      %2118 = vmatpush1.bf16.msra.mxu0 %v2098
      %2119 = vmatprep.subr.bf16.mxu0 0
      %2120 = vmatpush2.bf16.msra.mxu0 0
      %2121 = vmatprep.subr.bf16.mxu0 0
      %2122 = vmatpush2.bf16.msra.mxu0 0
      %2123 = vmatprep.subr.bf16.mxu0 0
      %2124 = vmatpush2.bf16.msra.mxu0 0
      %2125 = vmatprep.subr.bf16.mxu0 0
      %2126 = vmatpush2.bf16.msra.mxu0 0
      %2127 = vmatprep.subr.bf16.mxu0 0
      %2128 = vmatpush2.bf16.msra.mxu0 0
      %2129 = vmatprep.subr.bf16.mxu0 0
      %2130 = vmatpush2.bf16.msra.mxu0 0
      %2131 = vmatprep.subr.bf16.mxu0 0
      %2132 = vmatpush2.bf16.msra.mxu0 0
      %2133 = vmatprep.subr.bf16.mxu0 0
      %2134 = vmatpush2.bf16.msra.mxu0 0
      %2135 = vmatprep.mubr.bf16.mxu0 0
      %2136 = vmatmul.mubr.bf16.gmra.mxu0 %v2101
      %v2137 = vpop.f32.mrf.mxu0
      %v2138 = vadd.f32 0.0, %v2137
      %v2139 = vpop.f32.mrf.mxu0
      %v2140 = vpop.f32.mrf.mxu0
      %v2141 = vadd.f32 0.0, %v2140
      %v2142 = vpop.f32.mrf.mxu0
      %2143 = vdwg.mxu0
      %2146 = vrot.lane.b32.xlu0 %v2138, 32
      %v2147 = vpop.permute.xlu0 %2146
      %2148 = vrot.lane.b32.xlu0 %v2141, 32
      %v2149 = vpop.permute.xlu0 %2148
      %2152 = vst.msk [vmem:[#allocation2 + $0x10] sm:$0xff] %vm1493, %v2147
      %2153 = vst.msk [vmem:[#allocation2 + $0x18] sm:$0xff] %vm1493, %v2149
      %v2154 = vmul.f32 %v918, %v1497
      %v2155 = vmul.f32 %v922, %v1499
      %v2156 = vmul.f32 %v918, %v1505
      %v2157 = vmul.f32 %v922, %v1507
      %2160 = vrot.lane.b32.xlu0 %v2156, 64
      %v2161 = vpop.permute.xlu0 %2160
      %2162 = vrot.lane.b32.xlu0 %v2157, 64
      %v2163 = vpop.permute.xlu0 %2162
      %v2166 = vadd.f32 %v2154, %v2161
      %v2167 = vadd.f32 %v2155, %v2163
      %v2168 = vmul.f32 %v920, %v1497
      %v2169 = vmul.f32 %v924, %v1499
      %v2170 = vmul.f32 %v920, %v1505
      %v2171 = vmul.f32 %v924, %v1507
      %2174 = vrot.lane.b32.xlu0 %v2170, 64
      %v2175 = vpop.permute.xlu0 %2174
      %2176 = vrot.lane.b32.xlu0 %v2171, 64
      %v2177 = vpop.permute.xlu0 %2176
      %v2180 = vadd.f32 %v2168, %v2175
      %v2181 = vadd.f32 %v2169, %v2177
      %v2182 = vpack.c.bf16 %v2167, %v2166
      %v2183 = vpack.c.bf16 %v2181, %v2180
      %2185 = vrot.lane.b32.xlu0 %v2182, 80
      %v2186 = vpop.permute.xlu0 %2185
      %2188 = vrot.lane.b32.xlu0 %v2183, 80
      %v2189 = vpop.permute.xlu0 %2188
      %v2191 = vsel %vm1017, %v2186, 0
      %v2194 = vsel %vm1017, %v2189, 0
      %2196 = vmatprep.subr.bf16.mxu0 0
      %2197 = vmatpush1.bf16.xpose.msra.mxu0 0
      %2198 = vmatprep.subr.bf16.mxu0 0
      %2199 = vmatpush1.bf16.xpose.msra.mxu0 0
      %2200 = vmatprep.subr.bf16.mxu0 0
      %2201 = vmatpush1.bf16.xpose.msra.mxu0 0
      %2202 = vmatprep.subr.bf16.mxu0 0
      %2203 = vmatpush1.bf16.xpose.msra.mxu0 0
      %2204 = vmatprep.subr.bf16.mxu0 0
      %2205 = vmatpush1.bf16.xpose.msra.mxu0 0
      %2206 = vmatprep.subr.bf16.mxu0 0
      %2207 = vmatpush1.bf16.xpose.msra.mxu0 0
      %2208 = vmatprep.subr.bf16.mxu0 0
      %2209 = vmatpush1.bf16.xpose.msra.mxu0 0
      %2210 = vmatprep.subr.bf16.mxu0 0
      %2211 = vmatpush1.bf16.xpose.msra.mxu0 %v2194
      %2212 = vmatprep.subr.bf16.mxu0 0
      %2213 = vmatpush2.bf16.xpose.msra.mxu0 0
      %2214 = vmatprep.subr.bf16.mxu0 0
      %2215 = vmatpush2.bf16.xpose.msra.mxu0 0
      %2216 = vmatprep.subr.bf16.mxu0 0
      %2217 = vmatpush2.bf16.xpose.msra.mxu0 0
      %2218 = vmatprep.subr.bf16.mxu0 0
      %2219 = vmatpush2.bf16.xpose.msra.mxu0 0
      %2220 = vmatprep.subr.bf16.mxu0 0
      %2221 = vmatpush2.bf16.xpose.msra.mxu0 0
      %2222 = vmatprep.subr.bf16.mxu0 0
      %2223 = vmatpush2.bf16.xpose.msra.mxu0 0
      %2224 = vmatprep.subr.bf16.mxu0 0
      %2225 = vmatpush2.bf16.xpose.msra.mxu0 0
      %2226 = vmatprep.subr.bf16.mxu0 0
      %2227 = vmatpush2.bf16.xpose.msra.mxu0 0
      %2228 = vmatprep.mubr.bf16.mxu0 0
      %2229 = vmatmul.mubr.bf16.gmra.mxu0 %v2191
      %v2230 = vpop.f32.mrf.mxu0
      %v2231 = vadd.f32 0.0, %v2230
      %v2232 = vpop.f32.mrf.mxu0
      %v2233 = vpop.f32.mrf.mxu0
      %v2234 = vadd.f32 0.0, %v2233
      %v2235 = vpop.f32.mrf.mxu0
      %2236 = vdwg.mxu0
      %v2237 = vmul.f32 %v2231, 0.25
      %v2238 = vmul.f32 %v2234, 0.25
      %v2239 = vsel %vm1017, %v2237, -inf
      %2240 = vmax.xlane.f32.xlu0 %v2239
      %v2241 = vpop.xlane.xlu0 %2240
      %v2242 = vsel %vm1017, %v2238, -inf
      %2243 = vmax.xlane.f32.xlu0 %v2242
      %v2244 = vpop.xlane.xlu0 %2243
      %v2245 = vsub.f32 %v2237, %v2241
      %v2246 = vsub.f32 %v2238, %v2244
      %v2247 = vmul.f32 %v2245, 1.442695
      %v2248 = vpow.pop %v2247
      %v2249 = vmul.f32 %v2246, 1.442695
      %v2250 = vpow.pop %v2249
      %v2251 = vsel %vm1017, %v2248, 0.0
      %2252 = vadd.xlane.f32.xlu0 %v2251
      %v2253 = vpop.xlane.xlu0 %2252
      %v2254 = vsel %vm1017, %v2250, 0.0
      %2255 = vadd.xlane.f32.xlu0 %v2254
      %v2256 = vpop.xlane.xlu0 %2255
      %v2257 = vrcp.pop %v2253
      %v2258 = vrcp.pop %v2256
      %v2259 = vmul.f32 %v2248, %v2257
      %v2260 = vmul.f32 %v2250, %v2258
      %v2261 = vpack.c.bf16 %v2260, %v2259
      %2262 = vrot.lane.b32.xlu0 %v1776, 80
      %v2263 = vpop.permute.xlu0 %2262
      %v2266 = vsel %vm1017, %v2261, 0
      %2268 = vmatprep.subr.bf16.mxu0 0
      %2269 = vmatpush1.bf16.msra.mxu0 0
      %2270 = vmatprep.subr.bf16.mxu0 0
      %2271 = vmatpush1.bf16.msra.mxu0 0
      %2272 = vmatprep.subr.bf16.mxu0 0
      %2273 = vmatpush1.bf16.msra.mxu0 0
      %2274 = vmatprep.subr.bf16.mxu0 0
      %2275 = vmatpush1.bf16.msra.mxu0 0
      %2276 = vmatprep.subr.bf16.mxu0 0
      %2277 = vmatpush1.bf16.msra.mxu0 0
      %2278 = vmatprep.subr.bf16.mxu0 0
      %2279 = vmatpush1.bf16.msra.mxu0 0
      %2280 = vmatprep.subr.bf16.mxu0 0
      %2281 = vmatpush1.bf16.msra.mxu0 0
      %2282 = vmatprep.subr.bf16.mxu0 0
      %2283 = vmatpush1.bf16.msra.mxu0 %v2263
      %2284 = vmatprep.subr.bf16.mxu0 0
      %2285 = vmatpush2.bf16.msra.mxu0 0
      %2286 = vmatprep.subr.bf16.mxu0 0
      %2287 = vmatpush2.bf16.msra.mxu0 0
      %2288 = vmatprep.subr.bf16.mxu0 0
      %2289 = vmatpush2.bf16.msra.mxu0 0
      %2290 = vmatprep.subr.bf16.mxu0 0
      %2291 = vmatpush2.bf16.msra.mxu0 0
      %2292 = vmatprep.subr.bf16.mxu0 0
      %2293 = vmatpush2.bf16.msra.mxu0 0
      %2294 = vmatprep.subr.bf16.mxu0 0
      %2295 = vmatpush2.bf16.msra.mxu0 0
      %2296 = vmatprep.subr.bf16.mxu0 0
      %2297 = vmatpush2.bf16.msra.mxu0 0
      %2298 = vmatprep.subr.bf16.mxu0 0
      %2299 = vmatpush2.bf16.msra.mxu0 0
      %2300 = vmatprep.mubr.bf16.mxu0 0
      %2301 = vmatmul.mubr.bf16.gmra.mxu0 %v2266
      %v2302 = vpop.f32.mrf.mxu0
      %v2303 = vadd.f32 0.0, %v2302
      %v2304 = vpop.f32.mrf.mxu0
      %v2305 = vpop.f32.mrf.mxu0
      %v2306 = vadd.f32 0.0, %v2305
      %v2307 = vpop.f32.mrf.mxu0
      %2308 = vdwg.mxu0
      %2311 = vrot.lane.b32.xlu0 %v2303, 48
      %v2312 = vpop.permute.xlu0 %2311
      %2313 = vrot.lane.b32.xlu0 %v2306, 48
      %v2314 = vpop.permute.xlu0 %2313
      %2317 = vst.msk [vmem:[#allocation2 + $0x10] sm:$0xff] %vm1671, %v2312
      %2318 = vst.msk [vmem:[#allocation2 + $0x18] sm:$0xff] %vm1671, %v2314
      %v2319 = vld [vmem:[#allocation2] sm:$0xff]
      %v2320 = vld [vmem:[#allocation2 + $0x8] sm:$0xff]
      %v2321 = vld [vmem:[#allocation2 + $0x10] sm:$0xff]
      %v2322 = vld [vmem:[#allocation2 + $0x18] sm:$0xff]
      %v2323 = vpack.c.bf16 %v2320, %v2319
      %v2324 = vpack.c.bf16 %v2322, %v2321
      %v2325 = vld [vmem:[%s6] sm:$0xf]
      %v2326 = vld [vmem:[%s6 + $0x4] sm:$0xf]
      %v2327 = vld [vmem:[%s6 + $0x8] sm:$0xf]
      %v2328 = vld [vmem:[%s6 + $0xc] sm:$0xf]
      %v2329 = vld [vmem:[%s6 + $0x10] sm:$0xf]
      %v2330 = vld [vmem:[%s6 + $0x14] sm:$0xf]
      %v2331 = vld [vmem:[%s6 + $0x18] sm:$0xf]
      %v2332 = vld [vmem:[%s6 + $0x1c] sm:$0xf]
      %v2341 = vunpack.c.l.b16 %v2325
      %v2342 = vunpack.c.l.b16 %v2326
      %v2343 = vunpack.c.l.b16 %v2327
      %v2344 = vunpack.c.l.b16 %v2328
      %v2345 = vunpack.c.l.b16 %v2329
      %v2346 = vunpack.c.l.b16 %v2330
      %v2347 = vunpack.c.l.b16 %v2331
      %v2348 = vunpack.c.l.b16 %v2332
      %v2349 = vpack.c.b16 %v2342, %v2341
      %v2350 = vpack.c.b16 %v2344, %v2343
      %v2351 = vpack.c.b16 %v2346, %v2345
      %v2352 = vpack.c.b16 %v2348, %v2347
      %vm2357 = vcmask 523264
      %v2359 = vsel %vm2357, %v2323, 0
      %v2362 = vsel %vm2357, %v2324, 0
      %2364 = vmatprep.subr.bf16.mxu0 0
      %2365 = vmatpush1.bf16.msra.mxu0 0
      %2366 = vmatprep.subr.bf16.mxu0 0
      %2367 = vmatpush1.bf16.msra.mxu0 0
      %2368 = vmatprep.subr.bf16.mxu0 0
      %2369 = vmatpush1.bf16.msra.mxu0 0
      %2370 = vmatprep.subr.bf16.mxu0 0
      %2371 = vmatpush1.bf16.msra.mxu0 0
      %2372 = vmatprep.subr.bf16.mxu0 0
      %2373 = vmatpush1.bf16.msra.mxu0 %v2352
      %2374 = vmatprep.subr.bf16.mxu0 0
      %2375 = vmatpush1.bf16.msra.mxu0 %v2351
      %2376 = vmatprep.subr.bf16.mxu0 0
      %2377 = vmatpush1.bf16.msra.mxu0 %v2350
      %2378 = vmatprep.subr.bf16.mxu0 0
      %2379 = vmatpush1.bf16.msra.mxu0 %v2349
      %2380 = vmatprep.subr.bf16.mxu0 0
      %2381 = vmatpush2.bf16.msra.mxu0 0
      %2382 = vmatprep.subr.bf16.mxu0 0
      %2383 = vmatpush2.bf16.msra.mxu0 0
      %2384 = vmatprep.subr.bf16.mxu0 0
      %2385 = vmatpush2.bf16.msra.mxu0 0
      %2386 = vmatprep.subr.bf16.mxu0 0
      %2387 = vmatpush2.bf16.msra.mxu0 0
      %2388 = vmatprep.subr.bf16.mxu0 0
      %2389 = vmatpush2.bf16.msra.mxu0 0
      %2390 = vmatprep.subr.bf16.mxu0 0
      %2391 = vmatpush2.bf16.msra.mxu0 0
      %2392 = vmatprep.subr.bf16.mxu0 0
      %2393 = vmatpush2.bf16.msra.mxu0 0
      %2394 = vmatprep.subr.bf16.mxu0 0
      %2395 = vmatpush2.bf16.msra.mxu0 0
      %2396 = vmatprep.mubr.bf16.mxu0 0
      %2397 = vmatmul.mubr.bf16.gmra.mxu0 %v2359
      %v2398 = vpop.f32.mrf.mxu0
      %v2399 = vadd.f32 0.0, %v2398
      %v2400 = vpop.f32.mrf.mxu0
      %v2401 = vpop.f32.mrf.mxu0
      %v2402 = vadd.f32 0.0, %v2401
      %v2403 = vpop.f32.mrf.mxu0
      %2404 = vmatprep.mubr.bf16.mxu0 0
      %2405 = vmatmul.mubr.bf16.gmra.mxu0 %v2362
      %v2406 = vpop.f32.mrf.mxu0
      %v2407 = vadd.f32 0.0, %v2406
      %v2408 = vpop.f32.mrf.mxu0
      %v2409 = vpop.f32.mrf.mxu0
      %v2410 = vadd.f32 0.0, %v2409
      %v2411 = vpop.f32.mrf.mxu0
      %2412 = vdwg.mxu0
      %v2413 = vadd.f32 %v751, %v2399
      %v2414 = vadd.f32 %v752, %v2402
      %v2415 = vadd.f32 %v753, %v2407
      %v2416 = vadd.f32 %v754, %v2410
      %v2417 = vld [vmem:[%s12 + $0x6] sm:$0x1]
      %v2418 = vlaneseq
      %v2419 = vshrl.u32 %v2418, 7
      %v2420 = vsub.s32 0, %v2419
      %v2421 = vrot.slane %v2417, %v2420
      %v2422 = vadd.f32 %v2413, %v2421
      %v2423 = vadd.f32 %v2414, %v2421
      %v2424 = vadd.f32 %v2415, %v2421
      %v2425 = vadd.f32 %v2416, %v2421
      %v2426 = vld [vmem:[%s12 + $0x7] sm:$0x1]
      %v2427 = vld [vmem:[%s12 + $0x8] sm:$0x1]
      %v2428 = vsel %vm453, %v2422, 0.0
      %2429 = vadd.xlane.f32.xlu0 %v2428
      %v2430 = vpop.xlane.xlu0 %2429
      %v2431 = vsel %vm453, %v2423, 0.0
      %2432 = vadd.xlane.f32.xlu0 %v2431
      %v2433 = vpop.xlane.xlu0 %2432
      %v2434 = vsel %vm453, %v2424, 0.0
      %2435 = vadd.xlane.f32.xlu0 %v2434
      %v2436 = vpop.xlane.xlu0 %2435
      %v2437 = vsel %vm453, %v2425, 0.0
      %2438 = vadd.xlane.f32.xlu0 %v2437
      %v2439 = vpop.xlane.xlu0 %2438
      %v2440 = vmul.f32 %v2430, %v466
      %v2441 = vmul.f32 %v2433, %v466
      %v2442 = vmul.f32 %v2436, %v466
      %v2443 = vmul.f32 %v2439, %v466
      %v2444 = vsub.f32 %v2422, %v2440
      %v2445 = vsub.f32 %v2423, %v2441
      %v2446 = vsub.f32 %v2424, %v2442
      %v2447 = vsub.f32 %v2425, %v2443
      %v2448 = vmul.f32 %v2444, %v2444
      %v2449 = vmul.f32 %v2445, %v2445
      %v2450 = vmul.f32 %v2446, %v2446
      %v2451 = vmul.f32 %v2447, %v2447
      %v2452 = vsel %vm453, %v2448, 0.0
      %2453 = vadd.xlane.f32.xlu0 %v2452
      %v2454 = vpop.xlane.xlu0 %2453
      %v2455 = vsel %vm453, %v2449, 0.0
      %2456 = vadd.xlane.f32.xlu0 %v2455
      %v2457 = vpop.xlane.xlu0 %2456
      %v2458 = vsel %vm453, %v2450, 0.0
      %2459 = vadd.xlane.f32.xlu0 %v2458
      %v2460 = vpop.xlane.xlu0 %2459
      %v2461 = vsel %vm453, %v2451, 0.0
      %2462 = vadd.xlane.f32.xlu0 %v2461
      %v2463 = vpop.xlane.xlu0 %2462
      %v2464 = vmul.f32 %v2454, %v466
      %v2465 = vmul.f32 %v2457, %v466
      %v2466 = vmul.f32 %v2460, %v466
      %v2467 = vmul.f32 %v2463, %v466
      %v2468 = vadd.f32 %v2464, 1e-05
      %v2469 = vadd.f32 %v2465, 1e-05
      %v2470 = vadd.f32 %v2466, 1e-05
      %v2471 = vadd.f32 %v2467, 1e-05
      %v2472 = vrsqrt.pop %v2468
      %v2473 = vrsqrt.pop %v2469
      %v2474 = vrsqrt.pop %v2470
      %v2475 = vrsqrt.pop %v2471
      %v2476 = vmul.f32 %v2444, %v2472
      %v2477 = vmul.f32 %v2445, %v2473
      %v2478 = vmul.f32 %v2446, %v2474
      %v2479 = vmul.f32 %v2447, %v2475
      %v2480 = vlaneseq
      %v2481 = vshrl.u32 %v2480, 7
      %v2482 = vsub.s32 0, %v2481
      %v2483 = vrot.slane %v2426, %v2482
      %v2484 = vmul.f32 %v2476, %v2483
      %v2485 = vmul.f32 %v2477, %v2483
      %v2486 = vmul.f32 %v2478, %v2483
      %v2487 = vmul.f32 %v2479, %v2483
      %v2488 = vlaneseq
      %v2489 = vshrl.u32 %v2488, 7
      %v2490 = vsub.s32 0, %v2489
      %v2491 = vrot.slane %v2427, %v2490
      %v2492 = vadd.f32 %v2484, %v2491
      %v2493 = vadd.f32 %v2485, %v2491
      %v2494 = vadd.f32 %v2486, %v2491
      %v2495 = vadd.f32 %v2487, %v2491
      %v2496 = vpack.c.bf16 %v2493, %v2492
      %v2497 = vpack.c.bf16 %v2495, %v2494
      %v2498 = vld [vmem:[%s7] sm:$0xf]
      %v2499 = vld [vmem:[%s7 + $0x4] sm:$0xf]
      %v2500 = vld [vmem:[%s7 + $0x8] sm:$0xf]
      %v2501 = vld [vmem:[%s7 + $0xc] sm:$0xf]
      %v2502 = vld [vmem:[%s12 + $0x9] sm:$0x1]
      %v2503 = vlaneseq
      %v2504 = vshrl.u32 %v2503, 7
      %v2505 = vsub.s32 0, %v2504
      %v2506 = vrot.slane %v2502, %v2505
      %v2511 = vunpack.c.l.b16 %v2498
      %v2512 = vunpack.c.l.b16 %v2499
      %v2513 = vunpack.c.l.b16 %v2500
      %v2514 = vunpack.c.l.b16 %v2501
      %v2515 = vpack.c.b16 %v2512, %v2511
      %v2516 = vpack.c.b16 %v2514, %v2513
      %v2520 = vsel %vm453, %v2496, 0
      %v2523 = vsel %vm453, %v2497, 0
      %2525 = vmatprep.subr.bf16.mxu0 0
      %2526 = vmatpush1.bf16.msra.mxu0 0
      %2527 = vmatprep.subr.bf16.mxu0 0
      %2528 = vmatpush1.bf16.msra.mxu0 0
      %2529 = vmatprep.subr.bf16.mxu0 0
      %2530 = vmatpush1.bf16.msra.mxu0 0
      %2531 = vmatprep.subr.bf16.mxu0 0
      %2532 = vmatpush1.bf16.msra.mxu0 0
      %2533 = vmatprep.subr.bf16.mxu0 0
      %2534 = vmatpush1.bf16.msra.mxu0 0
      %2535 = vmatprep.subr.bf16.mxu0 0
      %2536 = vmatpush1.bf16.msra.mxu0 0
      %2537 = vmatprep.subr.bf16.mxu0 0
      %2538 = vmatpush1.bf16.msra.mxu0 %v2516
      %2539 = vmatprep.subr.bf16.mxu0 0
      %2540 = vmatpush1.bf16.msra.mxu0 %v2515
      %2541 = vmatprep.subr.bf16.mxu0 0
      %2542 = vmatpush2.bf16.msra.mxu0 0
      %2543 = vmatprep.subr.bf16.mxu0 0
      %2544 = vmatpush2.bf16.msra.mxu0 0
      %2545 = vmatprep.subr.bf16.mxu0 0
      %2546 = vmatpush2.bf16.msra.mxu0 0
      %2547 = vmatprep.subr.bf16.mxu0 0
      %2548 = vmatpush2.bf16.msra.mxu0 0
      %2549 = vmatprep.subr.bf16.mxu0 0
      %2550 = vmatpush2.bf16.msra.mxu0 0
      %2551 = vmatprep.subr.bf16.mxu0 0
      %2552 = vmatpush2.bf16.msra.mxu0 0
      %2553 = vmatprep.subr.bf16.mxu0 0
      %2554 = vmatpush2.bf16.msra.mxu0 0
      %2555 = vmatprep.subr.bf16.mxu0 0
      %2556 = vmatpush2.bf16.msra.mxu0 0
      %2557 = vmatprep.mubr.bf16.mxu0 0
      %2558 = vmatmul.mubr.bf16.gmra.mxu0 %v2520
      %v2559 = vpop.f32.mrf.mxu0
      %v2560 = vadd.f32 %v2506, %v2559
      %v2561 = vpop.f32.mrf.mxu0
      %v2562 = vpop.f32.mrf.mxu0
      %v2563 = vadd.f32 %v2506, %v2562
      %v2564 = vpop.f32.mrf.mxu0
      %2565 = vmatprep.mubr.bf16.mxu0 0
      %2566 = vmatmul.mubr.bf16.gmra.mxu0 %v2523
      %v2567 = vpop.f32.mrf.mxu0
      %v2568 = vadd.f32 %v2506, %v2567
      %v2569 = vpop.f32.mrf.mxu0
      %v2570 = vpop.f32.mrf.mxu0
      %v2571 = vadd.f32 %v2506, %v2570
      %v2572 = vpop.f32.mrf.mxu0
      %2573 = vdwg.mxu0
      %v2574 = vxor.u32 %v2560, 2147483648
      %v2575 = vxor.u32 %v2563, 2147483648
      %v2576 = vxor.u32 %v2568, 2147483648
      %v2577 = vxor.u32 %v2571, 2147483648
      %v2578 = vmul.f32 %v2574, 1.442695
      %v2579 = vpow.pop %v2578
      %v2580 = vmul.f32 %v2575, 1.442695
      %v2581 = vpow.pop %v2580
      %v2582 = vmul.f32 %v2576, 1.442695
      %v2583 = vpow.pop %v2582
      %v2584 = vmul.f32 %v2577, 1.442695
      %v2585 = vpow.pop %v2584
      %v2586 = vadd.f32 %v2579, 1.0
      %v2587 = vadd.f32 %v2581, 1.0
      %v2588 = vadd.f32 %v2583, 1.0
      %v2589 = vadd.f32 %v2585, 1.0
      %v2590 = vrcp.pop %v2586
      %v2591 = vmul.f32 1.0, %v2590
      %v2592 = vrcp.pop %v2587
      %v2593 = vmul.f32 1.0, %v2592
      %v2594 = vrcp.pop %v2588
      %v2595 = vmul.f32 1.0, %v2594
      %v2596 = vrcp.pop %v2589
      %v2597 = vmul.f32 1.0, %v2596
      %2602 = vrot.lane.b32.xlu0 %v2591, 64
      %v2603 = vpop.permute.xlu0 %2602
      %2604 = vrot.lane.b32.xlu0 %v2593, 64
      %v2605 = vpop.permute.xlu0 %2604
      %2606 = vrot.lane.b32.xlu0 %v2595, 64
      %v2607 = vpop.permute.xlu0 %2606
      %2608 = vrot.lane.b32.xlu0 %v2597, 64
      %v2609 = vpop.permute.xlu0 %2608
      %v2614 = vmul.f32 %v2560, %v2603
      %v2615 = vmul.f32 %v2563, %v2605
      %v2616 = vmul.f32 %v2568, %v2607
      %v2617 = vmul.f32 %v2571, %v2609
      %vm2622 = vcmask 1041408
      %v2623 = vrot.slane %v2614, 6
      %v2624 = vrot.slane %v2615, 6
      %v2625 = vsel %vm2622, %v2623, %v2624
      %v2626 = vrot.slane %v2616, 6
      %v2627 = vsel %vm2622, %v2624, %v2626
      %v2628 = vrot.slane %v2617, 6
      %v2629 = vsel %vm2622, %v2626, %v2628
      %v2635 = vsel %vm2622, 0.0, %v2623
      %v2636 = vsel %vm2622, %v2628, 0.0
      %v2637 = vld [vmem:[%s8] sm:$0x1f]
      %v2638 = vlaneseq
      %v2639 = vshrl.u32 %v2638, 7
      %v2640 = vadd.s32 %v2639, 8
      %v2641 = vadd.s32 %v2639, 16
      %v2642 = vadd.s32 %v2639, 24
      %vm2643 = vcmp.lt.s32.totalorder %v2639, 0
      %v2644 = vsub.s32 0, %v2639
      %v2645 = vsel %vm2643, %v2644, %v2639
      %v2646 = vshrl.u32 %v2645, 4
      %v2647 = vand.u32 %v2645, 15
      %v2648 = vsub.s32 0, %v2647
      %v2649 = vsel %vm2643, %v2648, %v2647
      %vm2650 = vcmp.lt.s32.totalorder %v2640, 0
      %v2651 = vsub.s32 0, %v2640
      %v2652 = vsel %vm2650, %v2651, %v2640
      %v2653 = vshrl.u32 %v2652, 4
      %v2654 = vand.u32 %v2652, 15
      %v2655 = vsub.s32 0, %v2654
      %v2656 = vsel %vm2650, %v2655, %v2654
      %vm2657 = vcmp.lt.s32.totalorder %v2641, 0
      %v2658 = vsub.s32 0, %v2641
      %v2659 = vsel %vm2657, %v2658, %v2641
      %v2660 = vshrl.u32 %v2659, 4
      %v2661 = vand.u32 %v2659, 15
      %v2662 = vsub.s32 0, %v2661
      %v2663 = vsel %vm2657, %v2662, %v2661
      %vm2664 = vcmp.lt.s32.totalorder %v2642, 0
      %v2665 = vsub.s32 0, %v2642
      %v2666 = vsel %vm2664, %v2665, %v2642
      %v2667 = vshrl.u32 %v2666, 4
      %v2668 = vand.u32 %v2666, 15
      %v2669 = vsub.s32 0, %v2668
      %v2670 = vsel %vm2664, %v2669, %v2668
      %vm2671 = vcmp.ne.s32.totalorder %v2649, 0
      %vm2672 = vcmp.ne.s32.totalorder %v2656, 0
      %vm2673 = vcmp.ne.s32.totalorder %v2663, 0
      %vm2674 = vcmp.ne.s32.totalorder %v2670, 0
      %vm2675 = vcmp.lt.s32.totalorder %v2649, 0
      %vm2676 = vcmp.lt.s32.totalorder %v2656, 0
      %vm2677 = vcmp.lt.s32.totalorder %v2663, 0
      %vm2678 = vcmp.lt.s32.totalorder %v2670, 0
      %vm2679 = vmand %vm2675, %vm2671
      %vm2680 = vmand %vm2676, %vm2672
      %vm2681 = vmand %vm2677, %vm2673
      %vm2682 = vmand %vm2678, %vm2674
      %v2683 = vadd.s32 %v2649, 16
      %v2684 = vadd.s32 %v2656, 16
      %v2685 = vadd.s32 %v2663, 16
      %v2686 = vadd.s32 %v2670, 16
      %v2687 = vsel %vm2679, %v2683, %v2649
      %v2688 = vsel %vm2680, %v2684, %v2656
      %v2689 = vsel %vm2681, %v2685, %v2663
      %v2690 = vsel %vm2682, %v2686, %v2670
      %v2691 = vadd.s32 %v2687, 4294967294
      %v2692 = vadd.s32 %v2688, 4294967294
      %v2693 = vadd.s32 %v2689, 4294967294
      %v2694 = vadd.s32 %v2690, 4294967294
      %vm2695 = vcmp.ge.s32.totalorder %v2691, 0
      %vm2696 = vcmp.ge.s32.totalorder %v2692, 0
      %vm2697 = vcmp.ge.s32.totalorder %v2693, 0
      %vm2698 = vcmp.ge.s32.totalorder %v2694, 0
      %vm2699 = vcmp.lt.s32.totalorder %v2691, 16
      %vm2700 = vcmp.lt.s32.totalorder %v2692, 16
      %vm2701 = vcmp.lt.s32.totalorder %v2693, 16
      %vm2702 = vcmp.lt.s32.totalorder %v2694, 16
      %vm2703 = vmand %vm2695, %vm2699
      %vm2704 = vmand %vm2696, %vm2700
      %vm2705 = vmand %vm2697, %vm2701
      %vm2706 = vmand %vm2698, %vm2702
      %v2707 = vsel %vm2703, 1, 0
      %v2708 = vsel %vm2704, 1, 0
      %v2709 = vsel %vm2705, 1, 0
      %v2710 = vsel %vm2706, 1, 0
      %vm2711 = vcmp.eq.s32.totalorder %v2707, 1
      %vm2712 = vcmp.eq.s32.totalorder %v2708, 1
      %vm2713 = vcmp.eq.s32.totalorder %v2709, 1
      %vm2714 = vcmp.eq.s32.totalorder %v2710, 1
      %v2715 = vsel %vm2711, %v2635, 0.0
      %v2716 = vsel %vm2712, %v2625, 0.0
      %v2717 = vsel %vm2713, %v2627, 0.0
      %v2718 = vsel %vm2714, %v2629, 0.0
      %v2719 = vlaneseq
      %v2720 = vshrl.u32 %v2719, 7
      %v2721 = vsub.s32 0, %v2720
      %v2722 = vrot.slane %v2637, %v2721
      %v2723 = vmul.f32 %v2715, %v2722
      %v2724 = vmul.f32 %v2716, %v2722
      %v2725 = vmul.f32 %v2717, %v2722
      %v2726 = vmul.f32 %v2718, %v2722
      %v2727 = vadd.f32 %v2723, 0.0
      %v2728 = vadd.f32 %v2724, 0.0
      %v2729 = vadd.f32 %v2725, 0.0
      %v2730 = vadd.f32 %v2726, 0.0
      %v2731 = vadd.s32 %v2687, 4294967295
      %v2732 = vadd.s32 %v2688, 4294967295
      %v2733 = vadd.s32 %v2689, 4294967295
      %v2734 = vadd.s32 %v2690, 4294967295
      %vm2735 = vcmp.ge.s32.totalorder %v2731, 0
      %vm2736 = vcmp.ge.s32.totalorder %v2732, 0
      %vm2737 = vcmp.ge.s32.totalorder %v2733, 0
      %vm2738 = vcmp.ge.s32.totalorder %v2734, 0
      %vm2739 = vcmp.lt.s32.totalorder %v2731, 16
      %vm2740 = vcmp.lt.s32.totalorder %v2732, 16
      %vm2741 = vcmp.lt.s32.totalorder %v2733, 16
      %vm2742 = vcmp.lt.s32.totalorder %v2734, 16
      %vm2743 = vmand %vm2735, %vm2739
      %vm2744 = vmand %vm2736, %vm2740
      %vm2745 = vmand %vm2737, %vm2741
      %vm2746 = vmand %vm2738, %vm2742
      %v2747 = vsel %vm2743, 1, 0
      %v2748 = vsel %vm2744, 1, 0
      %v2749 = vsel %vm2745, 1, 0
      %v2750 = vsel %vm2746, 1, 0
      %vm2751 = vcmp.eq.s32.totalorder %v2747, 1
      %vm2752 = vcmp.eq.s32.totalorder %v2748, 1
      %vm2753 = vcmp.eq.s32.totalorder %v2749, 1
      %vm2754 = vcmp.eq.s32.totalorder %v2750, 1
      %vm2757 = vcmask 1046528
      %v2758 = vrot.slane %v2635, 1
      %v2759 = vrot.slane %v2625, 1
      %v2760 = vsel %vm2757, %v2758, %v2759
      %v2761 = vrot.slane %v2627, 1
      %v2762 = vsel %vm2757, %v2759, %v2761
      %v2763 = vrot.slane %v2629, 1
      %v2764 = vsel %vm2757, %v2761, %v2763
      %v2765 = vrot.slane %v2636, 1
      %v2766 = vsel %vm2757, %v2763, %v2765
      %v2771 = vsel %vm2751, %v2760, 0.0
      %v2772 = vsel %vm2752, %v2762, 0.0
      %v2773 = vsel %vm2753, %v2764, 0.0
      %v2774 = vsel %vm2754, %v2766, 0.0
      %v2775 = vlaneseq
      %v2776 = vshrl.u32 %v2775, 7
      %v2777 = vsub.s32 1, %v2776
      %v2778 = vrot.slane %v2637, %v2777
      %v2779 = vmul.f32 %v2771, %v2778
      %v2780 = vmul.f32 %v2772, %v2778
      %v2781 = vmul.f32 %v2773, %v2778
      %v2782 = vmul.f32 %v2774, %v2778
      %v2783 = vadd.f32 %v2727, %v2779
      %v2784 = vadd.f32 %v2728, %v2780
      %v2785 = vadd.f32 %v2729, %v2781
      %v2786 = vadd.f32 %v2730, %v2782
      %vm2787 = vcmp.ge.s32.totalorder %v2687, 0
      %vm2788 = vcmp.ge.s32.totalorder %v2688, 0
      %vm2789 = vcmp.ge.s32.totalorder %v2689, 0
      %vm2790 = vcmp.ge.s32.totalorder %v2690, 0
      %vm2791 = vcmp.lt.s32.totalorder %v2687, 16
      %vm2792 = vcmp.lt.s32.totalorder %v2688, 16
      %vm2793 = vcmp.lt.s32.totalorder %v2689, 16
      %vm2794 = vcmp.lt.s32.totalorder %v2690, 16
      %vm2795 = vmand %vm2787, %vm2791
      %vm2796 = vmand %vm2788, %vm2792
      %vm2797 = vmand %vm2789, %vm2793
      %vm2798 = vmand %vm2790, %vm2794
      %v2799 = vsel %vm2795, 1, 0
      %v2800 = vsel %vm2796, 1, 0
      %v2801 = vsel %vm2797, 1, 0
      %v2802 = vsel %vm2798, 1, 0
      %vm2803 = vcmp.eq.s32.totalorder %v2799, 1
      %vm2804 = vcmp.eq.s32.totalorder %v2800, 1
      %vm2805 = vcmp.eq.s32.totalorder %v2801, 1
      %vm2806 = vcmp.eq.s32.totalorder %v2802, 1
      %vm2807 = vcmask 1045504
      %v2808 = vrot.slane %v2635, 2
      %v2809 = vrot.slane %v2625, 2
      %v2810 = vsel %vm2807, %v2808, %v2809
      %v2811 = vrot.slane %v2627, 2
      %v2812 = vsel %vm2807, %v2809, %v2811
      %v2813 = vrot.slane %v2629, 2
      %v2814 = vsel %vm2807, %v2811, %v2813
      %v2815 = vrot.slane %v2636, 2
      %v2816 = vsel %vm2807, %v2813, %v2815
      %v2821 = vsel %vm2803, %v2810, 0.0
      %v2822 = vsel %vm2804, %v2812, 0.0
      %v2823 = vsel %vm2805, %v2814, 0.0
      %v2824 = vsel %vm2806, %v2816, 0.0
      %v2825 = vlaneseq
      %v2826 = vshrl.u32 %v2825, 7
      %v2827 = vsub.s32 2, %v2826
      %v2828 = vrot.slane %v2637, %v2827
      %v2829 = vmul.f32 %v2821, %v2828
      %v2830 = vmul.f32 %v2822, %v2828
      %v2831 = vmul.f32 %v2823, %v2828
      %v2832 = vmul.f32 %v2824, %v2828
      %v2833 = vadd.f32 %v2783, %v2829
      %v2834 = vadd.f32 %v2784, %v2830
      %v2835 = vadd.f32 %v2785, %v2831
      %v2836 = vadd.f32 %v2786, %v2832
      %v2837 = vadd.s32 %v2687, 1
      %v2838 = vadd.s32 %v2688, 1
      %v2839 = vadd.s32 %v2689, 1
      %v2840 = vadd.s32 %v2690, 1
      %vm2841 = vcmp.ge.s32.totalorder %v2837, 0
      %vm2842 = vcmp.ge.s32.totalorder %v2838, 0
      %vm2843 = vcmp.ge.s32.totalorder %v2839, 0
      %vm2844 = vcmp.ge.s32.totalorder %v2840, 0
      %vm2845 = vcmp.lt.s32.totalorder %v2837, 16
      %vm2846 = vcmp.lt.s32.totalorder %v2838, 16
      %vm2847 = vcmp.lt.s32.totalorder %v2839, 16
      %vm2848 = vcmp.lt.s32.totalorder %v2840, 16
      %vm2849 = vmand %vm2841, %vm2845
      %vm2850 = vmand %vm2842, %vm2846
      %vm2851 = vmand %vm2843, %vm2847
      %vm2852 = vmand %vm2844, %vm2848
      %v2853 = vsel %vm2849, 1, 0
      %v2854 = vsel %vm2850, 1, 0
      %v2855 = vsel %vm2851, 1, 0
      %v2856 = vsel %vm2852, 1, 0
      %vm2857 = vcmp.eq.s32.totalorder %v2853, 1
      %vm2858 = vcmp.eq.s32.totalorder %v2854, 1
      %vm2859 = vcmp.eq.s32.totalorder %v2855, 1
      %vm2860 = vcmp.eq.s32.totalorder %v2856, 1
      %vm2861 = vcmask 1044480
      %v2862 = vrot.slane %v2635, 3
      %v2863 = vrot.slane %v2625, 3
      %v2864 = vsel %vm2861, %v2862, %v2863
      %v2865 = vrot.slane %v2627, 3
      %v2866 = vsel %vm2861, %v2863, %v2865
      %v2867 = vrot.slane %v2629, 3
      %v2868 = vsel %vm2861, %v2865, %v2867
      %v2869 = vrot.slane %v2636, 3
      %v2870 = vsel %vm2861, %v2867, %v2869
      %v2875 = vsel %vm2857, %v2864, 0.0
      %v2876 = vsel %vm2858, %v2866, 0.0
      %v2877 = vsel %vm2859, %v2868, 0.0
      %v2878 = vsel %vm2860, %v2870, 0.0
      %v2879 = vlaneseq
      %v2880 = vshrl.u32 %v2879, 7
      %v2881 = vsub.s32 3, %v2880
      %v2882 = vrot.slane %v2637, %v2881
      %v2883 = vmul.f32 %v2875, %v2882
      %v2884 = vmul.f32 %v2876, %v2882
      %v2885 = vmul.f32 %v2877, %v2882
      %v2886 = vmul.f32 %v2878, %v2882
      %v2887 = vadd.f32 %v2833, %v2883
      %v2888 = vadd.f32 %v2834, %v2884
      %v2889 = vadd.f32 %v2835, %v2885
      %v2890 = vadd.f32 %v2836, %v2886
      %v2891 = vadd.s32 %v2687, 2
      %v2892 = vadd.s32 %v2688, 2
      %v2893 = vadd.s32 %v2689, 2
      %v2894 = vadd.s32 %v2690, 2
      %vm2895 = vcmp.ge.s32.totalorder %v2891, 0
      %vm2896 = vcmp.ge.s32.totalorder %v2892, 0
      %vm2897 = vcmp.ge.s32.totalorder %v2893, 0
      %vm2898 = vcmp.ge.s32.totalorder %v2894, 0
      %vm2899 = vcmp.lt.s32.totalorder %v2891, 16
      %vm2900 = vcmp.lt.s32.totalorder %v2892, 16
      %vm2901 = vcmp.lt.s32.totalorder %v2893, 16
      %vm2902 = vcmp.lt.s32.totalorder %v2894, 16
      %vm2903 = vmand %vm2895, %vm2899
      %vm2904 = vmand %vm2896, %vm2900
      %vm2905 = vmand %vm2897, %vm2901
      %vm2906 = vmand %vm2898, %vm2902
      %v2907 = vsel %vm2903, 1, 0
      %v2908 = vsel %vm2904, 1, 0
      %v2909 = vsel %vm2905, 1, 0
      %v2910 = vsel %vm2906, 1, 0
      %vm2911 = vcmp.eq.s32.totalorder %v2907, 1
      %vm2912 = vcmp.eq.s32.totalorder %v2908, 1
      %vm2913 = vcmp.eq.s32.totalorder %v2909, 1
      %vm2914 = vcmp.eq.s32.totalorder %v2910, 1
      %vm2915 = vcmask 1043456
      %v2916 = vrot.slane %v2635, 4
      %v2917 = vrot.slane %v2625, 4
      %v2918 = vsel %vm2915, %v2916, %v2917
      %v2919 = vrot.slane %v2627, 4
      %v2920 = vsel %vm2915, %v2917, %v2919
      %v2921 = vrot.slane %v2629, 4
      %v2922 = vsel %vm2915, %v2919, %v2921
      %v2923 = vrot.slane %v2636, 4
      %v2924 = vsel %vm2915, %v2921, %v2923
      %v2929 = vsel %vm2911, %v2918, 0.0
      %v2930 = vsel %vm2912, %v2920, 0.0
      %v2931 = vsel %vm2913, %v2922, 0.0
      %v2932 = vsel %vm2914, %v2924, 0.0
      %v2933 = vlaneseq
      %v2934 = vshrl.u32 %v2933, 7
      %v2935 = vsub.s32 4, %v2934
      %v2936 = vrot.slane %v2637, %v2935
      %v2937 = vmul.f32 %v2929, %v2936
      %v2938 = vmul.f32 %v2930, %v2936
      %v2939 = vmul.f32 %v2931, %v2936
      %v2940 = vmul.f32 %v2932, %v2936
      %v2941 = vadd.f32 %v2887, %v2937
      %v2942 = vadd.f32 %v2888, %v2938
      %v2943 = vadd.f32 %v2889, %v2939
      %v2944 = vadd.f32 %v2890, %v2940
      %v2945 = vld [vmem:[%s12 + $0xa] sm:$0x1]
      %v2946 = vlaneseq
      %v2947 = vshrl.u32 %v2946, 7
      %v2948 = vsub.s32 0, %v2947
      %v2949 = vrot.slane %v2945, %v2948
      %v2950 = vadd.f32 %v2941, %v2949
      %v2951 = vadd.f32 %v2942, %v2949
      %v2952 = vadd.f32 %v2943, %v2949
      %v2953 = vadd.f32 %v2944, %v2949
      %v2954 = vxor.u32 %v2950, 2147483648
      %v2955 = vxor.u32 %v2951, 2147483648
      %v2956 = vxor.u32 %v2952, 2147483648
      %v2957 = vxor.u32 %v2953, 2147483648
      %v2958 = vmul.f32 %v2954, 1.442695
      %v2959 = vpow.pop %v2958
      %v2960 = vmul.f32 %v2955, 1.442695
      %v2961 = vpow.pop %v2960
      %v2962 = vmul.f32 %v2956, 1.442695
      %v2963 = vpow.pop %v2962
      %v2964 = vmul.f32 %v2957, 1.442695
      %v2965 = vpow.pop %v2964
      %v2966 = vadd.f32 %v2959, 1.0
      %v2967 = vadd.f32 %v2961, 1.0
      %v2968 = vadd.f32 %v2963, 1.0
      %v2969 = vadd.f32 %v2965, 1.0
      %v2970 = vrcp.pop %v2966
      %v2971 = vmul.f32 1.0, %v2970
      %v2972 = vrcp.pop %v2967
      %v2973 = vmul.f32 1.0, %v2972
      %v2974 = vrcp.pop %v2968
      %v2975 = vmul.f32 1.0, %v2974
      %v2976 = vrcp.pop %v2969
      %v2977 = vmul.f32 1.0, %v2976
      %v2978 = vmul.f32 %v2950, %v2971
      %v2979 = vmul.f32 %v2951, %v2973
      %v2980 = vmul.f32 %v2952, %v2975
      %v2981 = vmul.f32 %v2953, %v2977
      %v2982 = vsel %vm2357, %v2978, 0.0
      %2983 = vadd.xlane.f32.xlu0 %v2982
      %v2984 = vpop.xlane.xlu0 %2983
      %v2985 = vsel %vm2357, %v2979, 0.0
      %2986 = vadd.xlane.f32.xlu0 %v2985
      %v2987 = vpop.xlane.xlu0 %2986
      %v2988 = vsel %vm2357, %v2980, 0.0
      %2989 = vadd.xlane.f32.xlu0 %v2988
      %v2990 = vpop.xlane.xlu0 %2989
      %v2991 = vsel %vm2357, %v2981, 0.0
      %2992 = vadd.xlane.f32.xlu0 %v2991
      %v2993 = vpop.xlane.xlu0 %2992
      %v2994 = vrcp.pop 64.0
      %v2995 = vmul.f32 %v2984, %v2994
      %v2996 = vmul.f32 %v2987, %v2994
      %v2997 = vmul.f32 %v2990, %v2994
      %v2998 = vmul.f32 %v2993, %v2994
      %v2999 = vsub.f32 %v2978, %v2995
      %v3000 = vsub.f32 %v2979, %v2996
      %v3001 = vsub.f32 %v2980, %v2997
      %v3002 = vsub.f32 %v2981, %v2998
      %v3003 = vmul.f32 %v2999, %v2999
      %v3004 = vmul.f32 %v3000, %v3000
      %v3005 = vmul.f32 %v3001, %v3001
      %v3006 = vmul.f32 %v3002, %v3002
      %v3007 = vsel %vm2357, %v3003, 0.0
      %3008 = vadd.xlane.f32.xlu0 %v3007
      %v3009 = vpop.xlane.xlu0 %3008
      %v3010 = vsel %vm2357, %v3004, 0.0
      %3011 = vadd.xlane.f32.xlu0 %v3010
      %v3012 = vpop.xlane.xlu0 %3011
      %v3013 = vsel %vm2357, %v3005, 0.0
      %3014 = vadd.xlane.f32.xlu0 %v3013
      %v3015 = vpop.xlane.xlu0 %3014
      %v3016 = vsel %vm2357, %v3006, 0.0
      %3017 = vadd.xlane.f32.xlu0 %v3016
      %v3018 = vpop.xlane.xlu0 %3017
      %v3019 = vmul.f32 %v3009, %v2994
      %v3020 = vmul.f32 %v3012, %v2994
      %v3021 = vmul.f32 %v3015, %v2994
      %v3022 = vmul.f32 %v3018, %v2994
      %v3023 = vmax.f32 %v3019, 1e-06
      %v3024 = vmax.f32 %v3020, 1e-06
      %v3025 = vmax.f32 %v3021, 1e-06
      %v3026 = vmax.f32 %v3022, 1e-06
      %v3027 = vrsqrt.pop %v3023
      %v3028 = vrsqrt.pop %v3024
      %v3029 = vrsqrt.pop %v3025
      %v3030 = vrsqrt.pop %v3026
      %v3031 = vmul.f32 %v2999, %v3027
      %v3032 = vmul.f32 %v3000, %v3028
      %v3033 = vmul.f32 %v3001, %v3029
      %v3034 = vmul.f32 %v3002, %v3030
      %v3035 = vld [vmem:[%s12 + $0xb] sm:$0x1]
      %v3036 = vlaneseq
      %v3037 = vshrl.u32 %v3036, 7
      %v3038 = vsub.s32 0, %v3037
      %v3039 = vrot.slane %v3035, %v3038
      %v3040 = vmul.f32 %v3031, %v3039
      %v3041 = vmul.f32 %v3032, %v3039
      %v3042 = vmul.f32 %v3033, %v3039
      %v3043 = vmul.f32 %v3034, %v3039
      %v3044 = vpack.c.bf16 %v3041, %v3040
      %v3045 = vpack.c.bf16 %v3043, %v3042
      %v3046 = vld [vmem:[%s9] sm:$0xf]
      %v3047 = vld [vmem:[%s9 + $0x4] sm:$0xf]
      %v3048 = vld [vmem:[%s9 + $0x8] sm:$0xf]
      %v3049 = vld [vmem:[%s9 + $0xc] sm:$0xf]
      %v3050 = vld [vmem:[%s9 + $0x10] sm:$0xf]
      %v3051 = vld [vmem:[%s9 + $0x14] sm:$0xf]
      %v3052 = vld [vmem:[%s9 + $0x18] sm:$0xf]
      %v3053 = vld [vmem:[%s9 + $0x1c] sm:$0xf]
      %v3062 = vunpack.c.l.b16 %v3046
      %v3063 = vunpack.c.l.b16 %v3047
      %v3064 = vunpack.c.l.b16 %v3048
      %v3065 = vunpack.c.l.b16 %v3049
      %v3066 = vunpack.c.l.b16 %v3050
      %v3067 = vunpack.c.l.b16 %v3051
      %v3068 = vunpack.c.l.b16 %v3052
      %v3069 = vunpack.c.l.b16 %v3053
      %v3070 = vpack.c.b16 %v3063, %v3062
      %v3071 = vpack.c.b16 %v3065, %v3064
      %v3072 = vpack.c.b16 %v3067, %v3066
      %v3073 = vpack.c.b16 %v3069, %v3068
      %v3079 = vsel %vm2357, %v3044, 0
      %v3082 = vsel %vm2357, %v3045, 0
      %3084 = vmatprep.subr.bf16.mxu0 0
      %3085 = vmatpush1.bf16.msra.mxu0 0
      %3086 = vmatprep.subr.bf16.mxu0 0
      %3087 = vmatpush1.bf16.msra.mxu0 0
      %3088 = vmatprep.subr.bf16.mxu0 0
      %3089 = vmatpush1.bf16.msra.mxu0 0
      %3090 = vmatprep.subr.bf16.mxu0 0
      %3091 = vmatpush1.bf16.msra.mxu0 0
      %3092 = vmatprep.subr.bf16.mxu0 0
      %3093 = vmatpush1.bf16.msra.mxu0 %v3073
      %3094 = vmatprep.subr.bf16.mxu0 0
      %3095 = vmatpush1.bf16.msra.mxu0 %v3072
      %3096 = vmatprep.subr.bf16.mxu0 0
      %3097 = vmatpush1.bf16.msra.mxu0 %v3071
      %3098 = vmatprep.subr.bf16.mxu0 0
      %3099 = vmatpush1.bf16.msra.mxu0 %v3070
      %3100 = vmatprep.subr.bf16.mxu0 0
      %3101 = vmatpush2.bf16.msra.mxu0 0
      %3102 = vmatprep.subr.bf16.mxu0 0
      %3103 = vmatpush2.bf16.msra.mxu0 0
      %3104 = vmatprep.subr.bf16.mxu0 0
      %3105 = vmatpush2.bf16.msra.mxu0 0
      %3106 = vmatprep.subr.bf16.mxu0 0
      %3107 = vmatpush2.bf16.msra.mxu0 0
      %3108 = vmatprep.subr.bf16.mxu0 0
      %3109 = vmatpush2.bf16.msra.mxu0 0
      %3110 = vmatprep.subr.bf16.mxu0 0
      %3111 = vmatpush2.bf16.msra.mxu0 0
      %3112 = vmatprep.subr.bf16.mxu0 0
      %3113 = vmatpush2.bf16.msra.mxu0 0
      %3114 = vmatprep.subr.bf16.mxu0 0
      %3115 = vmatpush2.bf16.msra.mxu0 0
      %3116 = vmatprep.mubr.bf16.mxu0 0
      %3117 = vmatmul.mubr.bf16.gmra.mxu0 %v3079
      %v3118 = vpop.f32.mrf.mxu0
      %v3119 = vadd.f32 0.0, %v3118
      %v3120 = vpop.f32.mrf.mxu0
      %v3121 = vpop.f32.mrf.mxu0
      %v3122 = vadd.f32 0.0, %v3121
      %v3123 = vpop.f32.mrf.mxu0
      %3124 = vmatprep.mubr.bf16.mxu0 0
      %3125 = vmatmul.mubr.bf16.gmra.mxu0 %v3082
      %v3126 = vpop.f32.mrf.mxu0
      %v3127 = vadd.f32 0.0, %v3126
      %v3128 = vpop.f32.mrf.mxu0
      %v3129 = vpop.f32.mrf.mxu0
      %v3130 = vadd.f32 0.0, %v3129
      %v3131 = vpop.f32.mrf.mxu0
      %3132 = vdwg.mxu0
      %v3133 = vadd.f32 %v2422, %v3119
      %v3134 = vadd.f32 %v2423, %v3122
      %v3135 = vadd.f32 %v2424, %v3127
      %v3136 = vadd.f32 %v2425, %v3130
      %v3137 = vld [vmem:[%s12 + $0xc] sm:$0x1]
      %v3138 = vlaneseq
      %v3139 = vshrl.u32 %v3138, 7
      %v3140 = vsub.s32 0, %v3139
      %v3141 = vrot.slane %v3137, %v3140
      %v3142 = vadd.f32 %v3133, %v3141
      %v3143 = vadd.f32 %v3134, %v3141
      %v3144 = vadd.f32 %v3135, %v3141
      %v3145 = vadd.f32 %v3136, %v3141
      %v3146 = vld [vmem:[%s12 + $0xd] sm:$0x1]
      %v3147 = vld [vmem:[%s12 + $0xe] sm:$0x1]
      %v3148 = vld [vmem:[%s12 + $0xf] sm:$0x1]
      %v3149 = vld [vmem:[%s12 + $0x10] sm:$0x1]
      %v3150 = vsel %vm453, %v3142, 0.0
      %3151 = vadd.xlane.f32.xlu0 %v3150
      %v3152 = vpop.xlane.xlu0 %3151
      %v3153 = vsel %vm453, %v3143, 0.0
      %3154 = vadd.xlane.f32.xlu0 %v3153
      %v3155 = vpop.xlane.xlu0 %3154
      %v3156 = vsel %vm453, %v3144, 0.0
      %3157 = vadd.xlane.f32.xlu0 %v3156
      %v3158 = vpop.xlane.xlu0 %3157
      %v3159 = vsel %vm453, %v3145, 0.0
      %3160 = vadd.xlane.f32.xlu0 %v3159
      %v3161 = vpop.xlane.xlu0 %3160
      %v3162 = vmul.f32 %v3152, %v466
      %v3163 = vmul.f32 %v3155, %v466
      %v3164 = vmul.f32 %v3158, %v466
      %v3165 = vmul.f32 %v3161, %v466
      %v3166 = vsub.f32 %v3142, %v3162
      %v3167 = vsub.f32 %v3143, %v3163
      %v3168 = vsub.f32 %v3144, %v3164
      %v3169 = vsub.f32 %v3145, %v3165
      %v3170 = vmul.f32 %v3166, %v3166
      %v3171 = vmul.f32 %v3167, %v3167
      %v3172 = vmul.f32 %v3168, %v3168
      %v3173 = vmul.f32 %v3169, %v3169
      %v3174 = vsel %vm453, %v3170, 0.0
      %3175 = vadd.xlane.f32.xlu0 %v3174
      %v3176 = vpop.xlane.xlu0 %3175
      %v3177 = vsel %vm453, %v3171, 0.0
      %3178 = vadd.xlane.f32.xlu0 %v3177
      %v3179 = vpop.xlane.xlu0 %3178
      %v3180 = vsel %vm453, %v3172, 0.0
      %3181 = vadd.xlane.f32.xlu0 %v3180
      %v3182 = vpop.xlane.xlu0 %3181
      %v3183 = vsel %vm453, %v3173, 0.0
      %3184 = vadd.xlane.f32.xlu0 %v3183
      %v3185 = vpop.xlane.xlu0 %3184
      %v3186 = vmul.f32 %v3176, %v466
      %v3187 = vmul.f32 %v3179, %v466
      %v3188 = vmul.f32 %v3182, %v466
      %v3189 = vmul.f32 %v3185, %v466
      %v3190 = vadd.f32 %v3186, 1e-05
      %v3191 = vadd.f32 %v3187, 1e-05
      %v3192 = vadd.f32 %v3188, 1e-05
      %v3193 = vadd.f32 %v3189, 1e-05
      %v3194 = vrsqrt.pop %v3190
      %v3195 = vrsqrt.pop %v3191
      %v3196 = vrsqrt.pop %v3192
      %v3197 = vrsqrt.pop %v3193
      %v3198 = vmul.f32 %v3166, %v3194
      %v3199 = vmul.f32 %v3167, %v3195
      %v3200 = vmul.f32 %v3168, %v3196
      %v3201 = vmul.f32 %v3169, %v3197
      %v3202 = vlaneseq
      %v3203 = vshrl.u32 %v3202, 7
      %v3204 = vsub.s32 0, %v3203
      %v3205 = vrot.slane %v3146, %v3204
      %v3206 = vmul.f32 %v3198, %v3205
      %v3207 = vmul.f32 %v3199, %v3205
      %v3208 = vmul.f32 %v3200, %v3205
      %v3209 = vmul.f32 %v3201, %v3205
      %v3210 = vlaneseq
      %v3211 = vshrl.u32 %v3210, 7
      %v3212 = vsub.s32 0, %v3211
      %v3213 = vrot.slane %v3147, %v3212
      %v3214 = vadd.f32 %v3206, %v3213
      %v3215 = vadd.f32 %v3207, %v3213
      %v3216 = vadd.f32 %v3208, %v3213
      %v3217 = vadd.f32 %v3209, %v3213
      %v3218 = vpack.c.bf16 %v3215, %v3214
      %v3219 = vpack.c.bf16 %v3217, %v3216
      %v3220 = vld [vmem:[%s10] sm:$0xf]
      %v3221 = vld [vmem:[%s10 + $0x4] sm:$0xf]
      %v3222 = vld [vmem:[%s10 + $0x8] sm:$0xf]
      %v3223 = vld [vmem:[%s10 + $0xc] sm:$0xf]
      %v3224 = vlaneseq
      %v3225 = vshrl.u32 %v3224, 7
      %v3226 = vsub.s32 0, %v3225
      %v3227 = vrot.slane %v3148, %v3226
      %v3232 = vunpack.c.l.b16 %v3220
      %v3233 = vunpack.c.l.b16 %v3221
      %v3234 = vunpack.c.l.b16 %v3222
      %v3235 = vunpack.c.l.b16 %v3223
      %v3236 = vpack.c.b16 %v3233, %v3232
      %v3237 = vpack.c.b16 %v3235, %v3234
      %v3241 = vsel %vm453, %v3218, 0
      %v3244 = vsel %vm453, %v3219, 0
      %3246 = vmatprep.subr.bf16.mxu0 0
      %3247 = vmatpush1.bf16.msra.mxu0 0
      %3248 = vmatprep.subr.bf16.mxu0 0
      %3249 = vmatpush1.bf16.msra.mxu0 0
      %3250 = vmatprep.subr.bf16.mxu0 0
      %3251 = vmatpush1.bf16.msra.mxu0 0
      %3252 = vmatprep.subr.bf16.mxu0 0
      %3253 = vmatpush1.bf16.msra.mxu0 0
      %3254 = vmatprep.subr.bf16.mxu0 0
      %3255 = vmatpush1.bf16.msra.mxu0 0
      %3256 = vmatprep.subr.bf16.mxu0 0
      %3257 = vmatpush1.bf16.msra.mxu0 0
      %3258 = vmatprep.subr.bf16.mxu0 0
      %3259 = vmatpush1.bf16.msra.mxu0 %v3237
      %3260 = vmatprep.subr.bf16.mxu0 0
      %3261 = vmatpush1.bf16.msra.mxu0 %v3236
      %3262 = vmatprep.subr.bf16.mxu0 0
      %3263 = vmatpush2.bf16.msra.mxu0 0
      %3264 = vmatprep.subr.bf16.mxu0 0
      %3265 = vmatpush2.bf16.msra.mxu0 0
      %3266 = vmatprep.subr.bf16.mxu0 0
      %3267 = vmatpush2.bf16.msra.mxu0 0
      %3268 = vmatprep.subr.bf16.mxu0 0
      %3269 = vmatpush2.bf16.msra.mxu0 0
      %3270 = vmatprep.subr.bf16.mxu0 0
      %3271 = vmatpush2.bf16.msra.mxu0 0
      %3272 = vmatprep.subr.bf16.mxu0 0
      %3273 = vmatpush2.bf16.msra.mxu0 0
      %3274 = vmatprep.subr.bf16.mxu0 0
      %3275 = vmatpush2.bf16.msra.mxu0 0
      %3276 = vmatprep.subr.bf16.mxu0 0
      %3277 = vmatpush2.bf16.msra.mxu0 0
      %3278 = vmatprep.mubr.bf16.mxu0 0
      %3279 = vmatmul.mubr.bf16.gmra.mxu0 %v3241
      %v3280 = vpop.f32.mrf.mxu0
      %v3281 = vadd.f32 %v3227, %v3280
      %v3282 = vpop.f32.mrf.mxu0
      %v3283 = vpop.f32.mrf.mxu0
      %v3284 = vadd.f32 %v3227, %v3283
      %v3285 = vpop.f32.mrf.mxu0
      %3286 = vmatprep.mubr.bf16.mxu0 0
      %3287 = vmatmul.mubr.bf16.gmra.mxu0 %v3244
      %v3288 = vpop.f32.mrf.mxu0
      %v3289 = vadd.f32 %v3227, %v3288
      %v3290 = vpop.f32.mrf.mxu0
      %v3291 = vpop.f32.mrf.mxu0
      %v3292 = vadd.f32 %v3227, %v3291
      %v3293 = vpop.f32.mrf.mxu0
      %3294 = vdwg.mxu0
      %v3295 = vxor.u32 %v3281, 2147483648
      %v3296 = vxor.u32 %v3284, 2147483648
      %v3297 = vxor.u32 %v3289, 2147483648
      %v3298 = vxor.u32 %v3292, 2147483648
      %v3299 = vmul.f32 %v3295, 1.442695
      %v3300 = vpow.pop %v3299
      %v3301 = vmul.f32 %v3296, 1.442695
      %v3302 = vpow.pop %v3301
      %v3303 = vmul.f32 %v3297, 1.442695
      %v3304 = vpow.pop %v3303
      %v3305 = vmul.f32 %v3298, 1.442695
      %v3306 = vpow.pop %v3305
      %v3307 = vadd.f32 %v3300, 1.0
      %v3308 = vadd.f32 %v3302, 1.0
      %v3309 = vadd.f32 %v3304, 1.0
      %v3310 = vadd.f32 %v3306, 1.0
      %v3311 = vrcp.pop %v3307
      %v3312 = vmul.f32 1.0, %v3311
      %v3313 = vrcp.pop %v3308
      %v3314 = vmul.f32 1.0, %v3313
      %v3315 = vrcp.pop %v3309
      %v3316 = vmul.f32 1.0, %v3315
      %v3317 = vrcp.pop %v3310
      %v3318 = vmul.f32 1.0, %v3317
      %v3319 = vmul.f32 %v3281, %v3312
      %v3320 = vmul.f32 %v3284, %v3314
      %v3321 = vmul.f32 %v3289, %v3316
      %v3322 = vmul.f32 %v3292, %v3318
      %v3323 = vpack.c.bf16 %v3320, %v3319
      %v3324 = vpack.c.bf16 %v3322, %v3321
      %v3325 = vld [vmem:[%s11] sm:$0xf]
      %v3326 = vld [vmem:[%s11 + $0x4] sm:$0xf]
      %v3327 = vld [vmem:[%s11 + $0x8] sm:$0xf]
      %v3328 = vld [vmem:[%s11 + $0xc] sm:$0xf]
      %v3329 = vld [vmem:[%s11 + $0x10] sm:$0xf]
      %v3330 = vld [vmem:[%s11 + $0x14] sm:$0xf]
      %v3331 = vld [vmem:[%s11 + $0x18] sm:$0xf]
      %v3332 = vld [vmem:[%s11 + $0x1c] sm:$0xf]
      %v3333 = vld [vmem:[%s11 + $0x20] sm:$0xf]
      %v3334 = vld [vmem:[%s11 + $0x24] sm:$0xf]
      %v3335 = vld [vmem:[%s11 + $0x28] sm:$0xf]
      %v3336 = vld [vmem:[%s11 + $0x2c] sm:$0xf]
      %v3337 = vld [vmem:[%s11 + $0x30] sm:$0xf]
      %v3338 = vld [vmem:[%s11 + $0x34] sm:$0xf]
      %v3339 = vld [vmem:[%s11 + $0x38] sm:$0xf]
      %v3340 = vld [vmem:[%s11 + $0x3c] sm:$0xf]
      %v3341 = vlaneseq
      %v3342 = vshrl.u32 %v3341, 7
      %v3343 = vsub.s32 0, %v3342
      %v3344 = vrot.slane %v3149, %v3343
      %v3361 = vunpack.c.l.b16 %v3325
      %v3362 = vunpack.c.l.b16 %v3326
      %v3363 = vunpack.c.l.b16 %v3327
      %v3364 = vunpack.c.l.b16 %v3328
      %v3365 = vunpack.c.l.b16 %v3329
      %v3366 = vunpack.c.l.b16 %v3330
      %v3367 = vunpack.c.l.b16 %v3331
      %v3368 = vunpack.c.l.b16 %v3332
      %v3369 = vunpack.c.l.b16 %v3333
      %v3370 = vunpack.c.l.b16 %v3334
      %v3371 = vunpack.c.l.b16 %v3335
      %v3372 = vunpack.c.l.b16 %v3336
      %v3373 = vunpack.c.l.b16 %v3337
      %v3374 = vunpack.c.l.b16 %v3338
      %v3375 = vunpack.c.l.b16 %v3339
      %v3376 = vunpack.c.l.b16 %v3340
      %v3377 = vpack.c.b16 %v3362, %v3361
      %v3378 = vpack.c.b16 %v3364, %v3363
      %v3379 = vpack.c.b16 %v3366, %v3365
      %v3380 = vpack.c.b16 %v3368, %v3367
      %v3381 = vpack.c.b16 %v3370, %v3369
      %v3382 = vpack.c.b16 %v3372, %v3371
      %v3383 = vpack.c.b16 %v3374, %v3373
      %v3384 = vpack.c.b16 %v3376, %v3375
      %3393 = vmatprep.subr.bf16.mxu0 0
      %3394 = vmatpush1.bf16.msra.mxu0 %v3384
      %3395 = vmatprep.subr.bf16.mxu0 0
      %3396 = vmatpush1.bf16.msra.mxu0 %v3383
      %3397 = vmatprep.subr.bf16.mxu0 0
      %3398 = vmatpush1.bf16.msra.mxu0 %v3382
      %3399 = vmatprep.subr.bf16.mxu0 0
      %3400 = vmatpush1.bf16.msra.mxu0 %v3381
      %3401 = vmatprep.subr.bf16.mxu0 0
      %3402 = vmatpush1.bf16.msra.mxu0 %v3380
      %3403 = vmatprep.subr.bf16.mxu0 0
      %3404 = vmatpush1.bf16.msra.mxu0 %v3379
      %3405 = vmatprep.subr.bf16.mxu0 0
      %3406 = vmatpush1.bf16.msra.mxu0 %v3378
      %3407 = vmatprep.subr.bf16.mxu0 0
      %3408 = vmatpush1.bf16.msra.mxu0 %v3377
      %3409 = vmatprep.subr.bf16.mxu0 0
      %3410 = vmatpush2.bf16.msra.mxu0 0
      %3411 = vmatprep.subr.bf16.mxu0 0
      %3412 = vmatpush2.bf16.msra.mxu0 0
      %3413 = vmatprep.subr.bf16.mxu0 0
      %3414 = vmatpush2.bf16.msra.mxu0 0
      %3415 = vmatprep.subr.bf16.mxu0 0
      %3416 = vmatpush2.bf16.msra.mxu0 0
      %3417 = vmatprep.subr.bf16.mxu0 0
      %3418 = vmatpush2.bf16.msra.mxu0 0
      %3419 = vmatprep.subr.bf16.mxu0 0
      %3420 = vmatpush2.bf16.msra.mxu0 0
      %3421 = vmatprep.subr.bf16.mxu0 0
      %3422 = vmatpush2.bf16.msra.mxu0 0
      %3423 = vmatprep.subr.bf16.mxu0 0
      %3424 = vmatpush2.bf16.msra.mxu0 0
      %3425 = vmatprep.mubr.bf16.mxu0 0
      %3426 = vmatmul.mubr.bf16.gmra.mxu0 %v3323
      %v3427 = vpop.f32.mrf.mxu0
      %v3428 = vadd.f32 %v3344, %v3427
      %v3429 = vpop.f32.mrf.mxu0
      %v3430 = vpop.f32.mrf.mxu0
      %v3431 = vadd.f32 %v3344, %v3430
      %v3432 = vpop.f32.mrf.mxu0
      %3433 = vmatprep.mubr.bf16.mxu0 0
      %3434 = vmatmul.mubr.bf16.gmra.mxu0 %v3324
      %v3435 = vpop.f32.mrf.mxu0
      %v3436 = vadd.f32 %v3344, %v3435
      %v3437 = vpop.f32.mrf.mxu0
      %v3438 = vpop.f32.mrf.mxu0
      %v3439 = vadd.f32 %v3344, %v3438
      %v3440 = vpop.f32.mrf.mxu0
      %3441 = vdwg.mxu0
      %v3442 = vmul.f32 %v3428, 0.5
      %v3443 = vmul.f32 %v3431, 0.5
      %v3444 = vmul.f32 %v3436, 0.5
      %v3445 = vmul.f32 %v3439, 0.5
      %v3446 = vadd.f32 %v3142, %v3442
      %v3447 = vadd.f32 %v3143, %v3443
      %v3448 = vadd.f32 %v3144, %v3444
      %v3449 = vadd.f32 %v3145, %v3445
      %v3450 = vld [vmem:[%s12 + $0x11] sm:$0x1]
      %v3451 = vld [vmem:[%s12 + $0x12] sm:$0x1]
      %v3452 = vsel %vm453, %v3446, 0.0
      %3453 = vadd.xlane.f32.xlu0 %v3452
      %v3454 = vpop.xlane.xlu0 %3453
      %v3455 = vsel %vm453, %v3447, 0.0
      %3456 = vadd.xlane.f32.xlu0 %v3455
      %v3457 = vpop.xlane.xlu0 %3456
      %v3458 = vsel %vm453, %v3448, 0.0
      %3459 = vadd.xlane.f32.xlu0 %v3458
      %v3460 = vpop.xlane.xlu0 %3459
      %v3461 = vsel %vm453, %v3449, 0.0
      %3462 = vadd.xlane.f32.xlu0 %v3461
      %v3463 = vpop.xlane.xlu0 %3462
      %v3464 = vmul.f32 %v3454, %v466
      %v3465 = vmul.f32 %v3457, %v466
      %v3466 = vmul.f32 %v3460, %v466
      %v3467 = vmul.f32 %v3463, %v466
      %v3468 = vsub.f32 %v3446, %v3464
      %v3469 = vsub.f32 %v3447, %v3465
      %v3470 = vsub.f32 %v3448, %v3466
      %v3471 = vsub.f32 %v3449, %v3467
      %v3472 = vmul.f32 %v3468, %v3468
      %v3473 = vmul.f32 %v3469, %v3469
      %v3474 = vmul.f32 %v3470, %v3470
      %v3475 = vmul.f32 %v3471, %v3471
      %v3476 = vsel %vm453, %v3472, 0.0
      %3477 = vadd.xlane.f32.xlu0 %v3476
      %v3478 = vpop.xlane.xlu0 %3477
      %v3479 = vsel %vm453, %v3473, 0.0
      %3480 = vadd.xlane.f32.xlu0 %v3479
      %v3481 = vpop.xlane.xlu0 %3480
      %v3482 = vsel %vm453, %v3474, 0.0
      %3483 = vadd.xlane.f32.xlu0 %v3482
      %v3484 = vpop.xlane.xlu0 %3483
      %v3485 = vsel %vm453, %v3475, 0.0
      %3486 = vadd.xlane.f32.xlu0 %v3485
      %v3487 = vpop.xlane.xlu0 %3486
      %v3488 = vmul.f32 %v3478, %v466
      %v3489 = vmul.f32 %v3481, %v466
      %v3490 = vmul.f32 %v3484, %v466
      %v3491 = vmul.f32 %v3487, %v466
      %v3492 = vadd.f32 %v3488, 1e-05
      %v3493 = vadd.f32 %v3489, 1e-05
      %v3494 = vadd.f32 %v3490, 1e-05
      %v3495 = vadd.f32 %v3491, 1e-05
      %v3496 = vrsqrt.pop %v3492
      %v3497 = vrsqrt.pop %v3493
      %v3498 = vrsqrt.pop %v3494
      %v3499 = vrsqrt.pop %v3495
      %v3500 = vmul.f32 %v3468, %v3496
      %v3501 = vmul.f32 %v3469, %v3497
      %v3502 = vmul.f32 %v3470, %v3498
      %v3503 = vmul.f32 %v3471, %v3499
      %v3504 = vlaneseq
      %v3505 = vshrl.u32 %v3504, 7
      %v3506 = vsub.s32 0, %v3505
      %v3507 = vrot.slane %v3450, %v3506
      %v3508 = vmul.f32 %v3500, %v3507
      %v3509 = vmul.f32 %v3501, %v3507
      %v3510 = vmul.f32 %v3502, %v3507
      %v3511 = vmul.f32 %v3503, %v3507
      %v3512 = vlaneseq
      %v3513 = vshrl.u32 %v3512, 7
      %v3514 = vsub.s32 0, %v3513
      %v3515 = vrot.slane %v3451, %v3514
      %v3516 = vadd.f32 %v3508, %v3515
      %v3517 = vadd.f32 %v3509, %v3515
      %v3518 = vadd.f32 %v3510, %v3515
      %v3519 = vadd.f32 %v3511, %v3515
      %3520 = vst.msk [vmem:[%s442] sm:$0xff] %vm453, %v3516
      %3521 = vst.msk [vmem:[%s442 + $0x8] sm:$0xff] %vm453, %v3517
      %3522 = vst.msk [vmem:[%s442 + $0x10] sm:$0xff] %vm453, %v3518
      %3523 = vst.msk [vmem:[%s442 + $0x18] sm:$0xff] %vm453, %v3519
      %s3524 = smul.u32 4, %s24
      %p3525 = scmp.lt.s32.totalorder %s3524, 7
      %s3526 = scalar_select %p3525, %s3524, 7
      %s3527 = smul.addr %s3526, 8
      %s3528 = scalar_lea.vmem %s13, %s3527
      // Predicated region
      $region73: #{tpu_custom_call.1} parent=71 // pred_check
        %p3529 = pneg %p320
      $region74: #{tpu_custom_call.1} parent=71 // pred_check_branch
        %3531 = sbr.rel (%p3529) target = $region76
      $region75: #{tpu_custom_call.1} parent=71 // pred_region
        %s3532 = smul.u32 4, %s24
      $region76: #{tpu_custom_call.1} parent=71 // pred_fallthru
        _
    $region72: #{tpu_custom_call.1} parent=5 // pred_fallthru
      _
    %p3533 = scmp.le.s32.totalorder 2, %s19
    // Predicated region
    $region77: #{tpu_custom_call.1} parent=5 // pred_check
      %p3534 = pneg %p3533
    $region78: #{tpu_custom_call.1} parent=5 // pred_check_branch
      %3536 = sbr.rel (%p3534) target = $region80
    $region79: #{tpu_custom_call.1} parent=5 // pred_region
      %s3537 = ssub.s32 %s19, 2
      // Predicated region
      $region81: #{tpu_custom_call.1} parent=79 // pred_check
        %p3538 = pneg %p326
      $region82: #{tpu_custom_call.1} parent=79 // pred_check_branch
        %3540 = sbr.rel (%p3538) target = $region84
      $region83: #{tpu_custom_call.1} parent=79 // pred_region
        %s3541 = smul.u32 4, %s25
        %p3542 = scmp.lt.s32.totalorder %s3541, 7
        %s3543 = scalar_select %p3542, %s3541, 7
        %s3544 = smul.addr %s3543, 8
        %s3545 = scalar_lea.vmem %s13, %s3544
      $region84: #{tpu_custom_call.1} parent=79 // pred_fallthru
        _
    $region80: #{tpu_custom_call.1} parent=5 // pred_fallthru
      _
  $region6: #{tpu_custom_call.1} parent=0 // loop_footer
    %s23 = sadd.s32 1, %s19
  $region7: #{tpu_custom_call.1} parent=0 // loop_footer_branch
    %18 = sbr.rel target = $region3
  $region8: #{tpu_custom_call.1} parent=0 // loop_exit
    _

</llo_original>
